<compile_context>
chip_gen: v7x
topology: tpu7x:2x2x1
jax: 0.10.0
libtpu: 0.0.40
codegen_flags: <defaults>
</compile_context>

<pallas_src>
import math
from functools import partial

import jax
import jax.numpy as jnp
from jax.experimental import pallas as pl
from jax.experimental.pallas import tpu as pltpu

BN_EPS = 1e-5
BN_SCALE = float(1.0 / math.sqrt(1.0 + BN_EPS))  # eval-mode BN with default running stats
FEAT = 1280                                      # EfficientNet-B0 feature width


def _round_up(x, m):
    return (x + m - 1) // m * m


def _nbytes(a):
    n = 1
    for d in a.shape:
        n *= int(d)
    return n * jnp.dtype(a.dtype).itemsize


def _tpu_vmem_capacity():
    """Generation-aware VMEM capacity in bytes (v7x: 64 MiB, v5e/v6e: 128 MiB)."""
    kind = ""
    try:
        kind = jax.devices()[0].device_kind.lower()
    except Exception:
        pass
    try:
        return int(pltpu.get_tpu_info().vmem_capacity_bytes)
    except Exception:
        if "7" in kind:
            return 64 << 20
        if kind:
            return 128 << 20
        return 64 << 20  # unknown -> conservative (v7x-sized)


# --------------------------------------------------------------------------------------
# Fused kernel: image tower (tiled over batch x spatial), pooled-sum accumulator, MLP head
# --------------------------------------------------------------------------------------
def _make_fused_kernel(b_tile, p_tile, inv_p):
    rows = b_tile * p_tile

    def kernel(x_ref, xtab_ref, proj_w_ref,
               w0_ref, b0_ref, w1_ref, b1_ref,
               wci_ref, wct_ref, bc_ref,
               w2_ref, b2_ref, w3_ref, b3_ref,
               w4_ref, b4_ref,
               o_ref, acc_ref):
        p = pl.program_id(1)

        @pl.when(p == 0)
        def _init():
            acc_ref[...] = jnp.zeros_like(acc_ref)

        # ---- image-tower tile --------------------------------------------------------
        # Stem conv pre-activation (eval-BN already folded into the conv weight) -> SiLU.
        s = x_ref[...].astype(jnp.float32)
        s = s * jax.nn.sigmoid(s)
        # Leading-dim collapse only; p_tile % 8 == 0 keeps sublane groups intact, so this
        # reshape is metadata-only (no VMEM relayout) while giving the MXU M = b*p rows.
        s2 = s.reshape(rows, s.shape[-1]).astype(jnp.bfloat16)
        # 1x1 projection (BN folded into proj_w), bf16 MXU with f32 accumulation.
        y = jnp.dot(s2, proj_w_ref[...], preferred_element_type=jnp.float32)
        # SiLU with an EUP-only sigmoid: exp + approximate reciprocal (no VPU divide).
        # TODO(synk): on v6e/v7x this elementwise slab could also run in bf16 (bf16 EUP)
        # for ~2x on the binding EUP slot; kept f32 to preserve pooled-sum numerics.
        y = y * pl.reciprocal(1.0 + jnp.exp(-y), approx=True)
        # Pooled-sum accumulate (zero-padded spatial rows contribute exactly 0).
        acc_ref[...] += y.reshape(b_tile, p_tile, FEAT).sum(axis=1)

        # ---- finalize: global avg pool + fused MLP head (tiny shapes, pure latency) ----
        @pl.when(p == pl.num_programs(1) - 1)
        def _finalize():
            relu = lambda v: jnp.maximum(v, 0.0)

            def lin_act(xv, w_ref_, b_ref_):
                # Linear -> BatchNorm1d(eval, folded into w/b) -> ReLU -> Dropout(id)
                return relu(jnp.dot(xv, w_ref_[...],
                                    preferred_element_type=jnp.float32) + b_ref_[...])

            ximg = acc_ref[...] * inv_p                            # adaptive avg pool + flatten
            xtab = lin_act(xtab_ref[...], w0_ref, b0_ref)          # fc0: [b, 64]
            xtab = lin_act(xtab, w1_ref, b1_ref)                   # fc1: [b, 32]
            # concat(ximg, xtab) @ Wc == ximg@Wc_img + xtab@Wc_tab  (avoids in-kernel concat)
            z = (jnp.dot(ximg, wci_ref[...], preferred_element_type=jnp.float32)
                 + jnp.dot(xtab, wct_ref[...], preferred_element_type=jnp.float32)
                 + bc_ref[...])
            z = relu(z)                                            # combined_fc: [b, 64]
            z = lin_act(z, w2_ref, b2_ref)                         # fc2: [b, 32]
            z = lin_act(z, w3_ref, b3_ref)                         # fc3: [b, 16]
            o_ref[...] = (jnp.dot(z, w4_ref[...], preferred_element_type=jnp.float32)
                          + b4_ref[...])                           # fc4: [b, 10]

    return kernel


# --------------------------------------------------------------------------------------
# Parameters / reference
# --------------------------------------------------------------------------------------
def init_params(key, num_features_tab, in_ch=3):
    def lin(k, fan_in, fan_out):
        kw, kb = jax.random.split(k)
        w = jax.random.normal(kw, (fan_in, fan_out), jnp.float32) / math.sqrt(fan_in)
        b = jax.random.normal(kb, (1, fan_out), jnp.float32) * 0.01
        return w, b

    ks = jax.random.split(key, 10)
    p = {}
    # feature-extractor skeleton (conv layers are bias-free, like EfficientNet)
    p["stem_w"] = jax.random.normal(ks[0], (3, 3, in_ch, 32), jnp.float32) / math.sqrt(9.0 * in_ch)
    p["proj_w"] = jax.random.normal(ks[1], (32, FEAT), jnp.float32) / math.sqrt(32.0)
    # MLP towers / head
    p["w0"], p["b0"] = lin(ks[2], num_features_tab, 64)
    p["w1"], p["b1"] = lin(ks[3], 64, 32)
    wc, p["bc"] = lin(ks[4], FEAT + 32, 64)
    p["wc_img"], p["wc_tab"] = wc[:FEAT, :], wc[FEAT:, :]          # split of Linear(1312, 64)
    p["w2"], p["b2"] = lin(ks[5], 64, 32)
    p["w3"], p["b3"] = lin(ks[6], 32, 16)
    p["w4"], p["b4"] = lin(ks[7], 16, 10)
    return p


def reference_forward(x_img_nchw, x_tab, params):
    """Pure-JAX f32 reference of the same skeleton (for correctness checking)."""
    s = BN_SCALE
    relu = lambda v: jnp.maximum(v, 0.0)
    silu = lambda v: v * jax.nn.sigmoid(v)
    x = jnp.transpose(x_img_nchw, (0, 2, 3, 1))
    stem = jax.lax.conv_general_dilated(
        x, params["stem_w"], window_strides=(2, 2), padding=((1, 1), (1, 1)),
        dimension_numbers=("NHWC", "HWIO", "NHWC"))
    stem = silu(stem * s)
    y = silu(jnp.einsum("bhwc,cf->bhwf", stem, params["proj_w"]) * s)
    ximg = y.mean(axis=(1, 2))
    t = relu((x_tab @ params["w0"] + params["b0"]) * s)
    t = relu((t @ params["w1"] + params["b1"]) * s)
    z = relu((ximg @ params["wc_img"] + t @ params["wc_tab"] + params["bc"]) * s)
    z = relu((z @ params["w2"] + params["b2"]) * s)
    z = relu((z @ params["w3"] + params["b3"]) * s)
    return z @ params["w4"] + params["b4"]


# --------------------------------------------------------------------------------------
# Forward wrapper
# --------------------------------------------------------------------------------------
@partial(jax.jit, static_argnames=("p_tile", "b_tile"))
def transfer_learning_forward(x_img_nchw, x_tab, params, p_tile=None, b_tile=None):
    B = x_img_nchw.shape[0]
    F = x_tab.shape[1]

    # ---- eval-mode BatchNorm folded into the (tiny) weights, wrapper-side -------------
    s = BN_SCALE
    stem_w = params["stem_w"] * s                                  # conv -> BN
    proj_w = (params["proj_w"] * s).astype(jnp.bfloat16)           # 1x1 proj -> BN (bf16 MXU)
    w0, b0 = params["w0"] * s, params["b0"] * s
    w1, b1 = params["w1"] * s, params["b1"] * s
    wci, wct, bc = params["wc_img"] * s, params["wc_tab"] * s, params["bc"] * s
    w2, b2 = params["w2"] * s, params["b2"] * s
    w3, b3 = params["w3"] * s, params["b3"] * s
    w4, b4 = params["w4"], params["b4"]                            # fc4 has no BatchNorm

    # ---- stem 3x3/stride-2 conv as ONE wrapper-side lax.conv (no 9x im2col in HBM) ----
    # TODO(synk): fuse this conv into the kernel with shifted in-kernel tap loads.
    x_nhwc = jnp.transpose(x_img_nchw, (0, 2, 3, 1))
    stem = jax.lax.conv_general_dilated(
        x_nhwc, stem_w, window_strides=(2, 2), padding=((1, 1), (1, 1)),
        dimension_numbers=("NHWC", "HWIO", "NHWC"))
    _, Ho, Wo, C32 = stem.shape
    P = Ho * Wo
    stem = stem.reshape(B, P, C32)

    # ---- generation-aware tiling -------------------------------------------------------
    vmem_cap = _tpu_vmem_capacity()
    if b_tile is None:
        # v7x has 2 TensorCores: split the batch across the "parallel" axis when it is
        # large enough to keep (8,128)-friendly blocks; otherwise keep the full batch.
        b_tile = B // 2 if (B % 16 == 0) else B
    b_tile = int(b_tile)
    assert B % b_tile == 0
    grid_b = B // b_tile

    if p_tile is None:
        # Per-row VMEM cost of the per-step intermediates (f32 proj slab dominates).
        bytes_per_row = FEAT * 4 + FEAT * 4 + 3 * C32 * 4
        slab_budget = int(vmem_cap * 0.30)        # ~19 MiB on v7x, ~38 MiB on v5e/v6e
        max_rows = max(8 * b_tile, (slab_budget // bytes_per_row) // 8 * 8)
        p_tile = max(8, ((max_rows // b_tile) // 8) * 8)
    p_tile = _round_up(int(p_tile), 8)
    p_tile = min(p_tile, _round_up(P, 8))         # collapse to ONE grid step when it fits
    P_pad = _round_up(P, p_tile)
    grid_p = P_pad // p_tile

    # Zero-padded spatial rows contribute exactly 0 to the pooled sum
    # (no biases / BN shift in the image tower and silu(0) == 0).
    stem = jnp.pad(stem, ((0, 0), (0, P_pad - P), (0, 0))).astype(jnp.bfloat16)
    # NOTE (per review): do NOT pad the 32-wide reduction/lane dims to 128 — the stem
    # path is a tiny fraction of the FLOPs and padding would only inflate HBM traffic.

    const_inputs = (proj_w, w0, b0, w1, b1, wci, wct, bc, w2, b2, w3, b3, w4, b4)

    def _const_spec(a):
        nd = a.ndim
        return pl.BlockSpec(tuple(a.shape), lambda b, p, _nd=nd: (0,) * _nd)

    in_specs = [
        pl.BlockSpec((b_tile, p_tile, C32), lambda b, p: (b, p, 0)),   # streamed stem act
        pl.BlockSpec((b_tile, F), lambda b, p: (b, 0)),                # tabular features
    ]
    # NOTE: pipeline_mode=pl.Buffered(1) on the constant-weight specs would drop their
    # (small) double buffers; their constant index maps already avoid any re-DMA and the
    # VMEM budget below accounts for the buffer pairs, so the default is kept.
    in_specs += [_const_spec(a) for a in const_inputs]

    # ---- cost / VMEM hints -------------------------------------------------------------
    const_bytes = sum(_nbytes(a) for a in const_inputs)
    head_flops = 2 * B * (F * 64 + 64 * 32 + FEAT * 64 + 32 * 64 + 64 * 32 + 32 * 16 + 16 * 10)
    flops = 2 * B * P_pad * C32 * FEAT + head_flops
    transcendentals = B * P_pad * (C32 + 2 * FEAT)     # stem sigmoid + (exp, vrcp) per proj elem
    bytes_accessed = _nbytes(stem) + _nbytes(x_tab) + const_bytes + B * 10 * 4

    tile_bytes = (2 * b_tile * p_tile * C32 * 2        # double-buffered bf16 input tile
                  + b_tile * p_tile * FEAT * 8         # f32 proj slab + elementwise temps
                  + b_tile * FEAT * 4                  # pooled-sum accumulator
                  + 2 * const_bytes                    # resident (double-buffered) weights
                  + (4 << 20))                         # slack
    vmem_limit = int(min(vmem_cap - (8 << 20), 96 << 20, max(32 << 20, tile_bytes)))

    kernel = _make_fused_kernel(b_tile, p_tile, 1.0 / float(P))

    return pl.pallas_call(
        kernel,
        out_shape=jax.ShapeDtypeStruct((B, 10), jnp.float32),
        grid_spec=pltpu.PrefetchScalarGridSpec(
            num_scalar_prefetch=0,
            grid=(grid_b, grid_p),
            in_specs=in_specs,
            out_specs=pl.BlockSpec((b_tile, 10), lambda b, p: (b, 0)),
            scratch_shapes=[pltpu.VMEM((b_tile, FEAT), jnp.float32)],
        ),
        compiler_params=pltpu.CompilerParams(
            dimension_semantics=("parallel", "arbitrary"),   # batch parallel, pooled-sum reduction
            vmem_limit_bytes=vmem_limit,
        ),
        cost_estimate=pl.CostEstimate(
            flops=int(flops),
            transcendentals=int(transcendentals),
            bytes_accessed=int(bytes_accessed),
        ),
    )(stem, x_tab, *const_inputs)


if __name__ == "__main__":
    B, C, H, W = 2, 3, 16, 16
    NUM_FEATURES_TAB = 8

    key = jax.random.PRNGKey(0)
    k_img, k_tab = jax.random.split(key)
    x_img = jax.random.normal(k_img, (B, C, H, W), jnp.float32)    # NCHW, like PyTorch
    x_tab = jax.random.normal(k_tab, (B, NUM_FEATURES_TAB), jnp.float32)

    params = init_params(jax.random.PRNGKey(42), NUM_FEATURES_TAB, in_ch=C)

    # Auto-tiled path: the whole spatial extent fits VMEM -> single grid step.
    out = jax.block_until_ready(transfer_learning_forward(x_img, x_tab, params))
    assert out.shape == (B, 10) and out.dtype == jnp.float32
    assert bool(jnp.all(jnp.isfinite(out)))

    # Forced multi-step path: p_tile=16 -> 4 spatial steps; exercises init/accumulate/finalize.
    out_tiled = jax.block_until_ready(
        transfer_learning_forward(x_img, x_tab, params, p_tile=16))
    assert bool(jnp.allclose(out, out_tiled, rtol=1e-3, atol=1e-3))

    # Pure-JAX f32 reference (kernel uses bf16 matmul inputs + approx-reciprocal sigmoid).
    ref = jax.block_until_ready(reference_forward(x_img, x_tab, params))
    assert bool(jnp.allclose(out, ref, rtol=5e-2, atol=5e-2))

    print("KERNEL_OK")
</pallas_src>

<mosaic_0001>
module attributes {stable_mosaic.version = 11 : i64} {
  func.func @kernel(%arg0: i32, %arg1: i32, %arg2: memref<2x64x32xbf16, #tpu.memory_space<vmem>>, %arg3: memref<2x8xf32, #tpu.memory_space<vmem>>, %arg4: memref<32x1280xbf16, #tpu.memory_space<vmem>>, %arg5: memref<8x64xf32, #tpu.memory_space<vmem>>, %arg6: memref<1x64xf32, #tpu.memory_space<vmem>>, %arg7: memref<64x32xf32, #tpu.memory_space<vmem>>, %arg8: memref<1x32xf32, #tpu.memory_space<vmem>>, %arg9: memref<1280x64xf32, #tpu.memory_space<vmem>>, %arg10: memref<32x64xf32, #tpu.memory_space<vmem>>, %arg11: memref<1x64xf32, #tpu.memory_space<vmem>>, %arg12: memref<64x32xf32, #tpu.memory_space<vmem>>, %arg13: memref<1x32xf32, #tpu.memory_space<vmem>>, %arg14: memref<32x16xf32, #tpu.memory_space<vmem>>, %arg15: memref<1x16xf32, #tpu.memory_space<vmem>>, %arg16: memref<16x10xf32, #tpu.memory_space<vmem>>, %arg17: memref<1x10xf32, #tpu.memory_space<vmem>>, %arg18: memref<2x10xf32, #tpu.memory_space<vmem>>, %arg19: memref<2x1280xf32, #tpu.memory_space<vmem>>) attributes {dimension_semantics = [#tpu.dimension_semantics<parallel>, #tpu.dimension_semantics<arbitrary>], iteration_bounds = array<i64: 1, 1>, scalar_prefetch = 0 : i64, scratch_operands = 1 : i64, tpu.core_type = #tpu.core_type<tc>, window_params = [{transform_indices = @transform_0, window_bounds = array<i64: 2, 64, 32>}, {transform_indices = @transform_1, window_bounds = array<i64: 2, 8>}, {pipeline_mode = #tpu.pipeline_mode<synchronous>, transform_indices = @transform_2, window_bounds = array<i64: 32, 1280>}, {pipeline_mode = #tpu.pipeline_mode<synchronous>, transform_indices = @transform_3, window_bounds = array<i64: 8, 64>}, {pipeline_mode = #tpu.pipeline_mode<synchronous>, transform_indices = @transform_4, window_bounds = array<i64: 1, 64>}, {pipeline_mode = #tpu.pipeline_mode<synchronous>, transform_indices = @transform_5, window_bounds = array<i64: 64, 32>}, {pipeline_mode = #tpu.pipeline_mode<synchronous>, transform_indices = @transform_6, window_bounds = array<i64: 1, 32>}, {pipeline_mode = #tpu.pipeline_mode<synchronous>, transform_indices = @transform_7, window_bounds = array<i64: 1280, 64>}, {pipeline_mode = #tpu.pipeline_mode<synchronous>, transform_indices = @transform_8, window_bounds = array<i64: 32, 64>}, {pipeline_mode = #tpu.pipeline_mode<synchronous>, transform_indices = @transform_9, window_bounds = array<i64: 1, 64>}, {pipeline_mode = #tpu.pipeline_mode<synchronous>, transform_indices = @transform_10, window_bounds = array<i64: 64, 32>}, {pipeline_mode = #tpu.pipeline_mode<synchronous>, transform_indices = @transform_11, window_bounds = array<i64: 1, 32>}, {pipeline_mode = #tpu.pipeline_mode<synchronous>, transform_indices = @transform_12, window_bounds = array<i64: 32, 16>}, {pipeline_mode = #tpu.pipeline_mode<synchronous>, transform_indices = @transform_13, window_bounds = array<i64: 1, 16>}, {pipeline_mode = #tpu.pipeline_mode<synchronous>, transform_indices = @transform_14, window_bounds = array<i64: 16, 10>}, {pipeline_mode = #tpu.pipeline_mode<synchronous>, transform_indices = @transform_15, window_bounds = array<i64: 1, 10>}, {transform_indices = @transform_16, window_bounds = array<i64: 2, 10>}]} {
    %c0_i32 = arith.constant 0 : i32
    %0 = arith.cmpi eq, %arg1, %c0_i32 : i32
    %1 = arith.extui %0 : i1 to i32
    %c0_i32_0 = arith.constant 0 : i32
    %2 = arith.cmpi ne, %1, %c0_i32_0 : i32
    scf.if %2 {
      %cst_15 = arith.constant 0.000000e+00 : f32
      %30 = vector.broadcast %cst_15 : f32 to vector<2x1280xf32>
      %c0_16 = arith.constant 0 : index
      %c0_17 = arith.constant 0 : index
      %31 = vector.load %arg19[%c0_16, %c0_17] : memref<2x1280xf32, #tpu.memory_space<vmem>>, vector<2x1280xf32>
      tpu.vector_store %arg19[%c0_16, %c0_17], %30 {strides = array<i32>} : memref<2x1280xf32, #tpu.memory_space<vmem>>, vector<2x1280xf32>,
    } else {
    }
    %c0 = arith.constant 0 : index
    %c0_1 = arith.constant 0 : index
    %c0_2 = arith.constant 0 : index
    %3 = vector.load %arg2[%c0, %c0_1, %c0_2] : memref<2x64x32xbf16, #tpu.memory_space<vmem>>, vector<2x64x32xbf16>
    %4 = arith.extf %3 : vector<2x64x32xbf16> to vector<2x64x32xf32>
    %5 = arith.negf %4 : vector<2x64x32xf32>
    %6 = math.exp %5 : vector<2x64x32xf32>
    %cst = arith.constant 1.000000e+00 : f32
    %7 = vector.broadcast %cst : f32 to vector<2x64x32xf32>
    %8 = arith.addf %7, %6 : vector<2x64x32xf32>
    %9 = arith.divf %7, %8 : vector<2x64x32xf32>
    %10 = arith.mulf %4, %9 : vector<2x64x32xf32>
    %11 = vector.shape_cast %10 : vector<2x64x32xf32> to vector<128x32xf32>
    %12 = arith.truncf %11 : vector<128x32xf32> to vector<128x32xbf16>
    %c0_3 = arith.constant 0 : index
    %c0_4 = arith.constant 0 : index
    %13 = vector.load %arg4[%c0_3, %c0_4] : memref<32x1280xbf16, #tpu.memory_space<vmem>>, vector<32x1280xbf16>
    %cst_5 = arith.constant dense<0.000000e+00> : vector<128x1280xf32>
    %14 = tpu.matmul %12, %13, %cst_5 {dimension_numbers = #tpu.dot_dimension_numbers<[1], [0], [0], [1], [0, 0, 1, 1], [], []>} : vector<128x32xbf16>, vector<32x1280xbf16>, vector<128x1280xf32> -> vector<128x1280xf32>
    %cst_6 = arith.constant 0.000000e+00 : f32
    %15 = vector.broadcast %cst_6 : f32 to vector<128x1280xf32>
    %16 = arith.subf %15, %14 : vector<128x1280xf32>
    %17 = math.exp %16 : vector<128x1280xf32>
    %cst_7 = arith.constant 1.000000e+00 : f32
    %18 = vector.broadcast %cst_7 : f32 to vector<128x1280xf32>
    %19 = arith.addf %18, %17 : vector<128x1280xf32>
    %20 = tpu.reciprocal %19 {approx = true} : vector<128x1280xf32> -> vector<128x1280xf32>
    %21 = arith.mulf %14, %20 : vector<128x1280xf32>
    %c0_8 = arith.constant 0 : index
    %c0_9 = arith.constant 0 : index
    %22 = vector.load %arg19[%c0_8, %c0_9] : memref<2x1280xf32, #tpu.memory_space<vmem>>, vector<2x1280xf32>
    %23 = vector.shape_cast %21 : vector<128x1280xf32> to vector<2x64x1280xf32>
    %cst_10 = arith.constant dense<0.000000e+00> : vector<2x1280xf32>
    %24 = vector.multi_reduction <add>, %23, %cst_10 [1] : vector<2x64x1280xf32> to vector<2x1280xf32>
    %25 = arith.addf %22, %24 : vector<2x1280xf32>
    %c0_11 = arith.constant 0 : index
    %c0_12 = arith.constant 0 : index
    %26 = vector.load %arg19[%c0_11, %c0_12] : memref<2x1280xf32, #tpu.memory_space<vmem>>, vector<2x1280xf32>
    tpu.vector_store %arg19[%c0_11, %c0_12], %25 {strides = array<i32>} : memref<2x1280xf32, #tpu.memory_space<vmem>>, vector<2x1280xf32>,
    %c0_i32_13 = arith.constant 0 : i32
    %27 = arith.cmpi eq, %arg1, %c0_i32_13 : i32
    %28 = arith.extui %27 : i1 to i32
    %c0_i32_14 = arith.constant 0 : i32
    %29 = arith.cmpi ne, %28, %c0_i32_14 : i32
    scf.if %29 {
      %c0_15 = arith.constant 0 : index
      %c0_16 = arith.constant 0 : index
      %30 = vector.load %arg19[%c0_15, %c0_16] : memref<2x1280xf32, #tpu.memory_space<vmem>>, vector<2x1280xf32>
      %cst_17 = arith.constant 1.562500e-02 : f32
      %31 = vector.broadcast %cst_17 : f32 to vector<2x1280xf32>
      %32 = arith.mulf %30, %31 : vector<2x1280xf32>
      %c0_18 = arith.constant 0 : index
      %c0_19 = arith.constant 0 : index
      %33 = vector.load %arg3[%c0_18, %c0_19] : memref<2x8xf32, #tpu.memory_space<vmem>>, vector<2x8xf32>
      %c0_20 = arith.constant 0 : index
      %c0_21 = arith.constant 0 : index
      %34 = vector.load %arg5[%c0_20, %c0_21] : memref<8x64xf32, #tpu.memory_space<vmem>>, vector<8x64xf32>
      %cst_22 = arith.constant dense<0.000000e+00> : vector<2x64xf32>
      %35 = tpu.matmul %33, %34, %cst_22 {dimension_numbers = #tpu.dot_dimension_numbers<[1], [0], [0], [1], [0, 0, 1, 1], [], []>} : vector<2x8xf32>, vector<8x64xf32>, vector<2x64xf32> -> vector<2x64xf32>
      %c0_23 = arith.constant 0 : index
      %c0_24 = arith.constant 0 : index
      %36 = vector.load %arg6[%c0_23, %c0_24] : memref<1x64xf32, #tpu.memory_space<vmem>>, vector<1x64xf32>
      %37 = vector.broadcast %36 : vector<1x64xf32> to vector<2x64xf32>
      %38 = arith.addf %35, %37 : vector<2x64xf32>
      %cst_25 = arith.constant 0.000000e+00 : f32
      %39 = vector.broadcast %cst_25 : f32 to vector<2x64xf32>
      %40 = arith.maximumf %38, %39 : vector<2x64xf32>
      %c0_26 = arith.constant 0 : index
      %c0_27 = arith.constant 0 : index
      %41 = vector.load %arg7[%c0_26, %c0_27] : memref<64x32xf32, #tpu.memory_space<vmem>>, vector<64x32xf32>
      %cst_28 = arith.constant dense<0.000000e+00> : vector<2x32xf32>
      %42 = tpu.matmul %40, %41, %cst_28 {dimension_numbers = #tpu.dot_dimension_numbers<[1], [0], [0], [1], [0, 0, 1, 1], [], []>} : vector<2x64xf32>, vector<64x32xf32>, vector<2x32xf32> -> vector<2x32xf32>
      %c0_29 = arith.constant 0 : index
      %c0_30 = arith.constant 0 : index
      %43 = vector.load %arg8[%c0_29, %c0_30] : memref<1x32xf32, #tpu.memory_space<vmem>>, vector<1x32xf32>
      %44 = vector.broadcast %43 : vector<1x32xf32> to vector<2x32xf32>
      %45 = arith.addf %42, %44 : vector<2x32xf32>
      %cst_31 = arith.constant 0.000000e+00 : f32
      %46 = vector.broadcast %cst_31 : f32 to vector<2x32xf32>
      %47 = arith.maximumf %45, %46 : vector<2x32xf32>
      %c0_32 = arith.constant 0 : index
      %c0_33 = arith.constant 0 : index
      %48 = vector.load %arg9[%c0_32, %c0_33] : memref<1280x64xf32, #tpu.memory_space<vmem>>, vector<1280x64xf32>
      %cst_34 = arith.constant dense<0.000000e+00> : vector<2x64xf32>
      %49 = tpu.matmul %32, %48, %cst_34 {dimension_numbers = #tpu.dot_dimension_numbers<[1], [0], [0], [1], [0, 0, 1, 1], [], []>} : vector<2x1280xf32>, vector<1280x64xf32>, vector<2x64xf32> -> vector<2x64xf32>
      %c0_35 = arith.constant 0 : index
      %c0_36 = arith.constant 0 : index
      %50 = vector.load %arg10[%c0_35, %c0_36] : memref<32x64xf32, #tpu.memory_space<vmem>>, vector<32x64xf32>
      %cst_37 = arith.constant dense<0.000000e+00> : vector<2x64xf32>
      %51 = tpu.matmul %47, %50, %cst_37 {dimension_numbers = #tpu.dot_dimension_numbers<[1], [0], [0], [1], [0, 0, 1, 1], [], []>} : vector<2x32xf32>, vector<32x64xf32>, vector<2x64xf32> -> vector<2x64xf32>
      %52 = arith.addf %49, %51 : vector<2x64xf32>
      %c0_38 = arith.constant 0 : index
      %c0_39 = arith.constant 0 : index
      %53 = vector.load %arg11[%c0_38, %c0_39] : memref<1x64xf32, #tpu.memory_space<vmem>>, vector<1x64xf32>
      %54 = vector.broadcast %53 : vector<1x64xf32> to vector<2x64xf32>
      %55 = arith.addf %52, %54 : vector<2x64xf32>
      %cst_40 = arith.constant 0.000000e+00 : f32
      %56 = vector.broadcast %cst_40 : f32 to vector<2x64xf32>
      %57 = arith.maximumf %55, %56 : vector<2x64xf32>
      %c0_41 = arith.constant 0 : index
      %c0_42 = arith.constant 0 : index
      %58 = vector.load %arg12[%c0_41, %c0_42] : memref<64x32xf32, #tpu.memory_space<vmem>>, vector<64x32xf32>
      %cst_43 = arith.constant dense<0.000000e+00> : vector<2x32xf32>
      %59 = tpu.matmul %57, %58, %cst_43 {dimension_numbers = #tpu.dot_dimension_numbers<[1], [0], [0], [1], [0, 0, 1, 1], [], []>} : vector<2x64xf32>, vector<64x32xf32>, vector<2x32xf32> -> vector<2x32xf32>
      %c0_44 = arith.constant 0 : index
      %c0_45 = arith.constant 0 : index
      %60 = vector.load %arg13[%c0_44, %c0_45] : memref<1x32xf32, #tpu.memory_space<vmem>>, vector<1x32xf32>
      %61 = vector.broadcast %60 : vector<1x32xf32> to vector<2x32xf32>
      %62 = arith.addf %59, %61 : vector<2x32xf32>
      %cst_46 = arith.constant 0.000000e+00 : f32
      %63 = vector.broadcast %cst_46 : f32 to vector<2x32xf32>
      %64 = arith.maximumf %62, %63 : vector<2x32xf32>
      %c0_47 = arith.constant 0 : index
      %c0_48 = arith.constant 0 : index
      %65 = vector.load %arg14[%c0_47, %c0_48] : memref<32x16xf32, #tpu.memory_space<vmem>>, vector<32x16xf32>
      %cst_49 = arith.constant dense<0.000000e+00> : vector<2x16xf32>
      %66 = tpu.matmul %64, %65, %cst_49 {dimension_numbers = #tpu.dot_dimension_numbers<[1], [0], [0], [1], [0, 0, 1, 1], [], []>} : vector<2x32xf32>, vector<32x16xf32>, vector<2x16xf32> -> vector<2x16xf32>
      %c0_50 = arith.constant 0 : index
      %c0_51 = arith.constant 0 : index
      %67 = vector.load %arg15[%c0_50, %c0_51] : memref<1x16xf32, #tpu.memory_space<vmem>>, vector<1x16xf32>
      %68 = vector.broadcast %67 : vector<1x16xf32> to vector<2x16xf32>
      %69 = arith.addf %66, %68 : vector<2x16xf32>
      %cst_52 = arith.constant 0.000000e+00 : f32
      %70 = vector.broadcast %cst_52 : f32 to vector<2x16xf32>
      %71 = arith.maximumf %69, %70 : vector<2x16xf32>
      %c0_53 = arith.constant 0 : index
      %c0_54 = arith.constant 0 : index
      %72 = vector.load %arg16[%c0_53, %c0_54] : memref<16x10xf32, #tpu.memory_space<vmem>>, vector<16x10xf32>
      %cst_55 = arith.constant dense<0.000000e+00> : vector<2x10xf32>
      %73 = tpu.matmul %71, %72, %cst_55 {dimension_numbers = #tpu.dot_dimension_numbers<[1], [0], [0], [1], [0, 0, 1, 1], [], []>} : vector<2x16xf32>, vector<16x10xf32>, vector<2x10xf32> -> vector<2x10xf32>
      %c0_56 = arith.constant 0 : index
      %c0_57 = arith.constant 0 : index
      %74 = vector.load %arg17[%c0_56, %c0_57] : memref<1x10xf32, #tpu.memory_space<vmem>>, vector<1x10xf32>
      %75 = vector.broadcast %74 : vector<1x10xf32> to vector<2x10xf32>
      %76 = arith.addf %73, %75 : vector<2x10xf32>
      %c0_58 = arith.constant 0 : index
      %c0_59 = arith.constant 0 : index
      %77 = vector.load %arg18[%c0_58, %c0_59] : memref<2x10xf32, #tpu.memory_space<vmem>>, vector<2x10xf32>
      tpu.vector_store %arg18[%c0_58, %c0_59], %76 {strides = array<i32>} : memref<2x10xf32, #tpu.memory_space<vmem>>, vector<2x10xf32>,
    } else {
    }
    return
  }
  func.func @transform_0(%arg0: i32, %arg1: i32) -> (i32, i32, i32) {
    %c0_i32 = arith.constant 0 : i32
    %c0_i32_0 = arith.constant 0 : i32
    return %arg0, %arg1, %c0_i32 : i32, i32, i32
  }
  func.func @transform_1(%arg0: i32, %arg1: i32) -> (i32, i32) {
    %c0_i32 = arith.constant 0 : i32
    %c0_i32_0 = arith.constant 0 : i32
    return %arg0, %c0_i32 : i32, i32
  }
  func.func @transform_2(%arg0: i32, %arg1: i32) -> (i32, i32) {
    %c0_i32 = arith.constant 0 : i32
    %c0_i32_0 = arith.constant 0 : i32
    %c0_i32_1 = arith.constant 0 : i32
    return %c0_i32, %c0_i32_0 : i32, i32
  }
  func.func @transform_3(%arg0: i32, %arg1: i32) -> (i32, i32) {
    %c0_i32 = arith.constant 0 : i32
    %c0_i32_0 = arith.constant 0 : i32
    %c0_i32_1 = arith.constant 0 : i32
    return %c0_i32, %c0_i32_0 : i32, i32
  }
  func.func @transform_4(%arg0: i32, %arg1: i32) -> (i32, i32) {
    %c0_i32 = arith.constant 0 : i32
    %c0_i32_0 = arith.constant 0 : i32
    %c0_i32_1 = arith.constant 0 : i32
    return %c0_i32, %c0_i32_0 : i32, i32
  }
  func.func @transform_5(%arg0: i32, %arg1: i32) -> (i32, i32) {
    %c0_i32 = arith.constant 0 : i32
    %c0_i32_0 = arith.constant 0 : i32
    %c0_i32_1 = arith.constant 0 : i32
    return %c0_i32, %c0_i32_0 : i32, i32
  }
  func.func @transform_6(%arg0: i32, %arg1: i32) -> (i32, i32) {
    %c0_i32 = arith.constant 0 : i32
    %c0_i32_0 = arith.constant 0 : i32
    %c0_i32_1 = arith.constant 0 : i32
    return %c0_i32, %c0_i32_0 : i32, i32
  }
  func.func @transform_7(%arg0: i32, %arg1: i32) -> (i32, i32) {
    %c0_i32 = arith.constant 0 : i32
    %c0_i32_0 = arith.constant 0 : i32
    %c0_i32_1 = arith.constant 0 : i32
    return %c0_i32, %c0_i32_0 : i32, i32
  }
  func.func @transform_8(%arg0: i32, %arg1: i32) -> (i32, i32) {
    %c0_i32 = arith.constant 0 : i32
    %c0_i32_0 = arith.constant 0 : i32
    %c0_i32_1 = arith.constant 0 : i32
    return %c0_i32, %c0_i32_0 : i32, i32
  }
  func.func @transform_9(%arg0: i32, %arg1: i32) -> (i32, i32) {
    %c0_i32 = arith.constant 0 : i32
    %c0_i32_0 = arith.constant 0 : i32
    %c0_i32_1 = arith.constant 0 : i32
    return %c0_i32, %c0_i32_0 : i32, i32
  }
  func.func @transform_10(%arg0: i32, %arg1: i32) -> (i32, i32) {
    %c0_i32 = arith.constant 0 : i32
    %c0_i32_0 = arith.constant 0 : i32
    %c0_i32_1 = arith.constant 0 : i32
    return %c0_i32, %c0_i32_0 : i32, i32
  }
  func.func @transform_11(%arg0: i32, %arg1: i32) -> (i32, i32) {
    %c0_i32 = arith.constant 0 : i32
    %c0_i32_0 = arith.constant 0 : i32
    %c0_i32_1 = arith.constant 0 : i32
    return %c0_i32, %c0_i32_0 : i32, i32
  }
  func.func @transform_12(%arg0: i32, %arg1: i32) -> (i32, i32) {
    %c0_i32 = arith.constant 0 : i32
    %c0_i32_0 = arith.constant 0 : i32
    %c0_i32_1 = arith.constant 0 : i32
    return %c0_i32, %c0_i32_0 : i32, i32
  }
  func.func @transform_13(%arg0: i32, %arg1: i32) -> (i32, i32) {
    %c0_i32 = arith.constant 0 : i32
    %c0_i32_0 = arith.constant 0 : i32
    %c0_i32_1 = arith.constant 0 : i32
    return %c0_i32, %c0_i32_0 : i32, i32
  }
  func.func @transform_14(%arg0: i32, %arg1: i32) -> (i32, i32) {
    %c0_i32 = arith.constant 0 : i32
    %c0_i32_0 = arith.constant 0 : i32
    %c0_i32_1 = arith.constant 0 : i32
    return %c0_i32, %c0_i32_0 : i32, i32
  }
  func.func @transform_15(%arg0: i32, %arg1: i32) -> (i32, i32) {
    %c0_i32 = arith.constant 0 : i32
    %c0_i32_0 = arith.constant 0 : i32
    %c0_i32_1 = arith.constant 0 : i32
    return %c0_i32, %c0_i32_0 : i32, i32
  }
  func.func @transform_16(%arg0: i32, %arg1: i32) -> (i32, i32) {
    %c0_i32 = arith.constant 0 : i32
    %c0_i32_0 = arith.constant 0 : i32
    return %arg0, %c0_i32 : i32, i32
  }
}

</mosaic_0001>

<llo_original>
// kernel: transfer_learning_forward.1
$region0: #{transfer_learning_forward.1}
  #allocation0 [shape = 'u32[]', space=smem, size = 0x4, offset = 0x4, fixed_abs, tag = 'smem constant byte address 0x4 - core index']
  #allocation1 [shape = 'u32[144,128]{1,0:T(1,128)}', space=vmem, size = 0x12000, scoped, tag = 'internal scratch']
  #allocation2 [shape = 'f32[2,1280]{1,0:T(2,128)}', space=vmem, size = 0x2800, scoped, tag = 'scratch operand']
  %s0 = inlined_call_operand.vmem [shape: bf16[2,64,32], index: 0, kind: input, shape index: {}]
  %s1 = inlined_call_operand.vmem [shape: f32[2,8], index: 1, kind: input, shape index: {}]
  %s2 = inlined_call_operand.vmem [shape: bf16[32,1280], index: 2, kind: input, shape index: {}]
  %s3 = inlined_call_operand.vmem [shape: f32[8,64], index: 3, kind: input, shape index: {}]
  %s4 = inlined_call_operand.vmem [shape: f32[1,64], index: 4, kind: input, shape index: {}]
  %s5 = inlined_call_operand.vmem [shape: f32[64,32], index: 5, kind: input, shape index: {}]
  %s6 = inlined_call_operand.vmem [shape: f32[1,32], index: 6, kind: input, shape index: {}]
  %s7 = inlined_call_operand.vmem [shape: f32[1280,64], index: 7, kind: input, shape index: {}]
  %s8 = inlined_call_operand.vmem [shape: f32[32,64], index: 8, kind: input, shape index: {}]
  %s9 = inlined_call_operand.vmem [shape: f32[1,64], index: 9, kind: input, shape index: {}]
  %s10 = inlined_call_operand.vmem [shape: f32[64,32], index: 10, kind: input, shape index: {}]
  %s11 = inlined_call_operand.vmem [shape: f32[1,32], index: 11, kind: input, shape index: {}]
  %s12 = inlined_call_operand.vmem [shape: f32[32,16], index: 12, kind: input, shape index: {}]
  %s13 = inlined_call_operand.vmem [shape: f32[1,16], index: 13, kind: input, shape index: {}]
  %s14 = inlined_call_operand.vmem [shape: f32[16,10], index: 14, kind: input, shape index: {}]
  %s15 = inlined_call_operand.vmem [shape: f32[1,10], index: 15, kind: input, shape index: {}]
  %s16 = inlined_call_operand.hbm [shape: f32[2,10], index: 16, kind: output, shape index: {}]
  %s17 = sld [smem:[#allocation0]]
  $region82: #{transfer_learning_forward.1} parent=0
    _
  %s19 = ssub.s32 1, %s17
  %s20 = scalar_select 0, %s19, %s17
  $region1: #{transfer_learning_forward.1} parent=0
    #allocation3 [shape = 'u8[1024]{0}', space=vmem, size = 0x400, scoped, tag = 'output window, operand 0, single buffered']
    #allocation4 [shape = 's32[1]{0}', space=sflag, size = 0x4, scoped, tag = 'scoped memory for transfer_learning_forward.1']
    %21 = vsyncpa [#allocation4], 0
    // Predicated region
    $region2: #{transfer_learning_forward.1} parent=1 // pred_check
      _
    $region3: #{transfer_learning_forward.1} parent=1 // pred_check_branch
      %23 = sbr.rel (0) target = $region5
    $region4: #{transfer_learning_forward.1} parent=1 // pred_region
      _
    $region5: #{transfer_learning_forward.1} parent=1 // pred_fallthru
      _
    // Predicated region
    $region6: #{transfer_learning_forward.1} parent=1 // pred_check
      _
    $region7: #{transfer_learning_forward.1} parent=1 // pred_check_branch
      %25 = sbr.rel (0) target = $region9
    $region8: #{transfer_learning_forward.1} parent=1 // pred_region
      _
    $region9: #{transfer_learning_forward.1} parent=1 // pred_fallthru
      _
    // Predicated region
    $region10: #{transfer_learning_forward.1} parent=1 // pred_check
      _
    $region11: #{transfer_learning_forward.1} parent=1 // pred_check_branch
      %27 = sbr.rel (0) target = $region13
    $region12: #{transfer_learning_forward.1} parent=1 // pred_region
      _
    $region13: #{transfer_learning_forward.1} parent=1 // pred_fallthru
      _
    // Predicated region
    $region14: #{transfer_learning_forward.1} parent=1 // pred_check
      _
    $region15: #{transfer_learning_forward.1} parent=1 // pred_check_branch
      %29 = sbr.rel (0) target = $region17
    $region16: #{transfer_learning_forward.1} parent=1 // pred_region
      _
    $region17: #{transfer_learning_forward.1} parent=1 // pred_fallthru
      _
    // Predicated region
    $region18: #{transfer_learning_forward.1} parent=1 // pred_check
      _
    $region19: #{transfer_learning_forward.1} parent=1 // pred_check_branch
      %31 = sbr.rel (0) target = $region21
    $region20: #{transfer_learning_forward.1} parent=1 // pred_region
      _
    $region21: #{transfer_learning_forward.1} parent=1 // pred_fallthru
      _
    // Predicated region
    $region22: #{transfer_learning_forward.1} parent=1 // pred_check
      _
    $region23: #{transfer_learning_forward.1} parent=1 // pred_check_branch
      %33 = sbr.rel (0) target = $region25
    $region24: #{transfer_learning_forward.1} parent=1 // pred_region
      _
    $region25: #{transfer_learning_forward.1} parent=1 // pred_fallthru
      _
    // Predicated region
    $region26: #{transfer_learning_forward.1} parent=1 // pred_check
      _
    $region27: #{transfer_learning_forward.1} parent=1 // pred_check_branch
      %35 = sbr.rel (0) target = $region29
    $region28: #{transfer_learning_forward.1} parent=1 // pred_region
      _
    $region29: #{transfer_learning_forward.1} parent=1 // pred_fallthru
      _
    // Predicated region
    $region30: #{transfer_learning_forward.1} parent=1 // pred_check
      _
    $region31: #{transfer_learning_forward.1} parent=1 // pred_check_branch
      %37 = sbr.rel (0) target = $region33
    $region32: #{transfer_learning_forward.1} parent=1 // pred_region
      _
    $region33: #{transfer_learning_forward.1} parent=1 // pred_fallthru
      _
    // Predicated region
    $region34: #{transfer_learning_forward.1} parent=1 // pred_check
      _
    $region35: #{transfer_learning_forward.1} parent=1 // pred_check_branch
      %39 = sbr.rel (0) target = $region37
    $region36: #{transfer_learning_forward.1} parent=1 // pred_region
      _
    $region37: #{transfer_learning_forward.1} parent=1 // pred_fallthru
      _
    // Predicated region
    $region38: #{transfer_learning_forward.1} parent=1 // pred_check
      _
    $region39: #{transfer_learning_forward.1} parent=1 // pred_check_branch
      %41 = sbr.rel (0) target = $region41
    $region40: #{transfer_learning_forward.1} parent=1 // pred_region
      _
    $region41: #{transfer_learning_forward.1} parent=1 // pred_fallthru
      _
    // Predicated region
    $region42: #{transfer_learning_forward.1} parent=1 // pred_check
      _
    $region43: #{transfer_learning_forward.1} parent=1 // pred_check_branch
      %43 = sbr.rel (0) target = $region45
    $region44: #{transfer_learning_forward.1} parent=1 // pred_region
      _
    $region45: #{transfer_learning_forward.1} parent=1 // pred_fallthru
      _
    // Predicated region
    $region46: #{transfer_learning_forward.1} parent=1 // pred_check
      _
    $region47: #{transfer_learning_forward.1} parent=1 // pred_check_branch
      %45 = sbr.rel (0) target = $region49
    $region48: #{transfer_learning_forward.1} parent=1 // pred_region
      _
    $region49: #{transfer_learning_forward.1} parent=1 // pred_fallthru
      _
    // Predicated region
    $region50: #{transfer_learning_forward.1} parent=1 // pred_check
      _
    $region51: #{transfer_learning_forward.1} parent=1 // pred_check_branch
      %47 = sbr.rel (0) target = $region53
    $region52: #{transfer_learning_forward.1} parent=1 // pred_region
      _
    $region53: #{transfer_learning_forward.1} parent=1 // pred_fallthru
      _
    // Predicated region
    $region54: #{transfer_learning_forward.1} parent=1 // pred_check
      _
    $region55: #{transfer_learning_forward.1} parent=1 // pred_check_branch
      %49 = sbr.rel (0) target = $region57
    $region56: #{transfer_learning_forward.1} parent=1 // pred_region
      _
    $region57: #{transfer_learning_forward.1} parent=1 // pred_fallthru
      _
    // Predicated region
    $region58: #{transfer_learning_forward.1} parent=1 // pred_check
      _
    $region59: #{transfer_learning_forward.1} parent=1 // pred_check_branch
      %51 = sbr.rel (0) target = $region61
    $region60: #{transfer_learning_forward.1} parent=1 // pred_region
      _
    $region61: #{transfer_learning_forward.1} parent=1 // pred_fallthru
      _
    // Predicated region
    $region62: #{transfer_learning_forward.1} parent=1 // pred_check
      _
    $region63: #{transfer_learning_forward.1} parent=1 // pred_check_branch
      %53 = sbr.rel (0) target = $region65
    $region64: #{transfer_learning_forward.1} parent=1 // pred_region
      _
    $region65: #{transfer_learning_forward.1} parent=1 // pred_fallthru
      _
    %p55 = scmp.eq.s32.totalorder 0, 0
    // Predicated region
    $region66: #{transfer_learning_forward.1} parent=1 // pred_check
      %p56 = pneg %p55
    $region67: #{transfer_learning_forward.1} parent=1 // pred_check_branch
      %58 = sbr.rel (%p56) target = $region69
    $region68: #{transfer_learning_forward.1} parent=1 // pred_region
      %59 = vst [vmem:[#allocation2] sm:$0xff] 0.0
      %60 = vst [vmem:[#allocation2 + $0x8] sm:$0xff] 0.0
      %61 = vst [vmem:[#allocation2 + $0x10] sm:$0xf] 0.0
    $region69: #{transfer_learning_forward.1} parent=1 // pred_fallthru
      _
    %v62 = vld [vmem:[%s0] sm:$0xf]
    %v63 = vld [vmem:[%s0 + $0x4] sm:$0xf]
    %v64 = vld [vmem:[%s0 + $0x8] sm:$0xf]
    %v65 = vld [vmem:[%s0 + $0xc] sm:$0xf]
    %v66 = vld [vmem:[%s0 + $0x10] sm:$0xf]
    %v67 = vld [vmem:[%s0 + $0x14] sm:$0xf]
    %v68 = vld [vmem:[%s0 + $0x18] sm:$0xf]
    %v69 = vld [vmem:[%s0 + $0x1c] sm:$0xf]
    %v70 = vld [vmem:[%s0 + $0x20] sm:$0xf]
    %v71 = vld [vmem:[%s0 + $0x24] sm:$0xf]
    %v72 = vld [vmem:[%s0 + $0x28] sm:$0xf]
    %v73 = vld [vmem:[%s0 + $0x2c] sm:$0xf]
    %v74 = vld [vmem:[%s0 + $0x30] sm:$0xf]
    %v75 = vld [vmem:[%s0 + $0x34] sm:$0xf]
    %v76 = vld [vmem:[%s0 + $0x38] sm:$0xf]
    %v77 = vld [vmem:[%s0 + $0x3c] sm:$0xf]
    %v78 = vunpack.c.l.bf16 %v62
    %v79 = vunpack.c.l.bf16 %v63
    %v80 = vunpack.c.l.bf16 %v64
    %v81 = vunpack.c.l.bf16 %v65
    %v82 = vunpack.c.l.bf16 %v66
    %v83 = vunpack.c.l.bf16 %v67
    %v84 = vunpack.c.l.bf16 %v68
    %v85 = vunpack.c.l.bf16 %v69
    %v86 = vunpack.c.l.bf16 %v70
    %v87 = vunpack.c.l.bf16 %v71
    %v88 = vunpack.c.l.bf16 %v72
    %v89 = vunpack.c.l.bf16 %v73
    %v90 = vunpack.c.l.bf16 %v74
    %v91 = vunpack.c.l.bf16 %v75
    %v92 = vunpack.c.l.bf16 %v76
    %v93 = vunpack.c.l.bf16 %v77
    %v94 = vxor.u32 %v78, 2147483648
    %v95 = vxor.u32 %v79, 2147483648
    %v96 = vxor.u32 %v80, 2147483648
    %v97 = vxor.u32 %v81, 2147483648
    %v98 = vxor.u32 %v82, 2147483648
    %v99 = vxor.u32 %v83, 2147483648
    %v100 = vxor.u32 %v84, 2147483648
    %v101 = vxor.u32 %v85, 2147483648
    %v102 = vxor.u32 %v86, 2147483648
    %v103 = vxor.u32 %v87, 2147483648
    %v104 = vxor.u32 %v88, 2147483648
    %v105 = vxor.u32 %v89, 2147483648
    %v106 = vxor.u32 %v90, 2147483648
    %v107 = vxor.u32 %v91, 2147483648
    %v108 = vxor.u32 %v92, 2147483648
    %v109 = vxor.u32 %v93, 2147483648
    %v110 = vmul.f32 %v94, 1.442695
    %v111 = vpow.pop %v110
    %v112 = vmul.f32 %v95, 1.442695
    %v113 = vpow.pop %v112
    %v114 = vmul.f32 %v96, 1.442695
    %v115 = vpow.pop %v114
    %v116 = vmul.f32 %v97, 1.442695
    %v117 = vpow.pop %v116
    %v118 = vmul.f32 %v98, 1.442695
    %v119 = vpow.pop %v118
    %v120 = vmul.f32 %v99, 1.442695
    %v121 = vpow.pop %v120
    %v122 = vmul.f32 %v100, 1.442695
    %v123 = vpow.pop %v122
    %v124 = vmul.f32 %v101, 1.442695
    %v125 = vpow.pop %v124
    %v126 = vmul.f32 %v102, 1.442695
    %v127 = vpow.pop %v126
    %v128 = vmul.f32 %v103, 1.442695
    %v129 = vpow.pop %v128
    %v130 = vmul.f32 %v104, 1.442695
    %v131 = vpow.pop %v130
    %v132 = vmul.f32 %v105, 1.442695
    %v133 = vpow.pop %v132
    %v134 = vmul.f32 %v106, 1.442695
    %v135 = vpow.pop %v134
    %v136 = vmul.f32 %v107, 1.442695
    %v137 = vpow.pop %v136
    %v138 = vmul.f32 %v108, 1.442695
    %v139 = vpow.pop %v138
    %v140 = vmul.f32 %v109, 1.442695
    %v141 = vpow.pop %v140
    %v142 = vadd.f32 %v111, 1.0
    %v143 = vadd.f32 %v113, 1.0
    %v144 = vadd.f32 %v115, 1.0
    %v145 = vadd.f32 %v117, 1.0
    %v146 = vadd.f32 %v119, 1.0
    %v147 = vadd.f32 %v121, 1.0
    %v148 = vadd.f32 %v123, 1.0
    %v149 = vadd.f32 %v125, 1.0
    %v150 = vadd.f32 %v127, 1.0
    %v151 = vadd.f32 %v129, 1.0
    %v152 = vadd.f32 %v131, 1.0
    %v153 = vadd.f32 %v133, 1.0
    %v154 = vadd.f32 %v135, 1.0
    %v155 = vadd.f32 %v137, 1.0
    %v156 = vadd.f32 %v139, 1.0
    %v157 = vadd.f32 %v141, 1.0
    %v158 = vrcp.pop %v142
    %v159 = vmul.f32 1.0, %v158
    %v160 = vrcp.pop %v143
    %v161 = vmul.f32 1.0, %v160
    %v162 = vrcp.pop %v144
    %v163 = vmul.f32 1.0, %v162
    %v164 = vrcp.pop %v145
    %v165 = vmul.f32 1.0, %v164
    %v166 = vrcp.pop %v146
    %v167 = vmul.f32 1.0, %v166
    %v168 = vrcp.pop %v147
    %v169 = vmul.f32 1.0, %v168
    %v170 = vrcp.pop %v148
    %v171 = vmul.f32 1.0, %v170
    %v172 = vrcp.pop %v149
    %v173 = vmul.f32 1.0, %v172
    %v174 = vrcp.pop %v150
    %v175 = vmul.f32 1.0, %v174
    %v176 = vrcp.pop %v151
    %v177 = vmul.f32 1.0, %v176
    %v178 = vrcp.pop %v152
    %v179 = vmul.f32 1.0, %v178
    %v180 = vrcp.pop %v153
    %v181 = vmul.f32 1.0, %v180
    %v182 = vrcp.pop %v154
    %v183 = vmul.f32 1.0, %v182
    %v184 = vrcp.pop %v155
    %v185 = vmul.f32 1.0, %v184
    %v186 = vrcp.pop %v156
    %v187 = vmul.f32 1.0, %v186
    %v188 = vrcp.pop %v157
    %v189 = vmul.f32 1.0, %v188
    %v190 = vmul.f32 %v78, %v159
    %v191 = vmul.f32 %v79, %v161
    %v192 = vmul.f32 %v80, %v163
    %v193 = vmul.f32 %v81, %v165
    %v194 = vmul.f32 %v82, %v167
    %v195 = vmul.f32 %v83, %v169
    %v196 = vmul.f32 %v84, %v171
    %v197 = vmul.f32 %v85, %v173
    %v198 = vmul.f32 %v86, %v175
    %v199 = vmul.f32 %v87, %v177
    %v200 = vmul.f32 %v88, %v179
    %v201 = vmul.f32 %v89, %v181
    %v202 = vmul.f32 %v90, %v183
    %v203 = vmul.f32 %v91, %v185
    %v204 = vmul.f32 %v92, %v187
    %v205 = vmul.f32 %v93, %v189
    %v206 = vpack.c.bf16 %v191, %v190
    %v207 = vpack.c.bf16 %v193, %v192
    %v208 = vpack.c.bf16 %v195, %v194
    %v209 = vpack.c.bf16 %v197, %v196
    %v210 = vpack.c.bf16 %v199, %v198
    %v211 = vpack.c.bf16 %v201, %v200
    %v212 = vpack.c.bf16 %v203, %v202
    %v213 = vpack.c.bf16 %v205, %v204
    %v214 = vld [vmem:[%s2] sm:$0xff]
    %v215 = vld [vmem:[%s2 + $0x8] sm:$0xff]
    %v216 = vld [vmem:[%s2 + $0x10] sm:$0xff]
    %v217 = vld [vmem:[%s2 + $0x18] sm:$0xff]
    %v218 = vld [vmem:[%s2 + $0x20] sm:$0xff]
    %v219 = vld [vmem:[%s2 + $0x28] sm:$0xff]
    %v220 = vld [vmem:[%s2 + $0x30] sm:$0xff]
    %v221 = vld [vmem:[%s2 + $0x38] sm:$0xff]
    %v222 = vld [vmem:[%s2 + $0x40] sm:$0xff]
    %v223 = vld [vmem:[%s2 + $0x48] sm:$0xff]
    %v224 = vld [vmem:[%s2 + $0x50] sm:$0xff]
    %v225 = vld [vmem:[%s2 + $0x58] sm:$0xff]
    %v226 = vld [vmem:[%s2 + $0x60] sm:$0xff]
    %v227 = vld [vmem:[%s2 + $0x68] sm:$0xff]
    %v228 = vld [vmem:[%s2 + $0x70] sm:$0xff]
    %v229 = vld [vmem:[%s2 + $0x78] sm:$0xff]
    %v230 = vld [vmem:[%s2 + $0x80] sm:$0xff]
    %v231 = vld [vmem:[%s2 + $0x88] sm:$0xff]
    %v232 = vld [vmem:[%s2 + $0x90] sm:$0xff]
    %v233 = vld [vmem:[%s2 + $0x98] sm:$0xff]
    %v254 = vunpack.c.l.b16 %v214
    %v255 = vunpack.c.h.b16 %v214
    %v256 = vunpack.c.l.b16 %v215
    %v257 = vunpack.c.h.b16 %v215
    %v258 = vunpack.c.l.b16 %v216
    %v259 = vunpack.c.h.b16 %v216
    %v260 = vunpack.c.l.b16 %v217
    %v261 = vunpack.c.h.b16 %v217
    %v262 = vunpack.c.l.b16 %v218
    %v263 = vunpack.c.h.b16 %v218
    %v264 = vunpack.c.l.b16 %v219
    %v265 = vunpack.c.h.b16 %v219
    %v266 = vunpack.c.l.b16 %v220
    %v267 = vunpack.c.h.b16 %v220
    %v268 = vunpack.c.l.b16 %v221
    %v269 = vunpack.c.h.b16 %v221
    %v270 = vunpack.c.l.b16 %v222
    %v271 = vunpack.c.h.b16 %v222
    %v272 = vunpack.c.l.b16 %v223
    %v273 = vunpack.c.h.b16 %v223
    %v274 = vunpack.c.l.b16 %v224
    %v275 = vunpack.c.h.b16 %v224
    %v276 = vunpack.c.l.b16 %v225
    %v277 = vunpack.c.h.b16 %v225
    %v278 = vunpack.c.l.b16 %v226
    %v279 = vunpack.c.h.b16 %v226
    %v280 = vunpack.c.l.b16 %v227
    %v281 = vunpack.c.h.b16 %v227
    %v282 = vunpack.c.l.b16 %v228
    %v283 = vunpack.c.h.b16 %v228
    %v284 = vunpack.c.l.b16 %v229
    %v285 = vunpack.c.h.b16 %v229
    %v286 = vunpack.c.l.b16 %v230
    %v287 = vunpack.c.h.b16 %v230
    %v288 = vunpack.c.l.b16 %v231
    %v289 = vunpack.c.h.b16 %v231
    %v290 = vunpack.c.l.b16 %v232
    %v291 = vunpack.c.h.b16 %v232
    %v292 = vunpack.c.l.b16 %v233
    %v293 = vunpack.c.h.b16 %v233
    %v294 = vpack.c.b16 %v264, %v254
    %v295 = vpack.c.b16 %v265, %v255
    %v296 = vpack.c.b16 %v266, %v256
    %v297 = vpack.c.b16 %v267, %v257
    %v298 = vpack.c.b16 %v268, %v258
    %v299 = vpack.c.b16 %v269, %v259
    %v300 = vpack.c.b16 %v270, %v260
    %v301 = vpack.c.b16 %v271, %v261
    %v302 = vpack.c.b16 %v272, %v262
    %v303 = vpack.c.b16 %v273, %v263
    %v304 = vpack.c.b16 %v284, %v274
    %v305 = vpack.c.b16 %v285, %v275
    %v306 = vpack.c.b16 %v286, %v276
    %v307 = vpack.c.b16 %v287, %v277
    %v308 = vpack.c.b16 %v288, %v278
    %v309 = vpack.c.b16 %v289, %v279
    %v310 = vpack.c.b16 %v290, %v280
    %v311 = vpack.c.b16 %v291, %v281
    %v312 = vpack.c.b16 %v292, %v282
    %v313 = vpack.c.b16 %v293, %v283
    %vm334 = vcmask 261120
    %v336 = vsel %vm334, %v206, 0
    %v339 = vsel %vm334, %v207, 0
    %v342 = vsel %vm334, %v208, 0
    %v345 = vsel %vm334, %v209, 0
    %v348 = vsel %vm334, %v210, 0
    %v351 = vsel %vm334, %v211, 0
    %v354 = vsel %vm334, %v212, 0
    %v357 = vsel %vm334, %v213, 0
    %359 = vmatprep.subr.bf16.mxu0 %v295
    %360 = vmatpush1.bf16.msra.mxu0 %v294
    %361 = vmatprep.subr.bf16.mxu0 %v305
    %362 = vmatpush1.bf16.msra.mxu0 %v304
    %363 = vmatprep.subr.bf16.mxu0 0
    %364 = vmatpush1.bf16.msra.mxu0 0
    %365 = vmatprep.subr.bf16.mxu0 0
    %366 = vmatpush1.bf16.msra.mxu0 0
    %367 = vmatprep.subr.bf16.mxu0 0
    %368 = vmatpush1.bf16.msra.mxu0 0
    %369 = vmatprep.subr.bf16.mxu0 0
    %370 = vmatpush1.bf16.msra.mxu0 0
    %371 = vmatprep.subr.bf16.mxu0 0
    %372 = vmatpush1.bf16.msra.mxu0 0
    %373 = vmatprep.subr.bf16.mxu0 0
    %374 = vmatpush1.bf16.msra.mxu0 0
    %375 = vmatprep.subr.bf16.mxu0 0
    %376 = vmatpush1.bf16.msra.mxu0 0
    %377 = vmatprep.subr.bf16.mxu0 0
    %378 = vmatpush1.bf16.msra.mxu0 0
    %379 = vmatprep.subr.bf16.mxu0 0
    %380 = vmatpush1.bf16.msra.mxu0 0
    %381 = vmatprep.subr.bf16.mxu0 0
    %382 = vmatpush1.bf16.msra.mxu0 0
    %383 = vmatprep.subr.bf16.mxu0 0
    %384 = vmatpush1.bf16.msra.mxu0 0
    %385 = vmatprep.subr.bf16.mxu0 0
    %386 = vmatpush1.bf16.msra.mxu0 0
    %387 = vmatprep.subr.bf16.mxu0 0
    %388 = vmatpush1.bf16.msra.mxu0 0
    %389 = vmatprep.subr.bf16.mxu0 0
    %390 = vmatpush1.bf16.msra.mxu0 0
    %391 = vmatprep.mubr.bf16.mxu0 0
    %392 = vmatmul.mubr.bf16.gmra.mrb[0].mxu0 %v336
    %v393 = vpop.f32.mrb[0].mxu0
    %v394 = vadd.f32 0.0, %v393
    %v395 = vpop.f32.mrb[0].mxu0
    %v396 = vadd.f32 0.0, %v395
    %v397 = vpop.f32.mrb[0].mxu0
    %v398 = vadd.f32 0.0, %v397
    %v399 = vpop.f32.mrb[0].mxu0
    %v400 = vadd.f32 0.0, %v399
    %401 = vmatprep.mubr.bf16.mxu0 0
    %402 = vmatmul.mubr.bf16.gmra.mrb[0].mxu0 %v339
    %v403 = vpop.f32.mrb[0].mxu0
    %v404 = vadd.f32 0.0, %v403
    %v405 = vpop.f32.mrb[0].mxu0
    %v406 = vadd.f32 0.0, %v405
    %v407 = vpop.f32.mrb[0].mxu0
    %v408 = vadd.f32 0.0, %v407
    %v409 = vpop.f32.mrb[0].mxu0
    %v410 = vadd.f32 0.0, %v409
    %411 = vmatprep.mubr.bf16.mxu0 0
    %412 = vmatmul.mubr.bf16.gmra.mrb[0].mxu0 %v342
    %v413 = vpop.f32.mrb[0].mxu0
    %v414 = vadd.f32 0.0, %v413
    %v415 = vpop.f32.mrb[0].mxu0
    %v416 = vadd.f32 0.0, %v415
    %v417 = vpop.f32.mrb[0].mxu0
    %v418 = vadd.f32 0.0, %v417
    %v419 = vpop.f32.mrb[0].mxu0
    %v420 = vadd.f32 0.0, %v419
    %421 = vmatprep.mubr.bf16.mxu0 0
    %422 = vmatmul.mubr.bf16.gmra.mrb[0].mxu0 %v345
    %v423 = vpop.f32.mrb[0].mxu0
    %v424 = vadd.f32 0.0, %v423
    %v425 = vpop.f32.mrb[0].mxu0
    %v426 = vadd.f32 0.0, %v425
    %v427 = vpop.f32.mrb[0].mxu0
    %v428 = vadd.f32 0.0, %v427
    %v429 = vpop.f32.mrb[0].mxu0
    %v430 = vadd.f32 0.0, %v429
    %431 = vmatprep.mubr.bf16.mxu0 0
    %432 = vmatmul.mubr.bf16.gmra.mrb[0].mxu0 %v348
    %v433 = vpop.f32.mrb[0].mxu0
    %v434 = vadd.f32 0.0, %v433
    %v435 = vpop.f32.mrb[0].mxu0
    %v436 = vadd.f32 0.0, %v435
    %v437 = vpop.f32.mrb[0].mxu0
    %v438 = vadd.f32 0.0, %v437
    %v439 = vpop.f32.mrb[0].mxu0
    %v440 = vadd.f32 0.0, %v439
    %441 = vmatprep.mubr.bf16.mxu0 0
    %442 = vmatmul.mubr.bf16.gmra.mrb[0].mxu0 %v351
    %v443 = vpop.f32.mrb[0].mxu0
    %v444 = vadd.f32 0.0, %v443
    %v445 = vpop.f32.mrb[0].mxu0
    %v446 = vadd.f32 0.0, %v445
    %v447 = vpop.f32.mrb[0].mxu0
    %v448 = vadd.f32 0.0, %v447
    %v449 = vpop.f32.mrb[0].mxu0
    %v450 = vadd.f32 0.0, %v449
    %451 = vmatprep.mubr.bf16.mxu0 0
    %452 = vmatmul.mubr.bf16.gmra.mrb[0].mxu0 %v354
    %v453 = vpop.f32.mrb[0].mxu0
    %v454 = vadd.f32 0.0, %v453
    %v455 = vpop.f32.mrb[0].mxu0
    %v456 = vadd.f32 0.0, %v455
    %v457 = vpop.f32.mrb[0].mxu0
    %v458 = vadd.f32 0.0, %v457
    %v459 = vpop.f32.mrb[0].mxu0
    %v460 = vadd.f32 0.0, %v459
    %461 = vmatprep.mubr.bf16.mxu0 0
    %462 = vmatmul.mubr.bf16.gmra.mrb[0].mxu0 %v357
    %v463 = vpop.f32.mrb[0].mxu0
    %v464 = vadd.f32 0.0, %v463
    %v465 = vpop.f32.mrb[0].mxu0
    %v466 = vadd.f32 0.0, %v465
    %v467 = vpop.f32.mrb[0].mxu0
    %v468 = vadd.f32 0.0, %v467
    %v469 = vpop.f32.mrb[0].mxu0
    %v470 = vadd.f32 0.0, %v469
    %471 = vdwg.mxu0
    %472 = vmatprep.subr.bf16.mxu0 %v297
    %473 = vmatpush1.bf16.msra.mxu0 %v296
    %474 = vmatprep.subr.bf16.mxu0 %v307
    %475 = vmatpush1.bf16.msra.mxu0 %v306
    %476 = vmatprep.subr.bf16.mxu0 0
    %477 = vmatpush1.bf16.msra.mxu0 0
    %478 = vmatprep.subr.bf16.mxu0 0
    %479 = vmatpush1.bf16.msra.mxu0 0
    %480 = vmatprep.subr.bf16.mxu0 0
    %481 = vmatpush1.bf16.msra.mxu0 0
    %482 = vmatprep.subr.bf16.mxu0 0
    %483 = vmatpush1.bf16.msra.mxu0 0
    %484 = vmatprep.subr.bf16.mxu0 0
    %485 = vmatpush1.bf16.msra.mxu0 0
    %486 = vmatprep.subr.bf16.mxu0 0
    %487 = vmatpush1.bf16.msra.mxu0 0
    %488 = vmatprep.subr.bf16.mxu0 0
    %489 = vmatpush1.bf16.msra.mxu0 0
    %490 = vmatprep.subr.bf16.mxu0 0
    %491 = vmatpush1.bf16.msra.mxu0 0
    %492 = vmatprep.subr.bf16.mxu0 0
    %493 = vmatpush1.bf16.msra.mxu0 0
    %494 = vmatprep.subr.bf16.mxu0 0
    %495 = vmatpush1.bf16.msra.mxu0 0
    %496 = vmatprep.subr.bf16.mxu0 0
    %497 = vmatpush1.bf16.msra.mxu0 0
    %498 = vmatprep.subr.bf16.mxu0 0
    %499 = vmatpush1.bf16.msra.mxu0 0
    %500 = vmatprep.subr.bf16.mxu0 0
    %501 = vmatpush1.bf16.msra.mxu0 0
    %502 = vmatprep.subr.bf16.mxu0 0
    %503 = vmatpush1.bf16.msra.mxu0 0
    %504 = vmatprep.mubr.bf16.mxu0 0
    %505 = vmatmul.mubr.bf16.gmra.mrb[0].mxu0 %v336
    %v506 = vpop.f32.mrb[0].mxu0
    %v507 = vadd.f32 0.0, %v506
    %v508 = vpop.f32.mrb[0].mxu0
    %v509 = vadd.f32 0.0, %v508
    %v510 = vpop.f32.mrb[0].mxu0
    %v511 = vadd.f32 0.0, %v510
    %v512 = vpop.f32.mrb[0].mxu0
    %v513 = vadd.f32 0.0, %v512
    %514 = vmatprep.mubr.bf16.mxu0 0
    %515 = vmatmul.mubr.bf16.gmra.mrb[0].mxu0 %v339
    %v516 = vpop.f32.mrb[0].mxu0
    %v517 = vadd.f32 0.0, %v516
    %v518 = vpop.f32.mrb[0].mxu0
    %v519 = vadd.f32 0.0, %v518
    %v520 = vpop.f32.mrb[0].mxu0
    %v521 = vadd.f32 0.0, %v520
    %v522 = vpop.f32.mrb[0].mxu0
    %v523 = vadd.f32 0.0, %v522
    %524 = vmatprep.mubr.bf16.mxu0 0
    %525 = vmatmul.mubr.bf16.gmra.mrb[0].mxu0 %v342
    %v526 = vpop.f32.mrb[0].mxu0
    %v527 = vadd.f32 0.0, %v526
    %v528 = vpop.f32.mrb[0].mxu0
    %v529 = vadd.f32 0.0, %v528
    %v530 = vpop.f32.mrb[0].mxu0
    %v531 = vadd.f32 0.0, %v530
    %v532 = vpop.f32.mrb[0].mxu0
    %v533 = vadd.f32 0.0, %v532
    %534 = vmatprep.mubr.bf16.mxu0 0
    %535 = vmatmul.mubr.bf16.gmra.mrb[0].mxu0 %v345
    %v536 = vpop.f32.mrb[0].mxu0
    %v537 = vadd.f32 0.0, %v536
    %v538 = vpop.f32.mrb[0].mxu0
    %v539 = vadd.f32 0.0, %v538
    %v540 = vpop.f32.mrb[0].mxu0
    %v541 = vadd.f32 0.0, %v540
    %v542 = vpop.f32.mrb[0].mxu0
    %v543 = vadd.f32 0.0, %v542
    %544 = vmatprep.mubr.bf16.mxu0 0
    %545 = vmatmul.mubr.bf16.gmra.mrb[0].mxu0 %v348
    %v546 = vpop.f32.mrb[0].mxu0
    %v547 = vadd.f32 0.0, %v546
    %v548 = vpop.f32.mrb[0].mxu0
    %v549 = vadd.f32 0.0, %v548
    %v550 = vpop.f32.mrb[0].mxu0
    %v551 = vadd.f32 0.0, %v550
    %v552 = vpop.f32.mrb[0].mxu0
    %v553 = vadd.f32 0.0, %v552
    %554 = vmatprep.mubr.bf16.mxu0 0
    %555 = vmatmul.mubr.bf16.gmra.mrb[0].mxu0 %v351
    %v556 = vpop.f32.mrb[0].mxu0
    %v557 = vadd.f32 0.0, %v556
    %v558 = vpop.f32.mrb[0].mxu0
    %v559 = vadd.f32 0.0, %v558
    %v560 = vpop.f32.mrb[0].mxu0
    %v561 = vadd.f32 0.0, %v560
    %v562 = vpop.f32.mrb[0].mxu0
    %v563 = vadd.f32 0.0, %v562
    %564 = vmatprep.mubr.bf16.mxu0 0
    %565 = vmatmul.mubr.bf16.gmra.mrb[0].mxu0 %v354
    %v566 = vpop.f32.mrb[0].mxu0
    %v567 = vadd.f32 0.0, %v566
    %v568 = vpop.f32.mrb[0].mxu0
    %v569 = vadd.f32 0.0, %v568
    %v570 = vpop.f32.mrb[0].mxu0
    %v571 = vadd.f32 0.0, %v570
    %v572 = vpop.f32.mrb[0].mxu0
    %v573 = vadd.f32 0.0, %v572
    %574 = vmatprep.mubr.bf16.mxu0 0
    %575 = vmatmul.mubr.bf16.gmra.mrb[0].mxu0 %v357
    %v576 = vpop.f32.mrb[0].mxu0
    %v577 = vadd.f32 0.0, %v576
    %v578 = vpop.f32.mrb[0].mxu0
    %v579 = vadd.f32 0.0, %v578
    %v580 = vpop.f32.mrb[0].mxu0
    %v581 = vadd.f32 0.0, %v580
    %v582 = vpop.f32.mrb[0].mxu0
    %v583 = vadd.f32 0.0, %v582
    %584 = vdwg.mxu0
    %585 = vmatprep.subr.bf16.mxu0 %v299
    %586 = vmatpush1.bf16.msra.mxu0 %v298
    %587 = vmatprep.subr.bf16.mxu0 %v309
    %588 = vmatpush1.bf16.msra.mxu0 %v308
    %589 = vmatprep.subr.bf16.mxu0 0
    %590 = vmatpush1.bf16.msra.mxu0 0
    %591 = vmatprep.subr.bf16.mxu0 0
    %592 = vmatpush1.bf16.msra.mxu0 0
    %593 = vmatprep.subr.bf16.mxu0 0
    %594 = vmatpush1.bf16.msra.mxu0 0
    %595 = vmatprep.subr.bf16.mxu0 0
    %596 = vmatpush1.bf16.msra.mxu0 0
    %597 = vmatprep.subr.bf16.mxu0 0
    %598 = vmatpush1.bf16.msra.mxu0 0
    %599 = vmatprep.subr.bf16.mxu0 0
    %600 = vmatpush1.bf16.msra.mxu0 0
    %601 = vmatprep.subr.bf16.mxu0 0
    %602 = vmatpush1.bf16.msra.mxu0 0
    %603 = vmatprep.subr.bf16.mxu0 0
    %604 = vmatpush1.bf16.msra.mxu0 0
    %605 = vmatprep.subr.bf16.mxu0 0
    %606 = vmatpush1.bf16.msra.mxu0 0
    %607 = vmatprep.subr.bf16.mxu0 0
    %608 = vmatpush1.bf16.msra.mxu0 0
    %609 = vmatprep.subr.bf16.mxu0 0
    %610 = vmatpush1.bf16.msra.mxu0 0
    %611 = vmatprep.subr.bf16.mxu0 0
    %612 = vmatpush1.bf16.msra.mxu0 0
    %613 = vmatprep.subr.bf16.mxu0 0
    %614 = vmatpush1.bf16.msra.mxu0 0
    %615 = vmatprep.subr.bf16.mxu0 0
    %616 = vmatpush1.bf16.msra.mxu0 0
    %617 = vmatprep.mubr.bf16.mxu0 0
    %618 = vmatmul.mubr.bf16.gmra.mrb[0].mxu0 %v336
    %v619 = vpop.f32.mrb[0].mxu0
    %v620 = vadd.f32 0.0, %v619
    %v621 = vpop.f32.mrb[0].mxu0
    %v622 = vadd.f32 0.0, %v621
    %v623 = vpop.f32.mrb[0].mxu0
    %v624 = vadd.f32 0.0, %v623
    %v625 = vpop.f32.mrb[0].mxu0
    %v626 = vadd.f32 0.0, %v625
    %627 = vmatprep.mubr.bf16.mxu0 0
    %628 = vmatmul.mubr.bf16.gmra.mrb[0].mxu0 %v339
    %v629 = vpop.f32.mrb[0].mxu0
    %v630 = vadd.f32 0.0, %v629
    %v631 = vpop.f32.mrb[0].mxu0
    %v632 = vadd.f32 0.0, %v631
    %v633 = vpop.f32.mrb[0].mxu0
    %v634 = vadd.f32 0.0, %v633
    %v635 = vpop.f32.mrb[0].mxu0
    %v636 = vadd.f32 0.0, %v635
    %637 = vmatprep.mubr.bf16.mxu0 0
    %638 = vmatmul.mubr.bf16.gmra.mrb[0].mxu0 %v342
    %v639 = vpop.f32.mrb[0].mxu0
    %v640 = vadd.f32 0.0, %v639
    %v641 = vpop.f32.mrb[0].mxu0
    %v642 = vadd.f32 0.0, %v641
    %v643 = vpop.f32.mrb[0].mxu0
    %v644 = vadd.f32 0.0, %v643
    %v645 = vpop.f32.mrb[0].mxu0
    %v646 = vadd.f32 0.0, %v645
    %647 = vmatprep.mubr.bf16.mxu0 0
    %648 = vmatmul.mubr.bf16.gmra.mrb[0].mxu0 %v345
    %v649 = vpop.f32.mrb[0].mxu0
    %v650 = vadd.f32 0.0, %v649
    %v651 = vpop.f32.mrb[0].mxu0
    %v652 = vadd.f32 0.0, %v651
    %v653 = vpop.f32.mrb[0].mxu0
    %v654 = vadd.f32 0.0, %v653
    %v655 = vpop.f32.mrb[0].mxu0
    %v656 = vadd.f32 0.0, %v655
    %657 = vmatprep.mubr.bf16.mxu0 0
    %658 = vmatmul.mubr.bf16.gmra.mrb[0].mxu0 %v348
    %v659 = vpop.f32.mrb[0].mxu0
    %v660 = vadd.f32 0.0, %v659
    %v661 = vpop.f32.mrb[0].mxu0
    %v662 = vadd.f32 0.0, %v661
    %v663 = vpop.f32.mrb[0].mxu0
    %v664 = vadd.f32 0.0, %v663
    %v665 = vpop.f32.mrb[0].mxu0
    %v666 = vadd.f32 0.0, %v665
    %667 = vmatprep.mubr.bf16.mxu0 0
    %668 = vmatmul.mubr.bf16.gmra.mrb[0].mxu0 %v351
    %v669 = vpop.f32.mrb[0].mxu0
    %v670 = vadd.f32 0.0, %v669
    %v671 = vpop.f32.mrb[0].mxu0
    %v672 = vadd.f32 0.0, %v671
    %v673 = vpop.f32.mrb[0].mxu0
    %v674 = vadd.f32 0.0, %v673
    %v675 = vpop.f32.mrb[0].mxu0
    %v676 = vadd.f32 0.0, %v675
    %677 = vmatprep.mubr.bf16.mxu0 0
    %678 = vmatmul.mubr.bf16.gmra.mrb[0].mxu0 %v354
    %v679 = vpop.f32.mrb[0].mxu0
    %v680 = vadd.f32 0.0, %v679
    %v681 = vpop.f32.mrb[0].mxu0
    %v682 = vadd.f32 0.0, %v681
    %v683 = vpop.f32.mrb[0].mxu0
    %v684 = vadd.f32 0.0, %v683
    %v685 = vpop.f32.mrb[0].mxu0
    %v686 = vadd.f32 0.0, %v685
    %687 = vmatprep.mubr.bf16.mxu0 0
    %688 = vmatmul.mubr.bf16.gmra.mrb[0].mxu0 %v357
    %v689 = vpop.f32.mrb[0].mxu0
    %v690 = vadd.f32 0.0, %v689
    %v691 = vpop.f32.mrb[0].mxu0
    %v692 = vadd.f32 0.0, %v691
    %v693 = vpop.f32.mrb[0].mxu0
    %v694 = vadd.f32 0.0, %v693
    %v695 = vpop.f32.mrb[0].mxu0
    %v696 = vadd.f32 0.0, %v695
    %697 = vdwg.mxu0
    %698 = vmatprep.subr.bf16.mxu0 %v301
    %699 = vmatpush1.bf16.msra.mxu0 %v300
    %700 = vmatprep.subr.bf16.mxu0 %v311
    %701 = vmatpush1.bf16.msra.mxu0 %v310
    %702 = vmatprep.subr.bf16.mxu0 0
    %703 = vmatpush1.bf16.msra.mxu0 0
    %704 = vmatprep.subr.bf16.mxu0 0
    %705 = vmatpush1.bf16.msra.mxu0 0
    %706 = vmatprep.subr.bf16.mxu0 0
    %707 = vmatpush1.bf16.msra.mxu0 0
    %708 = vmatprep.subr.bf16.mxu0 0
    %709 = vmatpush1.bf16.msra.mxu0 0
    %710 = vmatprep.subr.bf16.mxu0 0
    %711 = vmatpush1.bf16.msra.mxu0 0
    %712 = vmatprep.subr.bf16.mxu0 0
    %713 = vmatpush1.bf16.msra.mxu0 0
    %714 = vmatprep.subr.bf16.mxu0 0
    %715 = vmatpush1.bf16.msra.mxu0 0
    %716 = vmatprep.subr.bf16.mxu0 0
    %717 = vmatpush1.bf16.msra.mxu0 0
    %718 = vmatprep.subr.bf16.mxu0 0
    %719 = vmatpush1.bf16.msra.mxu0 0
    %720 = vmatprep.subr.bf16.mxu0 0
    %721 = vmatpush1.bf16.msra.mxu0 0
    %722 = vmatprep.subr.bf16.mxu0 0
    %723 = vmatpush1.bf16.msra.mxu0 0
    %724 = vmatprep.subr.bf16.mxu0 0
    %725 = vmatpush1.bf16.msra.mxu0 0
    %726 = vmatprep.subr.bf16.mxu0 0
    %727 = vmatpush1.bf16.msra.mxu0 0
    %728 = vmatprep.subr.bf16.mxu0 0
    %729 = vmatpush1.bf16.msra.mxu0 0
    %730 = vmatprep.mubr.bf16.mxu0 0
    %731 = vmatmul.mubr.bf16.gmra.mrb[0].mxu0 %v336
    %v732 = vpop.f32.mrb[0].mxu0
    %v733 = vadd.f32 0.0, %v732
    %v734 = vpop.f32.mrb[0].mxu0
    %v735 = vadd.f32 0.0, %v734
    %v736 = vpop.f32.mrb[0].mxu0
    %v737 = vadd.f32 0.0, %v736
    %v738 = vpop.f32.mrb[0].mxu0
    %v739 = vadd.f32 0.0, %v738
    %740 = vmatprep.mubr.bf16.mxu0 0
    %741 = vmatmul.mubr.bf16.gmra.mrb[0].mxu0 %v339
    %v742 = vpop.f32.mrb[0].mxu0
    %v743 = vadd.f32 0.0, %v742
    %v744 = vpop.f32.mrb[0].mxu0
    %v745 = vadd.f32 0.0, %v744
    %v746 = vpop.f32.mrb[0].mxu0
    %v747 = vadd.f32 0.0, %v746
    %v748 = vpop.f32.mrb[0].mxu0
    %v749 = vadd.f32 0.0, %v748
    %750 = vmatprep.mubr.bf16.mxu0 0
    %751 = vmatmul.mubr.bf16.gmra.mrb[0].mxu0 %v342
    %v752 = vpop.f32.mrb[0].mxu0
    %v753 = vadd.f32 0.0, %v752
    %v754 = vpop.f32.mrb[0].mxu0
    %v755 = vadd.f32 0.0, %v754
    %v756 = vpop.f32.mrb[0].mxu0
    %v757 = vadd.f32 0.0, %v756
    %v758 = vpop.f32.mrb[0].mxu0
    %v759 = vadd.f32 0.0, %v758
    %760 = vmatprep.mubr.bf16.mxu0 0
    %761 = vmatmul.mubr.bf16.gmra.mrb[0].mxu0 %v345
    %v762 = vpop.f32.mrb[0].mxu0
    %v763 = vadd.f32 0.0, %v762
    %v764 = vpop.f32.mrb[0].mxu0
    %v765 = vadd.f32 0.0, %v764
    %v766 = vpop.f32.mrb[0].mxu0
    %v767 = vadd.f32 0.0, %v766
    %v768 = vpop.f32.mrb[0].mxu0
    %v769 = vadd.f32 0.0, %v768
    %770 = vmatprep.mubr.bf16.mxu0 0
    %771 = vmatmul.mubr.bf16.gmra.mrb[0].mxu0 %v348
    %v772 = vpop.f32.mrb[0].mxu0
    %v773 = vadd.f32 0.0, %v772
    %v774 = vpop.f32.mrb[0].mxu0
    %v775 = vadd.f32 0.0, %v774
    %v776 = vpop.f32.mrb[0].mxu0
    %v777 = vadd.f32 0.0, %v776
    %v778 = vpop.f32.mrb[0].mxu0
    %v779 = vadd.f32 0.0, %v778
    %780 = vmatprep.mubr.bf16.mxu0 0
    %781 = vmatmul.mubr.bf16.gmra.mrb[0].mxu0 %v351
    %v782 = vpop.f32.mrb[0].mxu0
    %v783 = vadd.f32 0.0, %v782
    %v784 = vpop.f32.mrb[0].mxu0
    %v785 = vadd.f32 0.0, %v784
    %v786 = vpop.f32.mrb[0].mxu0
    %v787 = vadd.f32 0.0, %v786
    %v788 = vpop.f32.mrb[0].mxu0
    %v789 = vadd.f32 0.0, %v788
    %790 = vmatprep.mubr.bf16.mxu0 0
    %791 = vmatmul.mubr.bf16.gmra.mrb[0].mxu0 %v354
    %v792 = vpop.f32.mrb[0].mxu0
    %v793 = vadd.f32 0.0, %v792
    %v794 = vpop.f32.mrb[0].mxu0
    %v795 = vadd.f32 0.0, %v794
    %v796 = vpop.f32.mrb[0].mxu0
    %v797 = vadd.f32 0.0, %v796
    %v798 = vpop.f32.mrb[0].mxu0
    %v799 = vadd.f32 0.0, %v798
    %800 = vmatprep.mubr.bf16.mxu0 0
    %801 = vmatmul.mubr.bf16.gmra.mrb[0].mxu0 %v357
    %v802 = vpop.f32.mrb[0].mxu0
    %v803 = vadd.f32 0.0, %v802
    %v804 = vpop.f32.mrb[0].mxu0
    %v805 = vadd.f32 0.0, %v804
    %v806 = vpop.f32.mrb[0].mxu0
    %v807 = vadd.f32 0.0, %v806
    %v808 = vpop.f32.mrb[0].mxu0
    %v809 = vadd.f32 0.0, %v808
    %810 = vdwg.mxu0
    %811 = vmatprep.subr.bf16.mxu0 %v303
    %812 = vmatpush1.bf16.msra.mxu0 %v302
    %813 = vmatprep.subr.bf16.mxu0 %v313
    %814 = vmatpush1.bf16.msra.mxu0 %v312
    %815 = vmatprep.subr.bf16.mxu0 0
    %816 = vmatpush1.bf16.msra.mxu0 0
    %817 = vmatprep.subr.bf16.mxu0 0
    %818 = vmatpush1.bf16.msra.mxu0 0
    %819 = vmatprep.subr.bf16.mxu0 0
    %820 = vmatpush1.bf16.msra.mxu0 0
    %821 = vmatprep.subr.bf16.mxu0 0
    %822 = vmatpush1.bf16.msra.mxu0 0
    %823 = vmatprep.subr.bf16.mxu0 0
    %824 = vmatpush1.bf16.msra.mxu0 0
    %825 = vmatprep.subr.bf16.mxu0 0
    %826 = vmatpush1.bf16.msra.mxu0 0
    %827 = vmatprep.subr.bf16.mxu0 0
    %828 = vmatpush1.bf16.msra.mxu0 0
    %829 = vmatprep.subr.bf16.mxu0 0
    %830 = vmatpush1.bf16.msra.mxu0 0
    %831 = vmatprep.subr.bf16.mxu0 0
    %832 = vmatpush1.bf16.msra.mxu0 0
    %833 = vmatprep.subr.bf16.mxu0 0
    %834 = vmatpush1.bf16.msra.mxu0 0
    %835 = vmatprep.subr.bf16.mxu0 0
    %836 = vmatpush1.bf16.msra.mxu0 0
    %837 = vmatprep.subr.bf16.mxu0 0
    %838 = vmatpush1.bf16.msra.mxu0 0
    %839 = vmatprep.subr.bf16.mxu0 0
    %840 = vmatpush1.bf16.msra.mxu0 0
    %841 = vmatprep.subr.bf16.mxu0 0
    %842 = vmatpush1.bf16.msra.mxu0 0
    %843 = vmatprep.mubr.bf16.mxu0 0
    %844 = vmatmul.mubr.bf16.gmra.mrb[0].mxu0 %v336
    %v845 = vpop.f32.mrb[0].mxu0
    %v846 = vadd.f32 0.0, %v845
    %v847 = vpop.f32.mrb[0].mxu0
    %v848 = vadd.f32 0.0, %v847
    %v849 = vpop.f32.mrb[0].mxu0
    %v850 = vadd.f32 0.0, %v849
    %v851 = vpop.f32.mrb[0].mxu0
    %v852 = vadd.f32 0.0, %v851
    %853 = vmatprep.mubr.bf16.mxu0 0
    %854 = vmatmul.mubr.bf16.gmra.mrb[0].mxu0 %v339
    %v855 = vpop.f32.mrb[0].mxu0
    %v856 = vadd.f32 0.0, %v855
    %v857 = vpop.f32.mrb[0].mxu0
    %v858 = vadd.f32 0.0, %v857
    %v859 = vpop.f32.mrb[0].mxu0
    %v860 = vadd.f32 0.0, %v859
    %v861 = vpop.f32.mrb[0].mxu0
    %v862 = vadd.f32 0.0, %v861
    %863 = vmatprep.mubr.bf16.mxu0 0
    %864 = vmatmul.mubr.bf16.gmra.mrb[0].mxu0 %v342
    %v865 = vpop.f32.mrb[0].mxu0
    %v866 = vadd.f32 0.0, %v865
    %v867 = vpop.f32.mrb[0].mxu0
    %v868 = vadd.f32 0.0, %v867
    %v869 = vpop.f32.mrb[0].mxu0
    %v870 = vadd.f32 0.0, %v869
    %v871 = vpop.f32.mrb[0].mxu0
    %v872 = vadd.f32 0.0, %v871
    %873 = vmatprep.mubr.bf16.mxu0 0
    %874 = vmatmul.mubr.bf16.gmra.mrb[0].mxu0 %v345
    %v875 = vpop.f32.mrb[0].mxu0
    %v876 = vadd.f32 0.0, %v875
    %v877 = vpop.f32.mrb[0].mxu0
    %v878 = vadd.f32 0.0, %v877
    %v879 = vpop.f32.mrb[0].mxu0
    %v880 = vadd.f32 0.0, %v879
    %v881 = vpop.f32.mrb[0].mxu0
    %v882 = vadd.f32 0.0, %v881
    %883 = vmatprep.mubr.bf16.mxu0 0
    %884 = vmatmul.mubr.bf16.gmra.mrb[0].mxu0 %v348
    %v885 = vpop.f32.mrb[0].mxu0
    %v886 = vadd.f32 0.0, %v885
    %v887 = vpop.f32.mrb[0].mxu0
    %v888 = vadd.f32 0.0, %v887
    %v889 = vpop.f32.mrb[0].mxu0
    %v890 = vadd.f32 0.0, %v889
    %v891 = vpop.f32.mrb[0].mxu0
    %v892 = vadd.f32 0.0, %v891
    %893 = vmatprep.mubr.bf16.mxu0 0
    %894 = vmatmul.mubr.bf16.gmra.mrb[0].mxu0 %v351
    %v895 = vpop.f32.mrb[0].mxu0
    %v896 = vadd.f32 0.0, %v895
    %v897 = vpop.f32.mrb[0].mxu0
    %v898 = vadd.f32 0.0, %v897
    %v899 = vpop.f32.mrb[0].mxu0
    %v900 = vadd.f32 0.0, %v899
    %v901 = vpop.f32.mrb[0].mxu0
    %v902 = vadd.f32 0.0, %v901
    %903 = vmatprep.mubr.bf16.mxu0 0
    %904 = vmatmul.mubr.bf16.gmra.mrb[0].mxu0 %v354
    %v905 = vpop.f32.mrb[0].mxu0
    %v906 = vadd.f32 0.0, %v905
    %v907 = vpop.f32.mrb[0].mxu0
    %v908 = vadd.f32 0.0, %v907
    %v909 = vpop.f32.mrb[0].mxu0
    %v910 = vadd.f32 0.0, %v909
    %v911 = vpop.f32.mrb[0].mxu0
    %v912 = vadd.f32 0.0, %v911
    %913 = vmatprep.mubr.bf16.mxu0 0
    %914 = vmatmul.mubr.bf16.gmra.mrb[0].mxu0 %v357
    %v915 = vpop.f32.mrb[0].mxu0
    %v916 = vadd.f32 0.0, %v915
    %v917 = vpop.f32.mrb[0].mxu0
    %v918 = vadd.f32 0.0, %v917
    %v919 = vpop.f32.mrb[0].mxu0
    %v920 = vadd.f32 0.0, %v919
    %v921 = vpop.f32.mrb[0].mxu0
    %v922 = vadd.f32 0.0, %v921
    %923 = vdwg.mxu0
    %v924 = vsub.f32 0.0, %v394
    %v925 = vsub.f32 0.0, %v396
    %v926 = vsub.f32 0.0, %v507
    %v927 = vsub.f32 0.0, %v509
    %v928 = vsub.f32 0.0, %v620
    %v929 = vsub.f32 0.0, %v622
    %v930 = vsub.f32 0.0, %v733
    %v931 = vsub.f32 0.0, %v735
    %v932 = vsub.f32 0.0, %v846
    %v933 = vsub.f32 0.0, %v848
    %v934 = vsub.f32 0.0, %v398
    %v935 = vsub.f32 0.0, %v400
    %v936 = vsub.f32 0.0, %v511
    %v937 = vsub.f32 0.0, %v513
    %v938 = vsub.f32 0.0, %v624
    %v939 = vsub.f32 0.0, %v626
    %v940 = vsub.f32 0.0, %v737
    %v941 = vsub.f32 0.0, %v739
    %v942 = vsub.f32 0.0, %v850
    %v943 = vsub.f32 0.0, %v852
    %v944 = vsub.f32 0.0, %v404
    %v945 = vsub.f32 0.0, %v406
    %v946 = vsub.f32 0.0, %v517
    %v947 = vsub.f32 0.0, %v519
    %v948 = vsub.f32 0.0, %v630
    %v949 = vsub.f32 0.0, %v632
    %v950 = vsub.f32 0.0, %v743
    %v951 = vsub.f32 0.0, %v745
    %v952 = vsub.f32 0.0, %v856
    %v953 = vsub.f32 0.0, %v858
    %v954 = vsub.f32 0.0, %v408
    %v955 = vsub.f32 0.0, %v410
    %v956 = vsub.f32 0.0, %v521
    %v957 = vsub.f32 0.0, %v523
    %v958 = vsub.f32 0.0, %v634
    %v959 = vsub.f32 0.0, %v636
    %v960 = vsub.f32 0.0, %v747
    %v961 = vsub.f32 0.0, %v749
    %v962 = vsub.f32 0.0, %v860
    %v963 = vsub.f32 0.0, %v862
    %v964 = vsub.f32 0.0, %v414
    %v965 = vsub.f32 0.0, %v416
    %v966 = vsub.f32 0.0, %v527
    %v967 = vsub.f32 0.0, %v529
    %v968 = vsub.f32 0.0, %v640
    %v969 = vsub.f32 0.0, %v642
    %v970 = vsub.f32 0.0, %v753
    %v971 = vsub.f32 0.0, %v755
    %v972 = vsub.f32 0.0, %v866
    %v973 = vsub.f32 0.0, %v868
    %v974 = vsub.f32 0.0, %v418
    %v975 = vsub.f32 0.0, %v420
    %v976 = vsub.f32 0.0, %v531
    %v977 = vsub.f32 0.0, %v533
    %v978 = vsub.f32 0.0, %v644
    %v979 = vsub.f32 0.0, %v646
    %v980 = vsub.f32 0.0, %v757
    %v981 = vsub.f32 0.0, %v759
    %v982 = vsub.f32 0.0, %v870
    %v983 = vsub.f32 0.0, %v872
    %v984 = vsub.f32 0.0, %v424
    %v985 = vsub.f32 0.0, %v426
    %v986 = vsub.f32 0.0, %v537
    %v987 = vsub.f32 0.0, %v539
    %v988 = vsub.f32 0.0, %v650
    %v989 = vsub.f32 0.0, %v652
    %v990 = vsub.f32 0.0, %v763
    %v991 = vsub.f32 0.0, %v765
    %v992 = vsub.f32 0.0, %v876
    %v993 = vsub.f32 0.0, %v878
    %v994 = vsub.f32 0.0, %v428
    %v995 = vsub.f32 0.0, %v430
    %v996 = vsub.f32 0.0, %v541
    %v997 = vsub.f32 0.0, %v543
    %v998 = vsub.f32 0.0, %v654
    %v999 = vsub.f32 0.0, %v656
    %v1000 = vsub.f32 0.0, %v767
    %v1001 = vsub.f32 0.0, %v769
    %v1002 = vsub.f32 0.0, %v880
    %v1003 = vsub.f32 0.0, %v882
    %v1004 = vsub.f32 0.0, %v434
    %v1005 = vsub.f32 0.0, %v436
    %v1006 = vsub.f32 0.0, %v547
    %v1007 = vsub.f32 0.0, %v549
    %v1008 = vsub.f32 0.0, %v660
    %v1009 = vsub.f32 0.0, %v662
    %v1010 = vsub.f32 0.0, %v773
    %v1011 = vsub.f32 0.0, %v775
    %v1012 = vsub.f32 0.0, %v886
    %v1013 = vsub.f32 0.0, %v888
    %v1014 = vsub.f32 0.0, %v438
    %v1015 = vsub.f32 0.0, %v440
    %v1016 = vsub.f32 0.0, %v551
    %v1017 = vsub.f32 0.0, %v553
    %v1018 = vsub.f32 0.0, %v664
    %v1019 = vsub.f32 0.0, %v666
    %v1020 = vsub.f32 0.0, %v777
    %v1021 = vsub.f32 0.0, %v779
    %v1022 = vsub.f32 0.0, %v890
    %v1023 = vsub.f32 0.0, %v892
    %v1024 = vsub.f32 0.0, %v444
    %v1025 = vsub.f32 0.0, %v446
    %v1026 = vsub.f32 0.0, %v557
    %v1027 = vsub.f32 0.0, %v559
    %v1028 = vsub.f32 0.0, %v670
    %v1029 = vsub.f32 0.0, %v672
    %v1030 = vsub.f32 0.0, %v783
    %v1031 = vsub.f32 0.0, %v785
    %v1032 = vsub.f32 0.0, %v896
    %v1033 = vsub.f32 0.0, %v898
    %v1034 = vsub.f32 0.0, %v448
    %v1035 = vsub.f32 0.0, %v450
    %v1036 = vsub.f32 0.0, %v561
    %v1037 = vsub.f32 0.0, %v563
    %v1038 = vsub.f32 0.0, %v674
    %v1039 = vsub.f32 0.0, %v676
    %v1040 = vsub.f32 0.0, %v787
    %v1041 = vsub.f32 0.0, %v789
    %v1042 = vsub.f32 0.0, %v900
    %v1043 = vsub.f32 0.0, %v902
    %v1044 = vsub.f32 0.0, %v454
    %v1045 = vsub.f32 0.0, %v456
    %v1046 = vsub.f32 0.0, %v567
    %v1047 = vsub.f32 0.0, %v569
    %v1048 = vsub.f32 0.0, %v680
    %v1049 = vsub.f32 0.0, %v682
    %v1050 = vsub.f32 0.0, %v793
    %v1051 = vsub.f32 0.0, %v795
    %v1052 = vsub.f32 0.0, %v906
    %v1053 = vsub.f32 0.0, %v908
    %v1054 = vsub.f32 0.0, %v458
    %v1055 = vsub.f32 0.0, %v460
    %v1056 = vsub.f32 0.0, %v571
    %v1057 = vsub.f32 0.0, %v573
    %v1058 = vsub.f32 0.0, %v684
    %v1059 = vsub.f32 0.0, %v686
    %v1060 = vsub.f32 0.0, %v797
    %v1061 = vsub.f32 0.0, %v799
    %v1062 = vsub.f32 0.0, %v910
    %v1063 = vsub.f32 0.0, %v912
    %v1064 = vsub.f32 0.0, %v464
    %v1065 = vsub.f32 0.0, %v466
    %v1066 = vsub.f32 0.0, %v577
    %v1067 = vsub.f32 0.0, %v579
    %v1068 = vsub.f32 0.0, %v690
    %v1069 = vsub.f32 0.0, %v692
    %v1070 = vsub.f32 0.0, %v803
    %v1071 = vsub.f32 0.0, %v805
    %v1072 = vsub.f32 0.0, %v916
    %v1073 = vsub.f32 0.0, %v918
    %v1074 = vsub.f32 0.0, %v468
    %v1075 = vsub.f32 0.0, %v470
    %v1076 = vsub.f32 0.0, %v581
    %v1077 = vsub.f32 0.0, %v583
    %v1078 = vsub.f32 0.0, %v694
    %v1079 = vsub.f32 0.0, %v696
    %v1080 = vsub.f32 0.0, %v807
    %v1081 = vsub.f32 0.0, %v809
    %v1082 = vsub.f32 0.0, %v920
    %v1083 = vsub.f32 0.0, %v922
    %v1084 = vmul.f32 %v924, 1.442695
    %v1085 = vpow.pop %v1084
    %v1086 = vmul.f32 %v925, 1.442695
    %v1087 = vpow.pop %v1086
    %v1088 = vmul.f32 %v926, 1.442695
    %v1089 = vpow.pop %v1088
    %v1090 = vmul.f32 %v927, 1.442695
    %v1091 = vpow.pop %v1090
    %v1092 = vmul.f32 %v928, 1.442695
    %v1093 = vpow.pop %v1092
    %v1094 = vmul.f32 %v929, 1.442695
    %v1095 = vpow.pop %v1094
    %v1096 = vmul.f32 %v930, 1.442695
    %v1097 = vpow.pop %v1096
    %v1098 = vmul.f32 %v931, 1.442695
    %v1099 = vpow.pop %v1098
    %v1100 = vmul.f32 %v932, 1.442695
    %v1101 = vpow.pop %v1100
    %v1102 = vmul.f32 %v933, 1.442695
    %v1103 = vpow.pop %v1102
    %v1104 = vmul.f32 %v934, 1.442695
    %v1105 = vpow.pop %v1104
    %v1106 = vmul.f32 %v935, 1.442695
    %v1107 = vpow.pop %v1106
    %v1108 = vmul.f32 %v936, 1.442695
    %v1109 = vpow.pop %v1108
    %v1110 = vmul.f32 %v937, 1.442695
    %v1111 = vpow.pop %v1110
    %v1112 = vmul.f32 %v938, 1.442695
    %v1113 = vpow.pop %v1112
    %v1114 = vmul.f32 %v939, 1.442695
    %v1115 = vpow.pop %v1114
    %v1116 = vmul.f32 %v940, 1.442695
    %v1117 = vpow.pop %v1116
    %v1118 = vmul.f32 %v941, 1.442695
    %v1119 = vpow.pop %v1118
    %v1120 = vmul.f32 %v942, 1.442695
    %v1121 = vpow.pop %v1120
    %v1122 = vmul.f32 %v943, 1.442695
    %v1123 = vpow.pop %v1122
    %v1124 = vmul.f32 %v944, 1.442695
    %v1125 = vpow.pop %v1124
    %v1126 = vmul.f32 %v945, 1.442695
    %v1127 = vpow.pop %v1126
    %v1128 = vmul.f32 %v946, 1.442695
    %v1129 = vpow.pop %v1128
    %v1130 = vmul.f32 %v947, 1.442695
    %v1131 = vpow.pop %v1130
    %v1132 = vmul.f32 %v948, 1.442695
    %v1133 = vpow.pop %v1132
    %v1134 = vmul.f32 %v949, 1.442695
    %v1135 = vpow.pop %v1134
    %v1136 = vmul.f32 %v950, 1.442695
    %v1137 = vpow.pop %v1136
    %v1138 = vmul.f32 %v951, 1.442695
    %v1139 = vpow.pop %v1138
    %v1140 = vmul.f32 %v952, 1.442695
    %v1141 = vpow.pop %v1140
    %v1142 = vmul.f32 %v953, 1.442695
    %v1143 = vpow.pop %v1142
    %v1144 = vmul.f32 %v954, 1.442695
    %v1145 = vpow.pop %v1144
    %v1146 = vmul.f32 %v955, 1.442695
    %v1147 = vpow.pop %v1146
    %v1148 = vmul.f32 %v956, 1.442695
    %v1149 = vpow.pop %v1148
    %v1150 = vmul.f32 %v957, 1.442695
    %v1151 = vpow.pop %v1150
    %v1152 = vmul.f32 %v958, 1.442695
    %v1153 = vpow.pop %v1152
    %v1154 = vmul.f32 %v959, 1.442695
    %v1155 = vpow.pop %v1154
    %v1156 = vmul.f32 %v960, 1.442695
    %v1157 = vpow.pop %v1156
    %v1158 = vmul.f32 %v961, 1.442695
    %v1159 = vpow.pop %v1158
    %v1160 = vmul.f32 %v962, 1.442695
    %v1161 = vpow.pop %v1160
    %v1162 = vmul.f32 %v963, 1.442695
    %v1163 = vpow.pop %v1162
    %v1164 = vmul.f32 %v964, 1.442695
    %v1165 = vpow.pop %v1164
    %v1166 = vmul.f32 %v965, 1.442695
    %v1167 = vpow.pop %v1166
    %v1168 = vmul.f32 %v966, 1.442695
    %v1169 = vpow.pop %v1168
    %v1170 = vmul.f32 %v967, 1.442695
    %v1171 = vpow.pop %v1170
    %v1172 = vmul.f32 %v968, 1.442695
    %v1173 = vpow.pop %v1172
    %v1174 = vmul.f32 %v969, 1.442695
    %v1175 = vpow.pop %v1174
    %v1176 = vmul.f32 %v970, 1.442695
    %v1177 = vpow.pop %v1176
    %v1178 = vmul.f32 %v971, 1.442695
    %v1179 = vpow.pop %v1178
    %v1180 = vmul.f32 %v972, 1.442695
    %v1181 = vpow.pop %v1180
    %v1182 = vmul.f32 %v973, 1.442695
    %v1183 = vpow.pop %v1182
    %v1184 = vmul.f32 %v974, 1.442695
    %v1185 = vpow.pop %v1184
    %v1186 = vmul.f32 %v975, 1.442695
    %v1187 = vpow.pop %v1186
    %v1188 = vmul.f32 %v976, 1.442695
    %v1189 = vpow.pop %v1188
    %v1190 = vmul.f32 %v977, 1.442695
    %v1191 = vpow.pop %v1190
    %v1192 = vmul.f32 %v978, 1.442695
    %v1193 = vpow.pop %v1192
    %v1194 = vmul.f32 %v979, 1.442695
    %v1195 = vpow.pop %v1194
    %v1196 = vmul.f32 %v980, 1.442695
    %v1197 = vpow.pop %v1196
    %v1198 = vmul.f32 %v981, 1.442695
    %v1199 = vpow.pop %v1198
    %v1200 = vmul.f32 %v982, 1.442695
    %v1201 = vpow.pop %v1200
    %v1202 = vmul.f32 %v983, 1.442695
    %v1203 = vpow.pop %v1202
    %v1204 = vmul.f32 %v984, 1.442695
    %v1205 = vpow.pop %v1204
    %v1206 = vmul.f32 %v985, 1.442695
    %v1207 = vpow.pop %v1206
    %v1208 = vmul.f32 %v986, 1.442695
    %v1209 = vpow.pop %v1208
    %v1210 = vmul.f32 %v987, 1.442695
    %v1211 = vpow.pop %v1210
    %v1212 = vmul.f32 %v988, 1.442695
    %v1213 = vpow.pop %v1212
    %v1214 = vmul.f32 %v989, 1.442695
    %v1215 = vpow.pop %v1214
    %v1216 = vmul.f32 %v990, 1.442695
    %v1217 = vpow.pop %v1216
    %v1218 = vmul.f32 %v991, 1.442695
    %v1219 = vpow.pop %v1218
    %v1220 = vmul.f32 %v992, 1.442695
    %v1221 = vpow.pop %v1220
    %v1222 = vmul.f32 %v993, 1.442695
    %v1223 = vpow.pop %v1222
    %v1224 = vmul.f32 %v994, 1.442695
    %v1225 = vpow.pop %v1224
    %v1226 = vmul.f32 %v995, 1.442695
    %v1227 = vpow.pop %v1226
    %v1228 = vmul.f32 %v996, 1.442695
    %v1229 = vpow.pop %v1228
    %v1230 = vmul.f32 %v997, 1.442695
    %v1231 = vpow.pop %v1230
    %v1232 = vmul.f32 %v998, 1.442695
    %v1233 = vpow.pop %v1232
    %v1234 = vmul.f32 %v999, 1.442695
    %v1235 = vpow.pop %v1234
    %v1236 = vmul.f32 %v1000, 1.442695
    %v1237 = vpow.pop %v1236
    %v1238 = vmul.f32 %v1001, 1.442695
    %v1239 = vpow.pop %v1238
    %v1240 = vmul.f32 %v1002, 1.442695
    %v1241 = vpow.pop %v1240
    %v1242 = vmul.f32 %v1003, 1.442695
    %v1243 = vpow.pop %v1242
    %v1244 = vmul.f32 %v1004, 1.442695
    %v1245 = vpow.pop %v1244
    %v1246 = vmul.f32 %v1005, 1.442695
    %v1247 = vpow.pop %v1246
    %v1248 = vmul.f32 %v1006, 1.442695
    %v1249 = vpow.pop %v1248
    %v1250 = vmul.f32 %v1007, 1.442695
    %v1251 = vpow.pop %v1250
    %v1252 = vmul.f32 %v1008, 1.442695
    %v1253 = vpow.pop %v1252
    %v1254 = vmul.f32 %v1009, 1.442695
    %v1255 = vpow.pop %v1254
    %v1256 = vmul.f32 %v1010, 1.442695
    %v1257 = vpow.pop %v1256
    %v1258 = vmul.f32 %v1011, 1.442695
    %v1259 = vpow.pop %v1258
    %v1260 = vmul.f32 %v1012, 1.442695
    %v1261 = vpow.pop %v1260
    %v1262 = vmul.f32 %v1013, 1.442695
    %v1263 = vpow.pop %v1262
    %v1264 = vmul.f32 %v1014, 1.442695
    %v1265 = vpow.pop %v1264
    %v1266 = vmul.f32 %v1015, 1.442695
    %v1267 = vpow.pop %v1266
    %v1268 = vmul.f32 %v1016, 1.442695
    %v1269 = vpow.pop %v1268
    %v1270 = vmul.f32 %v1017, 1.442695
    %v1271 = vpow.pop %v1270
    %v1272 = vmul.f32 %v1018, 1.442695
    %v1273 = vpow.pop %v1272
    %v1274 = vmul.f32 %v1019, 1.442695
    %v1275 = vpow.pop %v1274
    %v1276 = vmul.f32 %v1020, 1.442695
    %v1277 = vpow.pop %v1276
    %v1278 = vmul.f32 %v1021, 1.442695
    %v1279 = vpow.pop %v1278
    %v1280 = vmul.f32 %v1022, 1.442695
    %v1281 = vpow.pop %v1280
    %v1282 = vmul.f32 %v1023, 1.442695
    %v1283 = vpow.pop %v1282
    %v1284 = vmul.f32 %v1024, 1.442695
    %v1285 = vpow.pop %v1284
    %v1286 = vmul.f32 %v1025, 1.442695
    %v1287 = vpow.pop %v1286
    %v1288 = vmul.f32 %v1026, 1.442695
    %v1289 = vpow.pop %v1288
    %v1290 = vmul.f32 %v1027, 1.442695
    %v1291 = vpow.pop %v1290
    %v1292 = vmul.f32 %v1028, 1.442695
    %v1293 = vpow.pop %v1292
    %v1294 = vmul.f32 %v1029, 1.442695
    %v1295 = vpow.pop %v1294
    %v1296 = vmul.f32 %v1030, 1.442695
    %v1297 = vpow.pop %v1296
    %v1298 = vmul.f32 %v1031, 1.442695
    %v1299 = vpow.pop %v1298
    %v1300 = vmul.f32 %v1032, 1.442695
    %v1301 = vpow.pop %v1300
    %v1302 = vmul.f32 %v1033, 1.442695
    %v1303 = vpow.pop %v1302
    %v1304 = vmul.f32 %v1034, 1.442695
    %v1305 = vpow.pop %v1304
    %v1306 = vmul.f32 %v1035, 1.442695
    %v1307 = vpow.pop %v1306
    %v1308 = vmul.f32 %v1036, 1.442695
    %v1309 = vpow.pop %v1308
    %v1310 = vmul.f32 %v1037, 1.442695
    %v1311 = vpow.pop %v1310
    %v1312 = vmul.f32 %v1038, 1.442695
    %v1313 = vpow.pop %v1312
    %v1314 = vmul.f32 %v1039, 1.442695
    %v1315 = vpow.pop %v1314
    %v1316 = vmul.f32 %v1040, 1.442695
    %v1317 = vpow.pop %v1316
    %v1318 = vmul.f32 %v1041, 1.442695
    %v1319 = vpow.pop %v1318
    %v1320 = vmul.f32 %v1042, 1.442695
    %v1321 = vpow.pop %v1320
    %v1322 = vmul.f32 %v1043, 1.442695
    %v1323 = vpow.pop %v1322
    %v1324 = vmul.f32 %v1044, 1.442695
    %v1325 = vpow.pop %v1324
    %v1326 = vmul.f32 %v1045, 1.442695
    %v1327 = vpow.pop %v1326
    %v1328 = vmul.f32 %v1046, 1.442695
    %v1329 = vpow.pop %v1328
    %v1330 = vmul.f32 %v1047, 1.442695
    %v1331 = vpow.pop %v1330
    %v1332 = vmul.f32 %v1048, 1.442695
    %v1333 = vpow.pop %v1332
    %v1334 = vmul.f32 %v1049, 1.442695
    %v1335 = vpow.pop %v1334
    %v1336 = vmul.f32 %v1050, 1.442695
    %v1337 = vpow.pop %v1336
    %v1338 = vmul.f32 %v1051, 1.442695
    %v1339 = vpow.pop %v1338
    %v1340 = vmul.f32 %v1052, 1.442695
    %v1341 = vpow.pop %v1340
    %v1342 = vmul.f32 %v1053, 1.442695
    %v1343 = vpow.pop %v1342
    %v1344 = vmul.f32 %v1054, 1.442695
    %v1345 = vpow.pop %v1344
    %v1346 = vmul.f32 %v1055, 1.442695
    %v1347 = vpow.pop %v1346
    %v1348 = vmul.f32 %v1056, 1.442695
    %v1349 = vpow.pop %v1348
    %v1350 = vmul.f32 %v1057, 1.442695
    %v1351 = vpow.pop %v1350
    %v1352 = vmul.f32 %v1058, 1.442695
    %v1353 = vpow.pop %v1352
    %v1354 = vmul.f32 %v1059, 1.442695
    %v1355 = vpow.pop %v1354
    %v1356 = vmul.f32 %v1060, 1.442695
    %v1357 = vpow.pop %v1356
    %v1358 = vmul.f32 %v1061, 1.442695
    %v1359 = vpow.pop %v1358
    %v1360 = vmul.f32 %v1062, 1.442695
    %v1361 = vpow.pop %v1360
    %v1362 = vmul.f32 %v1063, 1.442695
    %v1363 = vpow.pop %v1362
    %v1364 = vmul.f32 %v1064, 1.442695
    %v1365 = vpow.pop %v1364
    %v1366 = vmul.f32 %v1065, 1.442695
    %v1367 = vpow.pop %v1366
    %v1368 = vmul.f32 %v1066, 1.442695
    %v1369 = vpow.pop %v1368
    %v1370 = vmul.f32 %v1067, 1.442695
    %v1371 = vpow.pop %v1370
    %v1372 = vmul.f32 %v1068, 1.442695
    %v1373 = vpow.pop %v1372
    %v1374 = vmul.f32 %v1069, 1.442695
    %v1375 = vpow.pop %v1374
    %v1376 = vmul.f32 %v1070, 1.442695
    %v1377 = vpow.pop %v1376
    %v1378 = vmul.f32 %v1071, 1.442695
    %v1379 = vpow.pop %v1378
    %v1380 = vmul.f32 %v1072, 1.442695
    %v1381 = vpow.pop %v1380
    %v1382 = vmul.f32 %v1073, 1.442695
    %v1383 = vpow.pop %v1382
    %v1384 = vmul.f32 %v1074, 1.442695
    %v1385 = vpow.pop %v1384
    %v1386 = vmul.f32 %v1075, 1.442695
    %v1387 = vpow.pop %v1386
    %v1388 = vmul.f32 %v1076, 1.442695
    %v1389 = vpow.pop %v1388
    %v1390 = vmul.f32 %v1077, 1.442695
    %v1391 = vpow.pop %v1390
    %v1392 = vmul.f32 %v1078, 1.442695
    %v1393 = vpow.pop %v1392
    %v1394 = vmul.f32 %v1079, 1.442695
    %v1395 = vpow.pop %v1394
    %v1396 = vmul.f32 %v1080, 1.442695
    %v1397 = vpow.pop %v1396
    %v1398 = vmul.f32 %v1081, 1.442695
    %v1399 = vpow.pop %v1398
    %v1400 = vmul.f32 %v1082, 1.442695
    %v1401 = vpow.pop %v1400
    %v1402 = vmul.f32 %v1083, 1.442695
    %v1403 = vpow.pop %v1402
    %v1404 = vadd.f32 %v1085, 1.0
    %v1405 = vadd.f32 %v1087, 1.0
    %v1406 = vadd.f32 %v1089, 1.0
    %v1407 = vadd.f32 %v1091, 1.0
    %v1408 = vadd.f32 %v1093, 1.0
    %v1409 = vadd.f32 %v1095, 1.0
    %v1410 = vadd.f32 %v1097, 1.0
    %v1411 = vadd.f32 %v1099, 1.0
    %v1412 = vadd.f32 %v1101, 1.0
    %v1413 = vadd.f32 %v1103, 1.0
    %v1414 = vadd.f32 %v1105, 1.0
    %v1415 = vadd.f32 %v1107, 1.0
    %v1416 = vadd.f32 %v1109, 1.0
    %v1417 = vadd.f32 %v1111, 1.0
    %v1418 = vadd.f32 %v1113, 1.0
    %v1419 = vadd.f32 %v1115, 1.0
    %v1420 = vadd.f32 %v1117, 1.0
    %v1421 = vadd.f32 %v1119, 1.0
    %v1422 = vadd.f32 %v1121, 1.0
    %v1423 = vadd.f32 %v1123, 1.0
    %v1424 = vadd.f32 %v1125, 1.0
    %v1425 = vadd.f32 %v1127, 1.0
    %v1426 = vadd.f32 %v1129, 1.0
    %v1427 = vadd.f32 %v1131, 1.0
    %v1428 = vadd.f32 %v1133, 1.0
    %v1429 = vadd.f32 %v1135, 1.0
    %v1430 = vadd.f32 %v1137, 1.0
    %v1431 = vadd.f32 %v1139, 1.0
    %v1432 = vadd.f32 %v1141, 1.0
    %v1433 = vadd.f32 %v1143, 1.0
    %v1434 = vadd.f32 %v1145, 1.0
    %v1435 = vadd.f32 %v1147, 1.0
    %v1436 = vadd.f32 %v1149, 1.0
    %v1437 = vadd.f32 %v1151, 1.0
    %v1438 = vadd.f32 %v1153, 1.0
    %v1439 = vadd.f32 %v1155, 1.0
    %v1440 = vadd.f32 %v1157, 1.0
    %v1441 = vadd.f32 %v1159, 1.0
    %v1442 = vadd.f32 %v1161, 1.0
    %v1443 = vadd.f32 %v1163, 1.0
    %v1444 = vadd.f32 %v1165, 1.0
    %v1445 = vadd.f32 %v1167, 1.0
    %v1446 = vadd.f32 %v1169, 1.0
    %v1447 = vadd.f32 %v1171, 1.0
    %v1448 = vadd.f32 %v1173, 1.0
    %v1449 = vadd.f32 %v1175, 1.0
    %v1450 = vadd.f32 %v1177, 1.0
    %v1451 = vadd.f32 %v1179, 1.0
    %v1452 = vadd.f32 %v1181, 1.0
    %v1453 = vadd.f32 %v1183, 1.0
    %v1454 = vadd.f32 %v1185, 1.0
    %v1455 = vadd.f32 %v1187, 1.0
    %v1456 = vadd.f32 %v1189, 1.0
    %v1457 = vadd.f32 %v1191, 1.0
    %v1458 = vadd.f32 %v1193, 1.0
    %v1459 = vadd.f32 %v1195, 1.0
    %v1460 = vadd.f32 %v1197, 1.0
    %v1461 = vadd.f32 %v1199, 1.0
    %v1462 = vadd.f32 %v1201, 1.0
    %v1463 = vadd.f32 %v1203, 1.0
    %v1464 = vadd.f32 %v1205, 1.0
    %v1465 = vadd.f32 %v1207, 1.0
    %v1466 = vadd.f32 %v1209, 1.0
    %v1467 = vadd.f32 %v1211, 1.0
    %v1468 = vadd.f32 %v1213, 1.0
    %v1469 = vadd.f32 %v1215, 1.0
    %v1470 = vadd.f32 %v1217, 1.0
    %v1471 = vadd.f32 %v1219, 1.0
    %v1472 = vadd.f32 %v1221, 1.0
    %v1473 = vadd.f32 %v1223, 1.0
    %v1474 = vadd.f32 %v1225, 1.0
    %v1475 = vadd.f32 %v1227, 1.0
    %v1476 = vadd.f32 %v1229, 1.0
    %v1477 = vadd.f32 %v1231, 1.0
    %v1478 = vadd.f32 %v1233, 1.0
    %v1479 = vadd.f32 %v1235, 1.0
    %v1480 = vadd.f32 %v1237, 1.0
    %v1481 = vadd.f32 %v1239, 1.0
    %v1482 = vadd.f32 %v1241, 1.0
    %v1483 = vadd.f32 %v1243, 1.0
    %v1484 = vadd.f32 %v1245, 1.0
    %v1485 = vadd.f32 %v1247, 1.0
    %v1486 = vadd.f32 %v1249, 1.0
    %v1487 = vadd.f32 %v1251, 1.0
    %v1488 = vadd.f32 %v1253, 1.0
    %v1489 = vadd.f32 %v1255, 1.0
    %v1490 = vadd.f32 %v1257, 1.0
    %v1491 = vadd.f32 %v1259, 1.0
    %v1492 = vadd.f32 %v1261, 1.0
    %v1493 = vadd.f32 %v1263, 1.0
    %v1494 = vadd.f32 %v1265, 1.0
    %v1495 = vadd.f32 %v1267, 1.0
    %v1496 = vadd.f32 %v1269, 1.0
    %v1497 = vadd.f32 %v1271, 1.0
    %v1498 = vadd.f32 %v1273, 1.0
    %v1499 = vadd.f32 %v1275, 1.0
    %v1500 = vadd.f32 %v1277, 1.0
    %v1501 = vadd.f32 %v1279, 1.0
    %v1502 = vadd.f32 %v1281, 1.0
    %v1503 = vadd.f32 %v1283, 1.0
    %v1504 = vadd.f32 %v1285, 1.0
    %v1505 = vadd.f32 %v1287, 1.0
    %v1506 = vadd.f32 %v1289, 1.0
    %v1507 = vadd.f32 %v1291, 1.0
    %v1508 = vadd.f32 %v1293, 1.0
    %v1509 = vadd.f32 %v1295, 1.0
    %v1510 = vadd.f32 %v1297, 1.0
    %v1511 = vadd.f32 %v1299, 1.0
    %v1512 = vadd.f32 %v1301, 1.0
    %v1513 = vadd.f32 %v1303, 1.0
    %v1514 = vadd.f32 %v1305, 1.0
    %v1515 = vadd.f32 %v1307, 1.0
    %v1516 = vadd.f32 %v1309, 1.0
    %v1517 = vadd.f32 %v1311, 1.0
    %v1518 = vadd.f32 %v1313, 1.0
    %v1519 = vadd.f32 %v1315, 1.0
    %v1520 = vadd.f32 %v1317, 1.0
    %v1521 = vadd.f32 %v1319, 1.0
    %v1522 = vadd.f32 %v1321, 1.0
    %v1523 = vadd.f32 %v1323, 1.0
    %v1524 = vadd.f32 %v1325, 1.0
    %v1525 = vadd.f32 %v1327, 1.0
    %v1526 = vadd.f32 %v1329, 1.0
    %v1527 = vadd.f32 %v1331, 1.0
    %v1528 = vadd.f32 %v1333, 1.0
    %v1529 = vadd.f32 %v1335, 1.0
    %v1530 = vadd.f32 %v1337, 1.0
    %v1531 = vadd.f32 %v1339, 1.0
    %v1532 = vadd.f32 %v1341, 1.0
    %v1533 = vadd.f32 %v1343, 1.0
    %v1534 = vadd.f32 %v1345, 1.0
    %v1535 = vadd.f32 %v1347, 1.0
    %v1536 = vadd.f32 %v1349, 1.0
    %v1537 = vadd.f32 %v1351, 1.0
    %v1538 = vadd.f32 %v1353, 1.0
    %v1539 = vadd.f32 %v1355, 1.0
    %v1540 = vadd.f32 %v1357, 1.0
    %v1541 = vadd.f32 %v1359, 1.0
    %v1542 = vadd.f32 %v1361, 1.0
    %v1543 = vadd.f32 %v1363, 1.0
    %v1544 = vadd.f32 %v1365, 1.0
    %v1545 = vadd.f32 %v1367, 1.0
    %v1546 = vadd.f32 %v1369, 1.0
    %v1547 = vadd.f32 %v1371, 1.0
    %v1548 = vadd.f32 %v1373, 1.0
    %v1549 = vadd.f32 %v1375, 1.0
    %v1550 = vadd.f32 %v1377, 1.0
    %v1551 = vadd.f32 %v1379, 1.0
    %v1552 = vadd.f32 %v1381, 1.0
    %v1553 = vadd.f32 %v1383, 1.0
    %v1554 = vadd.f32 %v1385, 1.0
    %v1555 = vadd.f32 %v1387, 1.0
    %v1556 = vadd.f32 %v1389, 1.0
    %v1557 = vadd.f32 %v1391, 1.0
    %v1558 = vadd.f32 %v1393, 1.0
    %v1559 = vadd.f32 %v1395, 1.0
    %v1560 = vadd.f32 %v1397, 1.0
    %v1561 = vadd.f32 %v1399, 1.0
    %v1562 = vadd.f32 %v1401, 1.0
    %v1563 = vadd.f32 %v1403, 1.0
    %v1564 = vrcp.pop %v1404
    %v1565 = vrcp.pop %v1405
    %v1566 = vrcp.pop %v1406
    %v1567 = vrcp.pop %v1407
    %v1568 = vrcp.pop %v1408
    %v1569 = vrcp.pop %v1409
    %v1570 = vrcp.pop %v1410
    %v1571 = vrcp.pop %v1411
    %v1572 = vrcp.pop %v1412
    %v1573 = vrcp.pop %v1413
    %v1574 = vrcp.pop %v1414
    %v1575 = vrcp.pop %v1415
    %v1576 = vrcp.pop %v1416
    %v1577 = vrcp.pop %v1417
    %v1578 = vrcp.pop %v1418
    %v1579 = vrcp.pop %v1419
    %v1580 = vrcp.pop %v1420
    %v1581 = vrcp.pop %v1421
    %v1582 = vrcp.pop %v1422
    %v1583 = vrcp.pop %v1423
    %v1584 = vrcp.pop %v1424
    %v1585 = vrcp.pop %v1425
    %v1586 = vrcp.pop %v1426
    %v1587 = vrcp.pop %v1427
    %v1588 = vrcp.pop %v1428
    %v1589 = vrcp.pop %v1429
    %v1590 = vrcp.pop %v1430
    %v1591 = vrcp.pop %v1431
    %v1592 = vrcp.pop %v1432
    %v1593 = vrcp.pop %v1433
    %v1594 = vrcp.pop %v1434
    %v1595 = vrcp.pop %v1435
    %v1596 = vrcp.pop %v1436
    %v1597 = vrcp.pop %v1437
    %v1598 = vrcp.pop %v1438
    %v1599 = vrcp.pop %v1439
    %v1600 = vrcp.pop %v1440
    %v1601 = vrcp.pop %v1441
    %v1602 = vrcp.pop %v1442
    %v1603 = vrcp.pop %v1443
    %v1604 = vrcp.pop %v1444
    %v1605 = vrcp.pop %v1445
    %v1606 = vrcp.pop %v1446
    %v1607 = vrcp.pop %v1447
    %v1608 = vrcp.pop %v1448
    %v1609 = vrcp.pop %v1449
    %v1610 = vrcp.pop %v1450
    %v1611 = vrcp.pop %v1451
    %v1612 = vrcp.pop %v1452
    %v1613 = vrcp.pop %v1453
    %v1614 = vrcp.pop %v1454
    %v1615 = vrcp.pop %v1455
    %v1616 = vrcp.pop %v1456
    %v1617 = vrcp.pop %v1457
    %v1618 = vrcp.pop %v1458
    %v1619 = vrcp.pop %v1459
    %v1620 = vrcp.pop %v1460
    %v1621 = vrcp.pop %v1461
    %v1622 = vrcp.pop %v1462
    %v1623 = vrcp.pop %v1463
    %v1624 = vrcp.pop %v1464
    %v1625 = vrcp.pop %v1465
    %v1626 = vrcp.pop %v1466
    %v1627 = vrcp.pop %v1467
    %v1628 = vrcp.pop %v1468
    %v1629 = vrcp.pop %v1469
    %v1630 = vrcp.pop %v1470
    %v1631 = vrcp.pop %v1471
    %v1632 = vrcp.pop %v1472
    %v1633 = vrcp.pop %v1473
    %v1634 = vrcp.pop %v1474
    %v1635 = vrcp.pop %v1475
    %v1636 = vrcp.pop %v1476
    %v1637 = vrcp.pop %v1477
    %v1638 = vrcp.pop %v1478
    %v1639 = vrcp.pop %v1479
    %v1640 = vrcp.pop %v1480
    %v1641 = vrcp.pop %v1481
    %v1642 = vrcp.pop %v1482
    %v1643 = vrcp.pop %v1483
    %v1644 = vrcp.pop %v1484
    %v1645 = vrcp.pop %v1485
    %v1646 = vrcp.pop %v1486
    %v1647 = vrcp.pop %v1487
    %v1648 = vrcp.pop %v1488
    %v1649 = vrcp.pop %v1489
    %v1650 = vrcp.pop %v1490
    %v1651 = vrcp.pop %v1491
    %v1652 = vrcp.pop %v1492
    %v1653 = vrcp.pop %v1493
    %v1654 = vrcp.pop %v1494
    %v1655 = vrcp.pop %v1495
    %v1656 = vrcp.pop %v1496
    %v1657 = vrcp.pop %v1497
    %v1658 = vrcp.pop %v1498
    %v1659 = vrcp.pop %v1499
    %v1660 = vrcp.pop %v1500
    %v1661 = vrcp.pop %v1501
    %v1662 = vrcp.pop %v1502
    %v1663 = vrcp.pop %v1503
    %v1664 = vrcp.pop %v1504
    %v1665 = vrcp.pop %v1505
    %v1666 = vrcp.pop %v1506
    %v1667 = vrcp.pop %v1507
    %v1668 = vrcp.pop %v1508
    %v1669 = vrcp.pop %v1509
    %v1670 = vrcp.pop %v1510
    %v1671 = vrcp.pop %v1511
    %v1672 = vrcp.pop %v1512
    %v1673 = vrcp.pop %v1513
    %v1674 = vrcp.pop %v1514
    %v1675 = vrcp.pop %v1515
    %v1676 = vrcp.pop %v1516
    %v1677 = vrcp.pop %v1517
    %v1678 = vrcp.pop %v1518
    %v1679 = vrcp.pop %v1519
    %v1680 = vrcp.pop %v1520
    %v1681 = vrcp.pop %v1521
    %v1682 = vrcp.pop %v1522
    %v1683 = vrcp.pop %v1523
    %v1684 = vrcp.pop %v1524
    %v1685 = vrcp.pop %v1525
    %v1686 = vrcp.pop %v1526
    %v1687 = vrcp.pop %v1527
    %v1688 = vrcp.pop %v1528
    %v1689 = vrcp.pop %v1529
    %v1690 = vrcp.pop %v1530
    %v1691 = vrcp.pop %v1531
    %v1692 = vrcp.pop %v1532
    %v1693 = vrcp.pop %v1533
    %v1694 = vrcp.pop %v1534
    %v1695 = vrcp.pop %v1535
    %v1696 = vrcp.pop %v1536
    %v1697 = vrcp.pop %v1537
    %v1698 = vrcp.pop %v1538
    %v1699 = vrcp.pop %v1539
    %v1700 = vrcp.pop %v1540
    %v1701 = vrcp.pop %v1541
    %v1702 = vrcp.pop %v1542
    %v1703 = vrcp.pop %v1543
    %v1704 = vrcp.pop %v1544
    %v1705 = vrcp.pop %v1545
    %v1706 = vrcp.pop %v1546
    %v1707 = vrcp.pop %v1547
    %v1708 = vrcp.pop %v1548
    %v1709 = vrcp.pop %v1549
    %v1710 = vrcp.pop %v1550
    %v1711 = vrcp.pop %v1551
    %v1712 = vrcp.pop %v1552
    %v1713 = vrcp.pop %v1553
    %v1714 = vrcp.pop %v1554
    %v1715 = vrcp.pop %v1555
    %v1716 = vrcp.pop %v1556
    %v1717 = vrcp.pop %v1557
    %v1718 = vrcp.pop %v1558
    %v1719 = vrcp.pop %v1559
    %v1720 = vrcp.pop %v1560
    %v1721 = vrcp.pop %v1561
    %v1722 = vrcp.pop %v1562
    %v1723 = vrcp.pop %v1563
    %v1724 = vmul.f32 %v394, %v1564
    %v1725 = vmul.f32 %v396, %v1565
    %v1726 = vmul.f32 %v507, %v1566
    %v1727 = vmul.f32 %v509, %v1567
    %v1728 = vmul.f32 %v620, %v1568
    %v1729 = vmul.f32 %v622, %v1569
    %v1730 = vmul.f32 %v733, %v1570
    %v1731 = vmul.f32 %v735, %v1571
    %v1732 = vmul.f32 %v846, %v1572
    %v1733 = vmul.f32 %v848, %v1573
    %v1734 = vmul.f32 %v398, %v1574
    %v1735 = vmul.f32 %v400, %v1575
    %v1736 = vmul.f32 %v511, %v1576
    %v1737 = vmul.f32 %v513, %v1577
    %v1738 = vmul.f32 %v624, %v1578
    %v1739 = vmul.f32 %v626, %v1579
    %v1740 = vmul.f32 %v737, %v1580
    %v1741 = vmul.f32 %v739, %v1581
    %v1742 = vmul.f32 %v850, %v1582
    %v1743 = vmul.f32 %v852, %v1583
    %v1744 = vmul.f32 %v404, %v1584
    %v1745 = vmul.f32 %v406, %v1585
    %v1746 = vmul.f32 %v517, %v1586
    %v1747 = vmul.f32 %v519, %v1587
    %v1748 = vmul.f32 %v630, %v1588
    %v1749 = vmul.f32 %v632, %v1589
    %v1750 = vmul.f32 %v743, %v1590
    %v1751 = vmul.f32 %v745, %v1591
    %v1752 = vmul.f32 %v856, %v1592
    %v1753 = vmul.f32 %v858, %v1593
    %v1754 = vmul.f32 %v408, %v1594
    %v1755 = vmul.f32 %v410, %v1595
    %v1756 = vmul.f32 %v521, %v1596
    %v1757 = vmul.f32 %v523, %v1597
    %v1758 = vmul.f32 %v634, %v1598
    %v1759 = vmul.f32 %v636, %v1599
    %v1760 = vmul.f32 %v747, %v1600
    %v1761 = vmul.f32 %v749, %v1601
    %v1762 = vmul.f32 %v860, %v1602
    %v1763 = vmul.f32 %v862, %v1603
    %v1764 = vmul.f32 %v414, %v1604
    %v1765 = vmul.f32 %v416, %v1605
    %v1766 = vmul.f32 %v527, %v1606
    %v1767 = vmul.f32 %v529, %v1607
    %v1768 = vmul.f32 %v640, %v1608
    %v1769 = vmul.f32 %v642, %v1609
    %v1770 = vmul.f32 %v753, %v1610
    %v1771 = vmul.f32 %v755, %v1611
    %v1772 = vmul.f32 %v866, %v1612
    %v1773 = vmul.f32 %v868, %v1613
    %v1774 = vmul.f32 %v418, %v1614
    %v1775 = vmul.f32 %v420, %v1615
    %v1776 = vmul.f32 %v531, %v1616
    %v1777 = vmul.f32 %v533, %v1617
    %v1778 = vmul.f32 %v644, %v1618
    %v1779 = vmul.f32 %v646, %v1619
    %v1780 = vmul.f32 %v757, %v1620
    %v1781 = vmul.f32 %v759, %v1621
    %v1782 = vmul.f32 %v870, %v1622
    %v1783 = vmul.f32 %v872, %v1623
    %v1784 = vmul.f32 %v424, %v1624
    %v1785 = vmul.f32 %v426, %v1625
    %v1786 = vmul.f32 %v537, %v1626
    %v1787 = vmul.f32 %v539, %v1627
    %v1788 = vmul.f32 %v650, %v1628
    %v1789 = vmul.f32 %v652, %v1629
    %v1790 = vmul.f32 %v763, %v1630
    %v1791 = vmul.f32 %v765, %v1631
    %v1792 = vmul.f32 %v876, %v1632
    %v1793 = vmul.f32 %v878, %v1633
    %v1794 = vmul.f32 %v428, %v1634
    %v1795 = vmul.f32 %v430, %v1635
    %v1796 = vmul.f32 %v541, %v1636
    %v1797 = vmul.f32 %v543, %v1637
    %v1798 = vmul.f32 %v654, %v1638
    %v1799 = vmul.f32 %v656, %v1639
    %v1800 = vmul.f32 %v767, %v1640
    %v1801 = vmul.f32 %v769, %v1641
    %v1802 = vmul.f32 %v880, %v1642
    %v1803 = vmul.f32 %v882, %v1643
    %v1804 = vmul.f32 %v434, %v1644
    %v1805 = vmul.f32 %v436, %v1645
    %v1806 = vmul.f32 %v547, %v1646
    %v1807 = vmul.f32 %v549, %v1647
    %v1808 = vmul.f32 %v660, %v1648
    %v1809 = vmul.f32 %v662, %v1649
    %v1810 = vmul.f32 %v773, %v1650
    %v1811 = vmul.f32 %v775, %v1651
    %v1812 = vmul.f32 %v886, %v1652
    %v1813 = vmul.f32 %v888, %v1653
    %v1814 = vmul.f32 %v438, %v1654
    %v1815 = vmul.f32 %v440, %v1655
    %v1816 = vmul.f32 %v551, %v1656
    %v1817 = vmul.f32 %v553, %v1657
    %v1818 = vmul.f32 %v664, %v1658
    %v1819 = vmul.f32 %v666, %v1659
    %v1820 = vmul.f32 %v777, %v1660
    %v1821 = vmul.f32 %v779, %v1661
    %v1822 = vmul.f32 %v890, %v1662
    %v1823 = vmul.f32 %v892, %v1663
    %v1824 = vmul.f32 %v444, %v1664
    %v1825 = vmul.f32 %v446, %v1665
    %v1826 = vmul.f32 %v557, %v1666
    %v1827 = vmul.f32 %v559, %v1667
    %v1828 = vmul.f32 %v670, %v1668
    %v1829 = vmul.f32 %v672, %v1669
    %v1830 = vmul.f32 %v783, %v1670
    %v1831 = vmul.f32 %v785, %v1671
    %v1832 = vmul.f32 %v896, %v1672
    %v1833 = vmul.f32 %v898, %v1673
    %v1834 = vmul.f32 %v448, %v1674
    %v1835 = vmul.f32 %v450, %v1675
    %v1836 = vmul.f32 %v561, %v1676
    %v1837 = vmul.f32 %v563, %v1677
    %v1838 = vmul.f32 %v674, %v1678
    %v1839 = vmul.f32 %v676, %v1679
    %v1840 = vmul.f32 %v787, %v1680
    %v1841 = vmul.f32 %v789, %v1681
    %v1842 = vmul.f32 %v900, %v1682
    %v1843 = vmul.f32 %v902, %v1683
    %v1844 = vmul.f32 %v454, %v1684
    %v1845 = vmul.f32 %v456, %v1685
    %v1846 = vmul.f32 %v567, %v1686
    %v1847 = vmul.f32 %v569, %v1687
    %v1848 = vmul.f32 %v680, %v1688
    %v1849 = vmul.f32 %v682, %v1689
    %v1850 = vmul.f32 %v793, %v1690
    %v1851 = vmul.f32 %v795, %v1691
    %v1852 = vmul.f32 %v906, %v1692
    %v1853 = vmul.f32 %v908, %v1693
    %v1854 = vmul.f32 %v458, %v1694
    %v1855 = vmul.f32 %v460, %v1695
    %v1856 = vmul.f32 %v571, %v1696
    %v1857 = vmul.f32 %v573, %v1697
    %v1858 = vmul.f32 %v684, %v1698
    %v1859 = vmul.f32 %v686, %v1699
    %v1860 = vmul.f32 %v797, %v1700
    %v1861 = vmul.f32 %v799, %v1701
    %v1862 = vmul.f32 %v910, %v1702
    %v1863 = vmul.f32 %v912, %v1703
    %v1864 = vmul.f32 %v464, %v1704
    %v1865 = vmul.f32 %v466, %v1705
    %v1866 = vmul.f32 %v577, %v1706
    %v1867 = vmul.f32 %v579, %v1707
    %v1868 = vmul.f32 %v690, %v1708
    %v1869 = vmul.f32 %v692, %v1709
    %v1870 = vmul.f32 %v803, %v1710
    %v1871 = vmul.f32 %v805, %v1711
    %v1872 = vmul.f32 %v916, %v1712
    %v1873 = vmul.f32 %v918, %v1713
    %v1874 = vmul.f32 %v468, %v1714
    %v1875 = vmul.f32 %v470, %v1715
    %v1876 = vmul.f32 %v581, %v1716
    %v1877 = vmul.f32 %v583, %v1717
    %v1878 = vmul.f32 %v694, %v1718
    %v1879 = vmul.f32 %v696, %v1719
    %v1880 = vmul.f32 %v807, %v1720
    %v1881 = vmul.f32 %v809, %v1721
    %v1882 = vmul.f32 %v920, %v1722
    %v1883 = vmul.f32 %v922, %v1723
    %v1884 = vld [vmem:[#allocation2] sm:$0xff]
    %v1885 = vld [vmem:[#allocation2 + $0x8] sm:$0xff]
    %v1886 = vld [vmem:[#allocation2 + $0x10] sm:$0xf]
    %v1887 = vadd.f32 %v1724, %v1734
    %v1888 = vadd.f32 %v1887, %v1744
    %v1889 = vadd.f32 %v1888, %v1754
    %v1890 = vadd.f32 %v1889, %v1764
    %v1891 = vadd.f32 %v1890, %v1774
    %v1892 = vadd.f32 %v1891, %v1784
    %v1893 = vadd.f32 %v1892, %v1794
    %v1894 = vrot.slane %v1893, 4
    %v1895 = vadd.f32 %v1893, %v1894
    %v1896 = vrot.slane %v1895, 2
    %v1897 = vadd.f32 %v1895, %v1896
    %v1898 = vrot.slane %v1897, 1
    %v1899 = vadd.f32 %v1897, %v1898
    %v1900 = vadd.f32 %v1725, %v1735
    %v1901 = vadd.f32 %v1900, %v1745
    %v1902 = vadd.f32 %v1901, %v1755
    %v1903 = vadd.f32 %v1902, %v1765
    %v1904 = vadd.f32 %v1903, %v1775
    %v1905 = vadd.f32 %v1904, %v1785
    %v1906 = vadd.f32 %v1905, %v1795
    %v1907 = vrot.slane %v1906, 4
    %v1908 = vadd.f32 %v1906, %v1907
    %v1909 = vrot.slane %v1908, 2
    %v1910 = vadd.f32 %v1908, %v1909
    %v1911 = vrot.slane %v1910, 1
    %v1912 = vadd.f32 %v1910, %v1911
    %v1913 = vadd.f32 %v1726, %v1736
    %v1914 = vadd.f32 %v1913, %v1746
    %v1915 = vadd.f32 %v1914, %v1756
    %v1916 = vadd.f32 %v1915, %v1766
    %v1917 = vadd.f32 %v1916, %v1776
    %v1918 = vadd.f32 %v1917, %v1786
    %v1919 = vadd.f32 %v1918, %v1796
    %v1920 = vrot.slane %v1919, 4
    %v1921 = vadd.f32 %v1919, %v1920
    %v1922 = vrot.slane %v1921, 2
    %v1923 = vadd.f32 %v1921, %v1922
    %v1924 = vrot.slane %v1923, 1
    %v1925 = vadd.f32 %v1923, %v1924
    %v1926 = vadd.f32 %v1727, %v1737
    %v1927 = vadd.f32 %v1926, %v1747
    %v1928 = vadd.f32 %v1927, %v1757
    %v1929 = vadd.f32 %v1928, %v1767
    %v1930 = vadd.f32 %v1929, %v1777
    %v1931 = vadd.f32 %v1930, %v1787
    %v1932 = vadd.f32 %v1931, %v1797
    %v1933 = vrot.slane %v1932, 4
    %v1934 = vadd.f32 %v1932, %v1933
    %v1935 = vrot.slane %v1934, 2
    %v1936 = vadd.f32 %v1934, %v1935
    %v1937 = vrot.slane %v1936, 1
    %v1938 = vadd.f32 %v1936, %v1937
    %v1939 = vadd.f32 %v1728, %v1738
    %v1940 = vadd.f32 %v1939, %v1748
    %v1941 = vadd.f32 %v1940, %v1758
    %v1942 = vadd.f32 %v1941, %v1768
    %v1943 = vadd.f32 %v1942, %v1778
    %v1944 = vadd.f32 %v1943, %v1788
    %v1945 = vadd.f32 %v1944, %v1798
    %v1946 = vrot.slane %v1945, 4
    %v1947 = vadd.f32 %v1945, %v1946
    %v1948 = vrot.slane %v1947, 2
    %v1949 = vadd.f32 %v1947, %v1948
    %v1950 = vrot.slane %v1949, 1
    %v1951 = vadd.f32 %v1949, %v1950
    %v1952 = vadd.f32 %v1729, %v1739
    %v1953 = vadd.f32 %v1952, %v1749
    %v1954 = vadd.f32 %v1953, %v1759
    %v1955 = vadd.f32 %v1954, %v1769
    %v1956 = vadd.f32 %v1955, %v1779
    %v1957 = vadd.f32 %v1956, %v1789
    %v1958 = vadd.f32 %v1957, %v1799
    %v1959 = vrot.slane %v1958, 4
    %v1960 = vadd.f32 %v1958, %v1959
    %v1961 = vrot.slane %v1960, 2
    %v1962 = vadd.f32 %v1960, %v1961
    %v1963 = vrot.slane %v1962, 1
    %v1964 = vadd.f32 %v1962, %v1963
    %v1965 = vadd.f32 %v1730, %v1740
    %v1966 = vadd.f32 %v1965, %v1750
    %v1967 = vadd.f32 %v1966, %v1760
    %v1968 = vadd.f32 %v1967, %v1770
    %v1969 = vadd.f32 %v1968, %v1780
    %v1970 = vadd.f32 %v1969, %v1790
    %v1971 = vadd.f32 %v1970, %v1800
    %v1972 = vrot.slane %v1971, 4
    %v1973 = vadd.f32 %v1971, %v1972
    %v1974 = vrot.slane %v1973, 2
    %v1975 = vadd.f32 %v1973, %v1974
    %v1976 = vrot.slane %v1975, 1
    %v1977 = vadd.f32 %v1975, %v1976
    %v1978 = vadd.f32 %v1731, %v1741
    %v1979 = vadd.f32 %v1978, %v1751
    %v1980 = vadd.f32 %v1979, %v1761
    %v1981 = vadd.f32 %v1980, %v1771
    %v1982 = vadd.f32 %v1981, %v1781
    %v1983 = vadd.f32 %v1982, %v1791
    %v1984 = vadd.f32 %v1983, %v1801
    %v1985 = vrot.slane %v1984, 4
    %v1986 = vadd.f32 %v1984, %v1985
    %v1987 = vrot.slane %v1986, 2
    %v1988 = vadd.f32 %v1986, %v1987
    %v1989 = vrot.slane %v1988, 1
    %v1990 = vadd.f32 %v1988, %v1989
    %v1991 = vadd.f32 %v1732, %v1742
    %v1992 = vadd.f32 %v1991, %v1752
    %v1993 = vadd.f32 %v1992, %v1762
    %v1994 = vadd.f32 %v1993, %v1772
    %v1995 = vadd.f32 %v1994, %v1782
    %v1996 = vadd.f32 %v1995, %v1792
    %v1997 = vadd.f32 %v1996, %v1802
    %v1998 = vrot.slane %v1997, 4
    %v1999 = vadd.f32 %v1997, %v1998
    %v2000 = vrot.slane %v1999, 2
    %v2001 = vadd.f32 %v1999, %v2000
    %v2002 = vrot.slane %v2001, 1
    %v2003 = vadd.f32 %v2001, %v2002
    %v2004 = vadd.f32 %v1733, %v1743
    %v2005 = vadd.f32 %v2004, %v1753
    %v2006 = vadd.f32 %v2005, %v1763
    %v2007 = vadd.f32 %v2006, %v1773
    %v2008 = vadd.f32 %v2007, %v1783
    %v2009 = vadd.f32 %v2008, %v1793
    %v2010 = vadd.f32 %v2009, %v1803
    %v2011 = vrot.slane %v2010, 4
    %v2012 = vadd.f32 %v2010, %v2011
    %v2013 = vrot.slane %v2012, 2
    %v2014 = vadd.f32 %v2012, %v2013
    %v2015 = vrot.slane %v2014, 1
    %v2016 = vadd.f32 %v2014, %v2015
    %v2017 = vadd.f32 %v1804, %v1814
    %v2018 = vadd.f32 %v2017, %v1824
    %v2019 = vadd.f32 %v2018, %v1834
    %v2020 = vadd.f32 %v2019, %v1844
    %v2021 = vadd.f32 %v2020, %v1854
    %v2022 = vadd.f32 %v2021, %v1864
    %v2023 = vadd.f32 %v2022, %v1874
    %v2024 = vrot.slane %v2023, 4
    %v2025 = vadd.f32 %v2023, %v2024
    %v2026 = vrot.slane %v2025, 2
    %v2027 = vadd.f32 %v2025, %v2026
    %v2028 = vrot.slane %v2027, 1
    %v2029 = vadd.f32 %v2027, %v2028
    %v2030 = vadd.f32 %v1805, %v1815
    %v2031 = vadd.f32 %v2030, %v1825
    %v2032 = vadd.f32 %v2031, %v1835
    %v2033 = vadd.f32 %v2032, %v1845
    %v2034 = vadd.f32 %v2033, %v1855
    %v2035 = vadd.f32 %v2034, %v1865
    %v2036 = vadd.f32 %v2035, %v1875
    %v2037 = vrot.slane %v2036, 4
    %v2038 = vadd.f32 %v2036, %v2037
    %v2039 = vrot.slane %v2038, 2
    %v2040 = vadd.f32 %v2038, %v2039
    %v2041 = vrot.slane %v2040, 1
    %v2042 = vadd.f32 %v2040, %v2041
    %v2043 = vadd.f32 %v1806, %v1816
    %v2044 = vadd.f32 %v2043, %v1826
    %v2045 = vadd.f32 %v2044, %v1836
    %v2046 = vadd.f32 %v2045, %v1846
    %v2047 = vadd.f32 %v2046, %v1856
    %v2048 = vadd.f32 %v2047, %v1866
    %v2049 = vadd.f32 %v2048, %v1876
    %v2050 = vrot.slane %v2049, 4
    %v2051 = vadd.f32 %v2049, %v2050
    %v2052 = vrot.slane %v2051, 2
    %v2053 = vadd.f32 %v2051, %v2052
    %v2054 = vrot.slane %v2053, 1
    %v2055 = vadd.f32 %v2053, %v2054
    %v2056 = vadd.f32 %v1807, %v1817
    %v2057 = vadd.f32 %v2056, %v1827
    %v2058 = vadd.f32 %v2057, %v1837
    %v2059 = vadd.f32 %v2058, %v1847
    %v2060 = vadd.f32 %v2059, %v1857
    %v2061 = vadd.f32 %v2060, %v1867
    %v2062 = vadd.f32 %v2061, %v1877
    %v2063 = vrot.slane %v2062, 4
    %v2064 = vadd.f32 %v2062, %v2063
    %v2065 = vrot.slane %v2064, 2
    %v2066 = vadd.f32 %v2064, %v2065
    %v2067 = vrot.slane %v2066, 1
    %v2068 = vadd.f32 %v2066, %v2067
    %v2069 = vadd.f32 %v1808, %v1818
    %v2070 = vadd.f32 %v2069, %v1828
    %v2071 = vadd.f32 %v2070, %v1838
    %v2072 = vadd.f32 %v2071, %v1848
    %v2073 = vadd.f32 %v2072, %v1858
    %v2074 = vadd.f32 %v2073, %v1868
    %v2075 = vadd.f32 %v2074, %v1878
    %v2076 = vrot.slane %v2075, 4
    %v2077 = vadd.f32 %v2075, %v2076
    %v2078 = vrot.slane %v2077, 2
    %v2079 = vadd.f32 %v2077, %v2078
    %v2080 = vrot.slane %v2079, 1
    %v2081 = vadd.f32 %v2079, %v2080
    %v2082 = vadd.f32 %v1809, %v1819
    %v2083 = vadd.f32 %v2082, %v1829
    %v2084 = vadd.f32 %v2083, %v1839
    %v2085 = vadd.f32 %v2084, %v1849
    %v2086 = vadd.f32 %v2085, %v1859
    %v2087 = vadd.f32 %v2086, %v1869
    %v2088 = vadd.f32 %v2087, %v1879
    %v2089 = vrot.slane %v2088, 4
    %v2090 = vadd.f32 %v2088, %v2089
    %v2091 = vrot.slane %v2090, 2
    %v2092 = vadd.f32 %v2090, %v2091
    %v2093 = vrot.slane %v2092, 1
    %v2094 = vadd.f32 %v2092, %v2093
    %v2095 = vadd.f32 %v1810, %v1820
    %v2096 = vadd.f32 %v2095, %v1830
    %v2097 = vadd.f32 %v2096, %v1840
    %v2098 = vadd.f32 %v2097, %v1850
    %v2099 = vadd.f32 %v2098, %v1860
    %v2100 = vadd.f32 %v2099, %v1870
    %v2101 = vadd.f32 %v2100, %v1880
    %v2102 = vrot.slane %v2101, 4
    %v2103 = vadd.f32 %v2101, %v2102
    %v2104 = vrot.slane %v2103, 2
    %v2105 = vadd.f32 %v2103, %v2104
    %v2106 = vrot.slane %v2105, 1
    %v2107 = vadd.f32 %v2105, %v2106
    %v2108 = vadd.f32 %v1811, %v1821
    %v2109 = vadd.f32 %v2108, %v1831
    %v2110 = vadd.f32 %v2109, %v1841
    %v2111 = vadd.f32 %v2110, %v1851
    %v2112 = vadd.f32 %v2111, %v1861
    %v2113 = vadd.f32 %v2112, %v1871
    %v2114 = vadd.f32 %v2113, %v1881
    %v2115 = vrot.slane %v2114, 4
    %v2116 = vadd.f32 %v2114, %v2115
    %v2117 = vrot.slane %v2116, 2
    %v2118 = vadd.f32 %v2116, %v2117
    %v2119 = vrot.slane %v2118, 1
    %v2120 = vadd.f32 %v2118, %v2119
    %v2121 = vadd.f32 %v1812, %v1822
    %v2122 = vadd.f32 %v2121, %v1832
    %v2123 = vadd.f32 %v2122, %v1842
    %v2124 = vadd.f32 %v2123, %v1852
    %v2125 = vadd.f32 %v2124, %v1862
    %v2126 = vadd.f32 %v2125, %v1872
    %v2127 = vadd.f32 %v2126, %v1882
    %v2128 = vrot.slane %v2127, 4
    %v2129 = vadd.f32 %v2127, %v2128
    %v2130 = vrot.slane %v2129, 2
    %v2131 = vadd.f32 %v2129, %v2130
    %v2132 = vrot.slane %v2131, 1
    %v2133 = vadd.f32 %v2131, %v2132
    %v2134 = vadd.f32 %v1813, %v1823
    %v2135 = vadd.f32 %v2134, %v1833
    %v2136 = vadd.f32 %v2135, %v1843
    %v2137 = vadd.f32 %v2136, %v1853
    %v2138 = vadd.f32 %v2137, %v1863
    %v2139 = vadd.f32 %v2138, %v1873
    %v2140 = vadd.f32 %v2139, %v1883
    %v2141 = vrot.slane %v2140, 4
    %v2142 = vadd.f32 %v2140, %v2141
    %v2143 = vrot.slane %v2142, 2
    %v2144 = vadd.f32 %v2142, %v2143
    %v2145 = vrot.slane %v2144, 1
    %v2146 = vadd.f32 %v2144, %v2145
    %v2167 = vcombine.low %v1899, %v1912
    %v2168 = vcombine.low %v1925, %v1938
    %v2170 = vunpack.c.l.s4 1983009808
    %v2171 = vunpack.c.0.s8 %v2170
    %v2172 = vlaneseq
    %v2173 = vshrl.u32 %v2172, 7
    %v2174 = vsub.s32 %v2171, %v2173
    %v2175 = vrot.slane %v2167, %v2174
    %v2177 = vunpack.c.l.s4 1983009808
    %v2178 = vunpack.c.0.s8 %v2177
    %v2179 = vlaneseq
    %v2180 = vshrl.u32 %v2179, 7
    %v2181 = vsub.s32 %v2178, %v2180
    %v2182 = vrot.slane %v2168, %v2181
    %v2183 = vcombine.low %v2175, %v2182
    %v2184 = vcombine.low %v1951, %v1964
    %v2185 = vcombine.low %v1977, %v1990
    %v2187 = vunpack.c.l.s4 1983009808
    %v2188 = vunpack.c.0.s8 %v2187
    %v2189 = vlaneseq
    %v2190 = vshrl.u32 %v2189, 7
    %v2191 = vsub.s32 %v2188, %v2190
    %v2192 = vrot.slane %v2184, %v2191
    %v2194 = vunpack.c.l.s4 1983009808
    %v2195 = vunpack.c.0.s8 %v2194
    %v2196 = vlaneseq
    %v2197 = vshrl.u32 %v2196, 7
    %v2198 = vsub.s32 %v2195, %v2197
    %v2199 = vrot.slane %v2185, %v2198
    %v2200 = vcombine.low %v2192, %v2199
    %v2201 = vcombine.low %v2003, %v2016
    %v2203 = vunpack.c.l.s4 1983009808
    %v2204 = vunpack.c.0.s8 %v2203
    %v2205 = vlaneseq
    %v2206 = vshrl.u32 %v2205, 7
    %v2207 = vsub.s32 %v2204, %v2206
    %v2208 = vrot.slane %v2201, %v2207
    %v2209 = vcombine.low %v2029, %v2042
    %v2210 = vcombine.low %v2055, %v2068
    %v2212 = vunpack.c.l.s4 1983009808
    %v2213 = vunpack.c.0.s8 %v2212
    %v2214 = vlaneseq
    %v2215 = vshrl.u32 %v2214, 7
    %v2216 = vsub.s32 %v2213, %v2215
    %v2217 = vrot.slane %v2209, %v2216
    %v2219 = vunpack.c.l.s4 1983009808
    %v2220 = vunpack.c.0.s8 %v2219
    %v2221 = vlaneseq
    %v2222 = vshrl.u32 %v2221, 7
    %v2223 = vsub.s32 %v2220, %v2222
    %v2224 = vrot.slane %v2210, %v2223
    %v2225 = vcombine.low %v2217, %v2224
    %v2226 = vcombine.low %v2081, %v2094
    %v2227 = vcombine.low %v2107, %v2120
    %v2229 = vunpack.c.l.s4 1983009808
    %v2230 = vunpack.c.0.s8 %v2229
    %v2231 = vlaneseq
    %v2232 = vshrl.u32 %v2231, 7
    %v2233 = vsub.s32 %v2230, %v2232
    %v2234 = vrot.slane %v2226, %v2233
    %v2236 = vunpack.c.l.s4 1983009808
    %v2237 = vunpack.c.0.s8 %v2236
    %v2238 = vlaneseq
    %v2239 = vshrl.u32 %v2238, 7
    %v2240 = vsub.s32 %v2237, %v2239
    %v2241 = vrot.slane %v2227, %v2240
    %v2242 = vcombine.low %v2234, %v2241
    %v2243 = vcombine.low %v2133, %v2146
    %v2245 = vunpack.c.l.s4 1983009808
    %v2246 = vunpack.c.0.s8 %v2245
    %v2247 = vlaneseq
    %v2248 = vshrl.u32 %v2247, 7
    %v2249 = vsub.s32 %v2246, %v2248
    %v2250 = vrot.slane %v2243, %v2249
    %vm2251 = vcmask 1044484
    %v2252 = vsel %vm2251, %v2183, %v2183
    %vm2253 = vcmask 1046534
    %v2254 = vsel %vm2253, %v2183, %v2252
    %v2255 = vrot.slane %v2225, 7
    %vm2256 = vcmask 1041409
    %v2257 = vsel %vm2256, %v2255, %v2254
    %vm2258 = vcmask 1043459
    %v2259 = vsel %vm2258, %v2255, %v2257
    %vm2260 = vcmask 1045509
    %v2261 = vsel %vm2260, %v2255, %v2259
    %vm2262 = vcmask 1047559
    %v2263 = vsel %vm2262, %v2255, %v2261
    %v2264 = vsel %vm2251, %v2200, %v2200
    %v2265 = vsel %vm2253, %v2200, %v2264
    %v2266 = vrot.slane %v2242, 7
    %v2267 = vsel %vm2256, %v2266, %v2265
    %v2268 = vsel %vm2258, %v2266, %v2267
    %v2269 = vsel %vm2260, %v2266, %v2268
    %v2270 = vsel %vm2262, %v2266, %v2269
    %v2271 = vsel %vm2251, %v2208, %v2208
    %v2272 = vsel %vm2253, %v2208, %v2271
    %v2273 = vrot.slane %v2250, 7
    %v2274 = vsel %vm2256, %v2273, %v2272
    %v2275 = vsel %vm2258, %v2273, %v2274
    %v2276 = vsel %vm2260, %v2273, %v2275
    %v2277 = vsel %vm2262, %v2273, %v2276
    %v2281 = vadd.f32 %v1884, %v2263
    %v2282 = vadd.f32 %v1885, %v2270
    %v2283 = vadd.f32 %v1886, %v2277
    %2284 = vst [vmem:[#allocation2] sm:$0xff] %v2281
    %2285 = vst [vmem:[#allocation2 + $0x8] sm:$0xff] %v2282
    %2286 = vst [vmem:[#allocation2 + $0x10] sm:$0xf] %v2283
    // Predicated region
    $region70: #{transfer_learning_forward.1} parent=1 // pred_check
      %p2287 = pneg %p55
    $region71: #{transfer_learning_forward.1} parent=1 // pred_check_branch
      %2289 = sbr.rel (%p2287) target = $region73
    $region72: #{transfer_learning_forward.1} parent=1 // pred_region
      %v2290 = vld [vmem:[#allocation2] sm:$0xff]
      %v2291 = vld [vmem:[#allocation2 + $0x8] sm:$0xff]
      %v2292 = vld [vmem:[#allocation2 + $0x10] sm:$0xf]
      %v2293 = vmul.f32 %v2290, 0.015625
      %v2294 = vmul.f32 %v2291, 0.015625
      %v2295 = vmul.f32 %v2292, 0.015625
      %v2296 = vld [vmem:[%s1] sm:$0x3]
      %v2297 = vld [vmem:[%s3] sm:$0xff]
      %v2298 = vld [vmem:[%s4] sm:$0x1]
      %v2300 = vlaneseq
      %v2301 = vshrl.u32 %v2300, 7
      %v2302 = vsub.s32 0, %v2301
      %v2303 = vrot.slane %v2298, %v2302
      %vm2305 = vcmask 64512
      %v2307 = vsel %vm2305, %v2296, 0
      %2309 = vmatprep.subr.mxu0 0.0
      %2310 = vmatpush1.msra.mxu0 %v2297
      %2311 = vmatprep.subr.mxu0 0.0
      %2312 = vmatpush1.msra.mxu0 0.0
      %2313 = vmatprep.subr.mxu0 0.0
      %2314 = vmatpush1.msra.mxu0 0.0
      %2315 = vmatprep.subr.mxu0 0.0
      %2316 = vmatpush1.msra.mxu0 0.0
      %2317 = vmatprep.subr.mxu0 0.0
      %2318 = vmatpush1.msra.mxu0 0.0
      %2319 = vmatprep.subr.mxu0 0.0
      %2320 = vmatpush1.msra.mxu0 0.0
      %2321 = vmatprep.subr.mxu0 0.0
      %2322 = vmatpush1.msra.mxu0 0.0
      %2323 = vmatprep.subr.mxu0 0.0
      %2324 = vmatpush1.msra.mxu0 0.0
      %2325 = vmatprep.subr.mxu0 0.0
      %2326 = vmatpush1.msra.mxu0 0.0
      %2327 = vmatprep.subr.mxu0 0.0
      %2328 = vmatpush1.msra.mxu0 0.0
      %2329 = vmatprep.subr.mxu0 0.0
      %2330 = vmatpush1.msra.mxu0 0.0
      %2331 = vmatprep.subr.mxu0 0.0
      %2332 = vmatpush1.msra.mxu0 0.0
      %2333 = vmatprep.subr.mxu0 0.0
      %2334 = vmatpush1.msra.mxu0 0.0
      %2335 = vmatprep.subr.mxu0 0.0
      %2336 = vmatpush1.msra.mxu0 0.0
      %2337 = vmatprep.subr.mxu0 0.0
      %2338 = vmatpush1.msra.mxu0 0.0
      %2339 = vmatprep.subr.mxu0 0.0
      %2340 = vmatpush1.msra.mxu0 0.0
      %2341 = vmatprep.subr.mxu0 0.0
      %2342 = vmatpush1.msra.mxu0 0.0
      %2343 = vmatprep.subr.mxu0 0.0
      %2344 = vmatpush1.msra.mxu0 0.0
      %2345 = vmatprep.subr.mxu0 0.0
      %2346 = vmatpush1.msra.mxu0 0.0
      %2347 = vmatprep.subr.mxu0 0.0
      %2348 = vmatpush1.msra.mxu0 0.0
      %2349 = vmatprep.subr.mxu0 0.0
      %2350 = vmatpush1.msra.mxu0 0.0
      %2351 = vmatprep.subr.mxu0 0.0
      %2352 = vmatpush1.msra.mxu0 0.0
      %2353 = vmatprep.subr.mxu0 0.0
      %2354 = vmatpush1.msra.mxu0 0.0
      %2355 = vmatprep.subr.mxu0 0.0
      %2356 = vmatpush1.msra.mxu0 0.0
      %2357 = vmatprep.subr.mxu0 0.0
      %2358 = vmatpush1.msra.mxu0 0.0
      %2359 = vmatprep.subr.mxu0 0.0
      %2360 = vmatpush1.msra.mxu0 0.0
      %2361 = vmatprep.subr.mxu0 0.0
      %2362 = vmatpush1.msra.mxu0 0.0
      %2363 = vmatprep.subr.mxu0 0.0
      %2364 = vmatpush1.msra.mxu0 0.0
      %2365 = vmatprep.subr.mxu0 0.0
      %2366 = vmatpush1.msra.mxu0 0.0
      %2367 = vmatprep.subr.mxu0 0.0
      %2368 = vmatpush1.msra.mxu0 0.0
      %2369 = vmatprep.subr.mxu0 0.0
      %2370 = vmatpush1.msra.mxu0 0.0
      %2371 = vmatprep.subr.mxu0 0.0
      %2372 = vmatpush1.msra.mxu0 0.0
      %2373 = vmatprep.mubr.f32.mxu0 0.0
      %2374 = vmatmul.mubr.f32.gmra.mrb[0].mxu0 %v2307
      %v2375 = vpop.f32.mrb[0].mxu0
      %v2376 = vadd.f32 %v2303, %v2375
      %v2377 = vpop.f32.mrb[0].mxu0
      %2378 = vdwg.mxu0
      %v2379 = vmax.f32 %v2376, 0.0
      %v2380 = vld [vmem:[%s5] sm:$0xff]
      %v2381 = vld [vmem:[%s5 + $0x8] sm:$0xff]
      %v2382 = vld [vmem:[%s5 + $0x10] sm:$0xff]
      %v2383 = vld [vmem:[%s5 + $0x18] sm:$0xff]
      %v2384 = vld [vmem:[%s5 + $0x20] sm:$0xff]
      %v2385 = vld [vmem:[%s5 + $0x28] sm:$0xff]
      %v2386 = vld [vmem:[%s5 + $0x30] sm:$0xff]
      %v2387 = vld [vmem:[%s5 + $0x38] sm:$0xff]
      %v2388 = vld [vmem:[%s6] sm:$0x1]
      %v2390 = vlaneseq
      %v2391 = vshrl.u32 %v2390, 7
      %v2392 = vsub.s32 0, %v2391
      %v2393 = vrot.slane %v2388, %v2392
      %vm2395 = vcmask 523264
      %v2397 = vsel %vm2395, %v2379, 0
      %2399 = vmatprep.subr.mxu0 0.0
      %2400 = vmatpush1.msra.mxu0 %v2380
      %2401 = vmatprep.subr.mxu0 0.0
      %2402 = vmatpush1.msra.mxu0 %v2381
      %2403 = vmatprep.subr.mxu0 0.0
      %2404 = vmatpush1.msra.mxu0 %v2382
      %2405 = vmatprep.subr.mxu0 0.0
      %2406 = vmatpush1.msra.mxu0 %v2383
      %2407 = vmatprep.subr.mxu0 0.0
      %2408 = vmatpush1.msra.mxu0 %v2384
      %2409 = vmatprep.subr.mxu0 0.0
      %2410 = vmatpush1.msra.mxu0 %v2385
      %2411 = vmatprep.subr.mxu0 0.0
      %2412 = vmatpush1.msra.mxu0 %v2386
      %2413 = vmatprep.subr.mxu0 0.0
      %2414 = vmatpush1.msra.mxu0 %v2387
      %2415 = vmatprep.subr.mxu0 0.0
      %2416 = vmatpush1.msra.mxu0 0.0
      %2417 = vmatprep.subr.mxu0 0.0
      %2418 = vmatpush1.msra.mxu0 0.0
      %2419 = vmatprep.subr.mxu0 0.0
      %2420 = vmatpush1.msra.mxu0 0.0
      %2421 = vmatprep.subr.mxu0 0.0
      %2422 = vmatpush1.msra.mxu0 0.0
      %2423 = vmatprep.subr.mxu0 0.0
      %2424 = vmatpush1.msra.mxu0 0.0
      %2425 = vmatprep.subr.mxu0 0.0
      %2426 = vmatpush1.msra.mxu0 0.0
      %2427 = vmatprep.subr.mxu0 0.0
      %2428 = vmatpush1.msra.mxu0 0.0
      %2429 = vmatprep.subr.mxu0 0.0
      %2430 = vmatpush1.msra.mxu0 0.0
      %2431 = vmatprep.subr.mxu0 0.0
      %2432 = vmatpush1.msra.mxu0 0.0
      %2433 = vmatprep.subr.mxu0 0.0
      %2434 = vmatpush1.msra.mxu0 0.0
      %2435 = vmatprep.subr.mxu0 0.0
      %2436 = vmatpush1.msra.mxu0 0.0
      %2437 = vmatprep.subr.mxu0 0.0
      %2438 = vmatpush1.msra.mxu0 0.0
      %2439 = vmatprep.subr.mxu0 0.0
      %2440 = vmatpush1.msra.mxu0 0.0
      %2441 = vmatprep.subr.mxu0 0.0
      %2442 = vmatpush1.msra.mxu0 0.0
      %2443 = vmatprep.subr.mxu0 0.0
      %2444 = vmatpush1.msra.mxu0 0.0
      %2445 = vmatprep.subr.mxu0 0.0
      %2446 = vmatpush1.msra.mxu0 0.0
      %2447 = vmatprep.subr.mxu0 0.0
      %2448 = vmatpush1.msra.mxu0 0.0
      %2449 = vmatprep.subr.mxu0 0.0
      %2450 = vmatpush1.msra.mxu0 0.0
      %2451 = vmatprep.subr.mxu0 0.0
      %2452 = vmatpush1.msra.mxu0 0.0
      %2453 = vmatprep.subr.mxu0 0.0
      %2454 = vmatpush1.msra.mxu0 0.0
      %2455 = vmatprep.subr.mxu0 0.0
      %2456 = vmatpush1.msra.mxu0 0.0
      %2457 = vmatprep.subr.mxu0 0.0
      %2458 = vmatpush1.msra.mxu0 0.0
      %2459 = vmatprep.subr.mxu0 0.0
      %2460 = vmatpush1.msra.mxu0 0.0
      %2461 = vmatprep.subr.mxu0 0.0
      %2462 = vmatpush1.msra.mxu0 0.0
      %2463 = vmatprep.mubr.f32.mxu0 0.0
      %2464 = vmatmul.mubr.f32.gmra.mrb[0].mxu0 %v2397
      %v2465 = vpop.f32.mrb[0].mxu0
      %v2466 = vadd.f32 %v2393, %v2465
      %v2467 = vpop.f32.mrb[0].mxu0
      %2468 = vdwg.mxu0
      %v2469 = vmax.f32 %v2466, 0.0
      %v2470 = vld [vmem:[%s7] sm:$0xff]
      %v2471 = vld [vmem:[%s7 + $0x8] sm:$0xff]
      %v2472 = vld [vmem:[%s7 + $0x10] sm:$0xff]
      %v2473 = vld [vmem:[%s7 + $0x18] sm:$0xff]
      %v2474 = vld [vmem:[%s7 + $0x20] sm:$0xff]
      %v2475 = vld [vmem:[%s7 + $0x28] sm:$0xff]
      %v2476 = vld [vmem:[%s7 + $0x30] sm:$0xff]
      %v2477 = vld [vmem:[%s7 + $0x38] sm:$0xff]
      %v2478 = vld [vmem:[%s7 + $0x40] sm:$0xff]
      %v2479 = vld [vmem:[%s7 + $0x48] sm:$0xff]
      %v2480 = vld [vmem:[%s7 + $0x50] sm:$0xff]
      %v2481 = vld [vmem:[%s7 + $0x58] sm:$0xff]
      %v2482 = vld [vmem:[%s7 + $0x60] sm:$0xff]
      %v2483 = vld [vmem:[%s7 + $0x68] sm:$0xff]
      %v2484 = vld [vmem:[%s7 + $0x70] sm:$0xff]
      %v2485 = vld [vmem:[%s7 + $0x78] sm:$0xff]
      %v2486 = vld [vmem:[%s7 + $0x80] sm:$0xff]
      %v2487 = vld [vmem:[%s7 + $0x88] sm:$0xff]
      %v2488 = vld [vmem:[%s7 + $0x90] sm:$0xff]
      %v2489 = vld [vmem:[%s7 + $0x98] sm:$0xff]
      %v2490 = vld [vmem:[%s7 + $0xa0] sm:$0xff]
      %v2491 = vld [vmem:[%s7 + $0xa8] sm:$0xff]
      %v2492 = vld [vmem:[%s7 + $0xb0] sm:$0xff]
      %v2493 = vld [vmem:[%s7 + $0xb8] sm:$0xff]
      %v2494 = vld [vmem:[%s7 + $0xc0] sm:$0xff]
      %v2495 = vld [vmem:[%s7 + $0xc8] sm:$0xff]
      %v2496 = vld [vmem:[%s7 + $0xd0] sm:$0xff]
      %v2497 = vld [vmem:[%s7 + $0xd8] sm:$0xff]
      %v2498 = vld [vmem:[%s7 + $0xe0] sm:$0xff]
      %v2499 = vld [vmem:[%s7 + $0xe8] sm:$0xff]
      %v2500 = vld [vmem:[%s7 + $0xf0] sm:$0xff]
      %v2501 = vld [vmem:[%s7 + $0xf8] sm:$0xff]
      %v2502 = vld [vmem:[%s7 + $0x100] sm:$0xff]
      %v2503 = vld [vmem:[%s7 + $0x108] sm:$0xff]
      %v2504 = vld [vmem:[%s7 + $0x110] sm:$0xff]
      %v2505 = vld [vmem:[%s7 + $0x118] sm:$0xff]
      %v2506 = vld [vmem:[%s7 + $0x120] sm:$0xff]
      %v2507 = vld [vmem:[%s7 + $0x128] sm:$0xff]
      %v2508 = vld [vmem:[%s7 + $0x130] sm:$0xff]
      %v2509 = vld [vmem:[%s7 + $0x138] sm:$0xff]
      %v2510 = vld [vmem:[%s7 + $0x140] sm:$0xff]
      %v2511 = vld [vmem:[%s7 + $0x148] sm:$0xff]
      %v2512 = vld [vmem:[%s7 + $0x150] sm:$0xff]
      %v2513 = vld [vmem:[%s7 + $0x158] sm:$0xff]
      %v2514 = vld [vmem:[%s7 + $0x160] sm:$0xff]
      %v2515 = vld [vmem:[%s7 + $0x168] sm:$0xff]
      %v2516 = vld [vmem:[%s7 + $0x170] sm:$0xff]
      %v2517 = vld [vmem:[%s7 + $0x178] sm:$0xff]
      %v2518 = vld [vmem:[%s7 + $0x180] sm:$0xff]
      %v2519 = vld [vmem:[%s7 + $0x188] sm:$0xff]
      %v2520 = vld [vmem:[%s7 + $0x190] sm:$0xff]
      %v2521 = vld [vmem:[%s7 + $0x198] sm:$0xff]
      %v2522 = vld [vmem:[%s7 + $0x1a0] sm:$0xff]
      %v2523 = vld [vmem:[%s7 + $0x1a8] sm:$0xff]
      %v2524 = vld [vmem:[%s7 + $0x1b0] sm:$0xff]
      %v2525 = vld [vmem:[%s7 + $0x1b8] sm:$0xff]
      %v2526 = vld [vmem:[%s7 + $0x1c0] sm:$0xff]
      %v2527 = vld [vmem:[%s7 + $0x1c8] sm:$0xff]
      %v2528 = vld [vmem:[%s7 + $0x1d0] sm:$0xff]
      %v2529 = vld [vmem:[%s7 + $0x1d8] sm:$0xff]
      %v2530 = vld [vmem:[%s7 + $0x1e0] sm:$0xff]
      %v2531 = vld [vmem:[%s7 + $0x1e8] sm:$0xff]
      %v2532 = vld [vmem:[%s7 + $0x1f0] sm:$0xff]
      %v2533 = vld [vmem:[%s7 + $0x1f8] sm:$0xff]
      %v2534 = vld [vmem:[%s7 + $0x200] sm:$0xff]
      %v2535 = vld [vmem:[%s7 + $0x208] sm:$0xff]
      %v2536 = vld [vmem:[%s7 + $0x210] sm:$0xff]
      %v2537 = vld [vmem:[%s7 + $0x218] sm:$0xff]
      %v2538 = vld [vmem:[%s7 + $0x220] sm:$0xff]
      %v2539 = vld [vmem:[%s7 + $0x228] sm:$0xff]
      %v2540 = vld [vmem:[%s7 + $0x230] sm:$0xff]
      %v2541 = vld [vmem:[%s7 + $0x238] sm:$0xff]
      %v2542 = vld [vmem:[%s7 + $0x240] sm:$0xff]
      %v2543 = vld [vmem:[%s7 + $0x248] sm:$0xff]
      %v2544 = vld [vmem:[%s7 + $0x250] sm:$0xff]
      %v2545 = vld [vmem:[%s7 + $0x258] sm:$0xff]
      %v2546 = vld [vmem:[%s7 + $0x260] sm:$0xff]
      %v2547 = vld [vmem:[%s7 + $0x268] sm:$0xff]
      %v2548 = vld [vmem:[%s7 + $0x270] sm:$0xff]
      %v2549 = vld [vmem:[%s7 + $0x278] sm:$0xff]
      %v2550 = vld [vmem:[%s7 + $0x280] sm:$0xff]
      %v2551 = vld [vmem:[%s7 + $0x288] sm:$0xff]
      %v2552 = vld [vmem:[%s7 + $0x290] sm:$0xff]
      %v2553 = vld [vmem:[%s7 + $0x298] sm:$0xff]
      %v2554 = vld [vmem:[%s7 + $0x2a0] sm:$0xff]
      %v2555 = vld [vmem:[%s7 + $0x2a8] sm:$0xff]
      %v2556 = vld [vmem:[%s7 + $0x2b0] sm:$0xff]
      %v2557 = vld [vmem:[%s7 + $0x2b8] sm:$0xff]
      %v2558 = vld [vmem:[%s7 + $0x2c0] sm:$0xff]
      %v2559 = vld [vmem:[%s7 + $0x2c8] sm:$0xff]
      %v2560 = vld [vmem:[%s7 + $0x2d0] sm:$0xff]
      %v2561 = vld [vmem:[%s7 + $0x2d8] sm:$0xff]
      %v2562 = vld [vmem:[%s7 + $0x2e0] sm:$0xff]
      %v2563 = vld [vmem:[%s7 + $0x2e8] sm:$0xff]
      %v2564 = vld [vmem:[%s7 + $0x2f0] sm:$0xff]
      %v2565 = vld [vmem:[%s7 + $0x2f8] sm:$0xff]
      %v2566 = vld [vmem:[%s7 + $0x300] sm:$0xff]
      %v2567 = vld [vmem:[%s7 + $0x308] sm:$0xff]
      %v2568 = vld [vmem:[%s7 + $0x310] sm:$0xff]
      %v2569 = vld [vmem:[%s7 + $0x318] sm:$0xff]
      %v2570 = vld [vmem:[%s7 + $0x320] sm:$0xff]
      %v2571 = vld [vmem:[%s7 + $0x328] sm:$0xff]
      %v2572 = vld [vmem:[%s7 + $0x330] sm:$0xff]
      %v2573 = vld [vmem:[%s7 + $0x338] sm:$0xff]
      %v2574 = vld [vmem:[%s7 + $0x340] sm:$0xff]
      %v2575 = vld [vmem:[%s7 + $0x348] sm:$0xff]
      %v2576 = vld [vmem:[%s7 + $0x350] sm:$0xff]
      %v2577 = vld [vmem:[%s7 + $0x358] sm:$0xff]
      %v2578 = vld [vmem:[%s7 + $0x360] sm:$0xff]
      %v2579 = vld [vmem:[%s7 + $0x368] sm:$0xff]
      %v2580 = vld [vmem:[%s7 + $0x370] sm:$0xff]
      %v2581 = vld [vmem:[%s7 + $0x378] sm:$0xff]
      %v2582 = vld [vmem:[%s7 + $0x380] sm:$0xff]
      %v2583 = vld [vmem:[%s7 + $0x388] sm:$0xff]
      %v2584 = vld [vmem:[%s7 + $0x390] sm:$0xff]
      %v2585 = vld [vmem:[%s7 + $0x398] sm:$0xff]
      %v2586 = vld [vmem:[%s7 + $0x3a0] sm:$0xff]
      %v2587 = vld [vmem:[%s7 + $0x3a8] sm:$0xff]
      %v2588 = vld [vmem:[%s7 + $0x3b0] sm:$0xff]
      %v2589 = vld [vmem:[%s7 + $0x3b8] sm:$0xff]
      %v2590 = vld [vmem:[%s7 + $0x3c0] sm:$0xff]
      %v2591 = vld [vmem:[%s7 + $0x3c8] sm:$0xff]
      %v2592 = vld [vmem:[%s7 + $0x3d0] sm:$0xff]
      %v2593 = vld [vmem:[%s7 + $0x3d8] sm:$0xff]
      %v2594 = vld [vmem:[%s7 + $0x3e0] sm:$0xff]
      %v2595 = vld [vmem:[%s7 + $0x3e8] sm:$0xff]
      %v2596 = vld [vmem:[%s7 + $0x3f0] sm:$0xff]
      %v2597 = vld [vmem:[%s7 + $0x3f8] sm:$0xff]
      %v2598 = vld [vmem:[%s7 + $0x400] sm:$0xff]
      %v2599 = vld [vmem:[%s7 + $0x408] sm:$0xff]
      %v2600 = vld [vmem:[%s7 + $0x410] sm:$0xff]
      %v2601 = vld [vmem:[%s7 + $0x418] sm:$0xff]
      %v2602 = vld [vmem:[%s7 + $0x420] sm:$0xff]
      %v2603 = vld [vmem:[%s7 + $0x428] sm:$0xff]
      %v2604 = vld [vmem:[%s7 + $0x430] sm:$0xff]
      %v2605 = vld [vmem:[%s7 + $0x438] sm:$0xff]
      %v2606 = vld [vmem:[%s7 + $0x440] sm:$0xff]
      %v2607 = vld [vmem:[%s7 + $0x448] sm:$0xff]
      %v2608 = vld [vmem:[%s7 + $0x450] sm:$0xff]
      %v2609 = vld [vmem:[%s7 + $0x458] sm:$0xff]
      %v2610 = vld [vmem:[%s7 + $0x460] sm:$0xff]
      %v2611 = vld [vmem:[%s7 + $0x468] sm:$0xff]
      %v2612 = vld [vmem:[%s7 + $0x470] sm:$0xff]
      %v2613 = vld [vmem:[%s7 + $0x478] sm:$0xff]
      %v2614 = vld [vmem:[%s7 + $0x480] sm:$0xff]
      %v2615 = vld [vmem:[%s7 + $0x488] sm:$0xff]
      %v2616 = vld [vmem:[%s7 + $0x490] sm:$0xff]
      %v2617 = vld [vmem:[%s7 + $0x498] sm:$0xff]
      %v2618 = vld [vmem:[%s7 + $0x4a0] sm:$0xff]
      %v2619 = vld [vmem:[%s7 + $0x4a8] sm:$0xff]
      %v2620 = vld [vmem:[%s7 + $0x4b0] sm:$0xff]
      %v2621 = vld [vmem:[%s7 + $0x4b8] sm:$0xff]
      %v2622 = vld [vmem:[%s7 + $0x4c0] sm:$0xff]
      %v2623 = vld [vmem:[%s7 + $0x4c8] sm:$0xff]
      %v2624 = vld [vmem:[%s7 + $0x4d0] sm:$0xff]
      %v2625 = vld [vmem:[%s7 + $0x4d8] sm:$0xff]
      %v2626 = vld [vmem:[%s7 + $0x4e0] sm:$0xff]
      %v2627 = vld [vmem:[%s7 + $0x4e8] sm:$0xff]
      %v2628 = vld [vmem:[%s7 + $0x4f0] sm:$0xff]
      %v2629 = vld [vmem:[%s7 + $0x4f8] sm:$0xff]
      %v2630 = vld [vmem:[%s8] sm:$0xff]
      %v2631 = vld [vmem:[%s8 + $0x8] sm:$0xff]
      %v2632 = vld [vmem:[%s8 + $0x10] sm:$0xff]
      %v2633 = vld [vmem:[%s8 + $0x18] sm:$0xff]
      %v2635 = vsel %vm334, %v2469, 0
      %2637 = vmatprep.subr.mxu0 0.0
      %2638 = vmatpush1.msra.mxu0 %v2630
      %2639 = vmatprep.subr.mxu0 0.0
      %2640 = vmatpush1.msra.mxu0 %v2631
      %2641 = vmatprep.subr.mxu0 0.0
      %2642 = vmatpush1.msra.mxu0 %v2632
      %2643 = vmatprep.subr.mxu0 0.0
      %2644 = vmatpush1.msra.mxu0 %v2633
      %2645 = vmatprep.subr.mxu0 0.0
      %2646 = vmatpush1.msra.mxu0 0.0
      %2647 = vmatprep.subr.mxu0 0.0
      %2648 = vmatpush1.msra.mxu0 0.0
      %2649 = vmatprep.subr.mxu0 0.0
      %2650 = vmatpush1.msra.mxu0 0.0
      %2651 = vmatprep.subr.mxu0 0.0
      %2652 = vmatpush1.msra.mxu0 0.0
      %2653 = vmatprep.subr.mxu0 0.0
      %2654 = vmatpush1.msra.mxu0 0.0
      %2655 = vmatprep.subr.mxu0 0.0
      %2656 = vmatpush1.msra.mxu0 0.0
      %2657 = vmatprep.subr.mxu0 0.0
      %2658 = vmatpush1.msra.mxu0 0.0
      %2659 = vmatprep.subr.mxu0 0.0
      %2660 = vmatpush1.msra.mxu0 0.0
      %2661 = vmatprep.subr.mxu0 0.0
      %2662 = vmatpush1.msra.mxu0 0.0
      %2663 = vmatprep.subr.mxu0 0.0
      %2664 = vmatpush1.msra.mxu0 0.0
      %2665 = vmatprep.subr.mxu0 0.0
      %2666 = vmatpush1.msra.mxu0 0.0
      %2667 = vmatprep.subr.mxu0 0.0
      %2668 = vmatpush1.msra.mxu0 0.0
      %2669 = vmatprep.subr.mxu0 0.0
      %2670 = vmatpush1.msra.mxu0 0.0
      %2671 = vmatprep.subr.mxu0 0.0
      %2672 = vmatpush1.msra.mxu0 0.0
      %2673 = vmatprep.subr.mxu0 0.0
      %2674 = vmatpush1.msra.mxu0 0.0
      %2675 = vmatprep.subr.mxu0 0.0
      %2676 = vmatpush1.msra.mxu0 0.0
      %2677 = vmatprep.subr.mxu0 0.0
      %2678 = vmatpush1.msra.mxu0 0.0
      %2679 = vmatprep.subr.mxu0 0.0
      %2680 = vmatpush1.msra.mxu0 0.0
      %2681 = vmatprep.subr.mxu0 0.0
      %2682 = vmatpush1.msra.mxu0 0.0
      %2683 = vmatprep.subr.mxu0 0.0
      %2684 = vmatpush1.msra.mxu0 0.0
      %2685 = vmatprep.subr.mxu0 0.0
      %2686 = vmatpush1.msra.mxu0 0.0
      %2687 = vmatprep.subr.mxu0 0.0
      %2688 = vmatpush1.msra.mxu0 0.0
      %2689 = vmatprep.subr.mxu0 0.0
      %2690 = vmatpush1.msra.mxu0 0.0
      %2691 = vmatprep.subr.mxu0 0.0
      %2692 = vmatpush1.msra.mxu0 0.0
      %2693 = vmatprep.subr.mxu0 0.0
      %2694 = vmatpush1.msra.mxu0 0.0
      %2695 = vmatprep.subr.mxu0 0.0
      %2696 = vmatpush1.msra.mxu0 0.0
      %2697 = vmatprep.subr.mxu0 0.0
      %2698 = vmatpush1.msra.mxu0 0.0
      %2699 = vmatprep.subr.mxu0 0.0
      %2700 = vmatpush1.msra.mxu0 0.0
      %2701 = vmatprep.mubr.f32.mxu0 0.0
      %2702 = vmatmul.mubr.f32.gmra.mrb[0].mxu0 %v2635
      %v2703 = vpop.f32.mrb[0].mxu0
      %v2704 = vadd.f32 0.0, %v2703
      %v2705 = vpop.f32.mrb[0].mxu0
      %2706 = vdwg.mxu0
      %v2710 = vcombine.high %v2293, %v2293
      %v2712 = vunpack.c.l.s4 1983009808
      %v2713 = vunpack.c.0.s8 %v2712
      %v2714 = vlaneseq
      %v2715 = vshrl.u32 %v2714, 7
      %v2716 = vsub.s32 %v2713, %v2715
      %v2717 = vrot.slane %v2293, %v2716
      %v2719 = vunpack.c.l.s4 1983009808
      %v2720 = vunpack.c.0.s8 %v2719
      %v2721 = vlaneseq
      %v2722 = vshrl.u32 %v2721, 7
      %v2723 = vsub.s32 %v2720, %v2722
      %v2724 = vrot.slane %v2710, %v2723
      %v2725 = vcombine.high %v2717, %v2717
      %v2726 = vcombine.high %v2724, %v2724
      %v2727 = vcombine.high %v2294, %v2294
      %v2729 = vunpack.c.l.s4 1983009808
      %v2730 = vunpack.c.0.s8 %v2729
      %v2731 = vlaneseq
      %v2732 = vshrl.u32 %v2731, 7
      %v2733 = vsub.s32 %v2730, %v2732
      %v2734 = vrot.slane %v2294, %v2733
      %v2736 = vunpack.c.l.s4 1983009808
      %v2737 = vunpack.c.0.s8 %v2736
      %v2738 = vlaneseq
      %v2739 = vshrl.u32 %v2738, 7
      %v2740 = vsub.s32 %v2737, %v2739
      %v2741 = vrot.slane %v2727, %v2740
      %v2742 = vcombine.high %v2734, %v2734
      %v2743 = vcombine.high %v2741, %v2741
      %v2745 = vunpack.c.l.s4 1983009808
      %v2746 = vunpack.c.0.s8 %v2745
      %v2747 = vlaneseq
      %v2748 = vshrl.u32 %v2747, 7
      %v2749 = vsub.s32 %v2746, %v2748
      %v2750 = vrot.slane %v2295, %v2749
      %v2751 = vcombine.high %v2750, %v2750
      %2762 = vmatprep.subr.mxu0 0.0
      %2763 = vmatpush1.msra.mxu0 %v2470
      %2764 = vmatprep.subr.mxu0 0.0
      %2765 = vmatpush1.msra.mxu0 %v2471
      %2766 = vmatprep.subr.mxu0 0.0
      %2767 = vmatpush1.msra.mxu0 %v2472
      %2768 = vmatprep.subr.mxu0 0.0
      %2769 = vmatpush1.msra.mxu0 %v2473
      %2770 = vmatprep.subr.mxu0 0.0
      %2771 = vmatpush1.msra.mxu0 %v2474
      %2772 = vmatprep.subr.mxu0 0.0
      %2773 = vmatpush1.msra.mxu0 %v2475
      %2774 = vmatprep.subr.mxu0 0.0
      %2775 = vmatpush1.msra.mxu0 %v2476
      %2776 = vmatprep.subr.mxu0 0.0
      %2777 = vmatpush1.msra.mxu0 %v2477
      %2778 = vmatprep.subr.mxu0 0.0
      %2779 = vmatpush1.msra.mxu0 %v2478
      %2780 = vmatprep.subr.mxu0 0.0
      %2781 = vmatpush1.msra.mxu0 %v2479
      %2782 = vmatprep.subr.mxu0 0.0
      %2783 = vmatpush1.msra.mxu0 %v2480
      %2784 = vmatprep.subr.mxu0 0.0
      %2785 = vmatpush1.msra.mxu0 %v2481
      %2786 = vmatprep.subr.mxu0 0.0
      %2787 = vmatpush1.msra.mxu0 %v2482
      %2788 = vmatprep.subr.mxu0 0.0
      %2789 = vmatpush1.msra.mxu0 %v2483
      %2790 = vmatprep.subr.mxu0 0.0
      %2791 = vmatpush1.msra.mxu0 %v2484
      %2792 = vmatprep.subr.mxu0 0.0
      %2793 = vmatpush1.msra.mxu0 %v2485
      %2794 = vmatprep.subr.mxu0 0.0
      %2795 = vmatpush1.msra.mxu0 %v2486
      %2796 = vmatprep.subr.mxu0 0.0
      %2797 = vmatpush1.msra.mxu0 %v2487
      %2798 = vmatprep.subr.mxu0 0.0
      %2799 = vmatpush1.msra.mxu0 %v2488
      %2800 = vmatprep.subr.mxu0 0.0
      %2801 = vmatpush1.msra.mxu0 %v2489
      %2802 = vmatprep.subr.mxu0 0.0
      %2803 = vmatpush1.msra.mxu0 %v2490
      %2804 = vmatprep.subr.mxu0 0.0
      %2805 = vmatpush1.msra.mxu0 %v2491
      %2806 = vmatprep.subr.mxu0 0.0
      %2807 = vmatpush1.msra.mxu0 %v2492
      %2808 = vmatprep.subr.mxu0 0.0
      %2809 = vmatpush1.msra.mxu0 %v2493
      %2810 = vmatprep.subr.mxu0 0.0
      %2811 = vmatpush1.msra.mxu0 %v2494
      %2812 = vmatprep.subr.mxu0 0.0
      %2813 = vmatpush1.msra.mxu0 %v2495
      %2814 = vmatprep.subr.mxu0 0.0
      %2815 = vmatpush1.msra.mxu0 %v2496
      %2816 = vmatprep.subr.mxu0 0.0
      %2817 = vmatpush1.msra.mxu0 %v2497
      %2818 = vmatprep.subr.mxu0 0.0
      %2819 = vmatpush1.msra.mxu0 %v2498
      %2820 = vmatprep.subr.mxu0 0.0
      %2821 = vmatpush1.msra.mxu0 %v2499
      %2822 = vmatprep.subr.mxu0 0.0
      %2823 = vmatpush1.msra.mxu0 %v2500
      %2824 = vmatprep.subr.mxu0 0.0
      %2825 = vmatpush1.msra.mxu0 %v2501
      %2826 = vmatprep.mubr.f32.mxu0 %v2725
      %2827 = vmatmul.mubr.f32.gmra.mrb[0].mxu0 %v2717
      %v2828 = vpop.f32.mrb[0].mxu0
      %v2829 = vadd.f32 %v2704, %v2828
      %v2830 = vpop.f32.mrb[0].mxu0
      %2831 = vdwg.mxu0
      %2832 = vmatprep.subr.mxu0 0.0
      %2833 = vmatpush1.msra.mxu0 %v2502
      %2834 = vmatprep.subr.mxu0 0.0
      %2835 = vmatpush1.msra.mxu0 %v2503
      %2836 = vmatprep.subr.mxu0 0.0
      %2837 = vmatpush1.msra.mxu0 %v2504
      %2838 = vmatprep.subr.mxu0 0.0
      %2839 = vmatpush1.msra.mxu0 %v2505
      %2840 = vmatprep.subr.mxu0 0.0
      %2841 = vmatpush1.msra.mxu0 %v2506
      %2842 = vmatprep.subr.mxu0 0.0
      %2843 = vmatpush1.msra.mxu0 %v2507
      %2844 = vmatprep.subr.mxu0 0.0
      %2845 = vmatpush1.msra.mxu0 %v2508
      %2846 = vmatprep.subr.mxu0 0.0
      %2847 = vmatpush1.msra.mxu0 %v2509
      %2848 = vmatprep.subr.mxu0 0.0
      %2849 = vmatpush1.msra.mxu0 %v2510
      %2850 = vmatprep.subr.mxu0 0.0
      %2851 = vmatpush1.msra.mxu0 %v2511
      %2852 = vmatprep.subr.mxu0 0.0
      %2853 = vmatpush1.msra.mxu0 %v2512
      %2854 = vmatprep.subr.mxu0 0.0
      %2855 = vmatpush1.msra.mxu0 %v2513
      %2856 = vmatprep.subr.mxu0 0.0
      %2857 = vmatpush1.msra.mxu0 %v2514
      %2858 = vmatprep.subr.mxu0 0.0
      %2859 = vmatpush1.msra.mxu0 %v2515
      %2860 = vmatprep.subr.mxu0 0.0
      %2861 = vmatpush1.msra.mxu0 %v2516
      %2862 = vmatprep.subr.mxu0 0.0
      %2863 = vmatpush1.msra.mxu0 %v2517
      %2864 = vmatprep.subr.mxu0 0.0
      %2865 = vmatpush1.msra.mxu0 %v2518
      %2866 = vmatprep.subr.mxu0 0.0
      %2867 = vmatpush1.msra.mxu0 %v2519
      %2868 = vmatprep.subr.mxu0 0.0
      %2869 = vmatpush1.msra.mxu0 %v2520
      %2870 = vmatprep.subr.mxu0 0.0
      %2871 = vmatpush1.msra.mxu0 %v2521
      %2872 = vmatprep.subr.mxu0 0.0
      %2873 = vmatpush1.msra.mxu0 %v2522
      %2874 = vmatprep.subr.mxu0 0.0
      %2875 = vmatpush1.msra.mxu0 %v2523
      %2876 = vmatprep.subr.mxu0 0.0
      %2877 = vmatpush1.msra.mxu0 %v2524
      %2878 = vmatprep.subr.mxu0 0.0
      %2879 = vmatpush1.msra.mxu0 %v2525
      %2880 = vmatprep.subr.mxu0 0.0
      %2881 = vmatpush1.msra.mxu0 %v2526
      %2882 = vmatprep.subr.mxu0 0.0
      %2883 = vmatpush1.msra.mxu0 %v2527
      %2884 = vmatprep.subr.mxu0 0.0
      %2885 = vmatpush1.msra.mxu0 %v2528
      %2886 = vmatprep.subr.mxu0 0.0
      %2887 = vmatpush1.msra.mxu0 %v2529
      %2888 = vmatprep.subr.mxu0 0.0
      %2889 = vmatpush1.msra.mxu0 %v2530
      %2890 = vmatprep.subr.mxu0 0.0
      %2891 = vmatpush1.msra.mxu0 %v2531
      %2892 = vmatprep.subr.mxu0 0.0
      %2893 = vmatpush1.msra.mxu0 %v2532
      %2894 = vmatprep.subr.mxu0 0.0
      %2895 = vmatpush1.msra.mxu0 %v2533
      %2896 = vmatprep.mubr.f32.mxu0 %v2726
      %2897 = vmatmul.mubr.f32.gmra.mrb[0].mxu0 %v2724
      %v2898 = vpop.f32.mrb[0].mxu0
      %v2899 = vadd.f32 %v2829, %v2898
      %v2900 = vpop.f32.mrb[0].mxu0
      %2901 = vdwg.mxu0
      %2902 = vmatprep.subr.mxu0 0.0
      %2903 = vmatpush1.msra.mxu0 %v2534
      %2904 = vmatprep.subr.mxu0 0.0
      %2905 = vmatpush1.msra.mxu0 %v2535
      %2906 = vmatprep.subr.mxu0 0.0
      %2907 = vmatpush1.msra.mxu0 %v2536
      %2908 = vmatprep.subr.mxu0 0.0
      %2909 = vmatpush1.msra.mxu0 %v2537
      %2910 = vmatprep.subr.mxu0 0.0
      %2911 = vmatpush1.msra.mxu0 %v2538
      %2912 = vmatprep.subr.mxu0 0.0
      %2913 = vmatpush1.msra.mxu0 %v2539
      %2914 = vmatprep.subr.mxu0 0.0
      %2915 = vmatpush1.msra.mxu0 %v2540
      %2916 = vmatprep.subr.mxu0 0.0
      %2917 = vmatpush1.msra.mxu0 %v2541
      %2918 = vmatprep.subr.mxu0 0.0
      %2919 = vmatpush1.msra.mxu0 %v2542
      %2920 = vmatprep.subr.mxu0 0.0
      %2921 = vmatpush1.msra.mxu0 %v2543
      %2922 = vmatprep.subr.mxu0 0.0
      %2923 = vmatpush1.msra.mxu0 %v2544
      %2924 = vmatprep.subr.mxu0 0.0
      %2925 = vmatpush1.msra.mxu0 %v2545
      %2926 = vmatprep.subr.mxu0 0.0
      %2927 = vmatpush1.msra.mxu0 %v2546
      %2928 = vmatprep.subr.mxu0 0.0
      %2929 = vmatpush1.msra.mxu0 %v2547
      %2930 = vmatprep.subr.mxu0 0.0
      %2931 = vmatpush1.msra.mxu0 %v2548
      %2932 = vmatprep.subr.mxu0 0.0
      %2933 = vmatpush1.msra.mxu0 %v2549
      %2934 = vmatprep.subr.mxu0 0.0
      %2935 = vmatpush1.msra.mxu0 %v2550
      %2936 = vmatprep.subr.mxu0 0.0
      %2937 = vmatpush1.msra.mxu0 %v2551
      %2938 = vmatprep.subr.mxu0 0.0
      %2939 = vmatpush1.msra.mxu0 %v2552
      %2940 = vmatprep.subr.mxu0 0.0
      %2941 = vmatpush1.msra.mxu0 %v2553
      %2942 = vmatprep.subr.mxu0 0.0
      %2943 = vmatpush1.msra.mxu0 %v2554
      %2944 = vmatprep.subr.mxu0 0.0
      %2945 = vmatpush1.msra.mxu0 %v2555
      %2946 = vmatprep.subr.mxu0 0.0
      %2947 = vmatpush1.msra.mxu0 %v2556
      %2948 = vmatprep.subr.mxu0 0.0
      %2949 = vmatpush1.msra.mxu0 %v2557
      %2950 = vmatprep.subr.mxu0 0.0
      %2951 = vmatpush1.msra.mxu0 %v2558
      %2952 = vmatprep.subr.mxu0 0.0
      %2953 = vmatpush1.msra.mxu0 %v2559
      %2954 = vmatprep.subr.mxu0 0.0
      %2955 = vmatpush1.msra.mxu0 %v2560
      %2956 = vmatprep.subr.mxu0 0.0
      %2957 = vmatpush1.msra.mxu0 %v2561
      %2958 = vmatprep.subr.mxu0 0.0
      %2959 = vmatpush1.msra.mxu0 %v2562
      %2960 = vmatprep.subr.mxu0 0.0
      %2961 = vmatpush1.msra.mxu0 %v2563
      %2962 = vmatprep.subr.mxu0 0.0
      %2963 = vmatpush1.msra.mxu0 %v2564
      %2964 = vmatprep.subr.mxu0 0.0
      %2965 = vmatpush1.msra.mxu0 %v2565
      %2966 = vmatprep.mubr.f32.mxu0 %v2742
      %2967 = vmatmul.mubr.f32.gmra.mrb[0].mxu0 %v2734
      %v2968 = vpop.f32.mrb[0].mxu0
      %v2969 = vadd.f32 %v2899, %v2968
      %v2970 = vpop.f32.mrb[0].mxu0
      %2971 = vdwg.mxu0
      %2972 = vmatprep.subr.mxu0 0.0
      %2973 = vmatpush1.msra.mxu0 %v2566
      %2974 = vmatprep.subr.mxu0 0.0
      %2975 = vmatpush1.msra.mxu0 %v2567
      %2976 = vmatprep.subr.mxu0 0.0
      %2977 = vmatpush1.msra.mxu0 %v2568
      %2978 = vmatprep.subr.mxu0 0.0
      %2979 = vmatpush1.msra.mxu0 %v2569
      %2980 = vmatprep.subr.mxu0 0.0
      %2981 = vmatpush1.msra.mxu0 %v2570
      %2982 = vmatprep.subr.mxu0 0.0
      %2983 = vmatpush1.msra.mxu0 %v2571
      %2984 = vmatprep.subr.mxu0 0.0
      %2985 = vmatpush1.msra.mxu0 %v2572
      %2986 = vmatprep.subr.mxu0 0.0
      %2987 = vmatpush1.msra.mxu0 %v2573
      %2988 = vmatprep.subr.mxu0 0.0
      %2989 = vmatpush1.msra.mxu0 %v2574
      %2990 = vmatprep.subr.mxu0 0.0
      %2991 = vmatpush1.msra.mxu0 %v2575
      %2992 = vmatprep.subr.mxu0 0.0
      %2993 = vmatpush1.msra.mxu0 %v2576
      %2994 = vmatprep.subr.mxu0 0.0
      %2995 = vmatpush1.msra.mxu0 %v2577
      %2996 = vmatprep.subr.mxu0 0.0
      %2997 = vmatpush1.msra.mxu0 %v2578
      %2998 = vmatprep.subr.mxu0 0.0
      %2999 = vmatpush1.msra.mxu0 %v2579
      %3000 = vmatprep.subr.mxu0 0.0
      %3001 = vmatpush1.msra.mxu0 %v2580
      %3002 = vmatprep.subr.mxu0 0.0
      %3003 = vmatpush1.msra.mxu0 %v2581
      %3004 = vmatprep.subr.mxu0 0.0
      %3005 = vmatpush1.msra.mxu0 %v2582
      %3006 = vmatprep.subr.mxu0 0.0
      %3007 = vmatpush1.msra.mxu0 %v2583
      %3008 = vmatprep.subr.mxu0 0.0
      %3009 = vmatpush1.msra.mxu0 %v2584
      %3010 = vmatprep.subr.mxu0 0.0
      %3011 = vmatpush1.msra.mxu0 %v2585
      %3012 = vmatprep.subr.mxu0 0.0
      %3013 = vmatpush1.msra.mxu0 %v2586
      %3014 = vmatprep.subr.mxu0 0.0
      %3015 = vmatpush1.msra.mxu0 %v2587
      %3016 = vmatprep.subr.mxu0 0.0
      %3017 = vmatpush1.msra.mxu0 %v2588
      %3018 = vmatprep.subr.mxu0 0.0
      %3019 = vmatpush1.msra.mxu0 %v2589
      %3020 = vmatprep.subr.mxu0 0.0
      %3021 = vmatpush1.msra.mxu0 %v2590
      %3022 = vmatprep.subr.mxu0 0.0
      %3023 = vmatpush1.msra.mxu0 %v2591
      %3024 = vmatprep.subr.mxu0 0.0
      %3025 = vmatpush1.msra.mxu0 %v2592
      %3026 = vmatprep.subr.mxu0 0.0
      %3027 = vmatpush1.msra.mxu0 %v2593
      %3028 = vmatprep.subr.mxu0 0.0
      %3029 = vmatpush1.msra.mxu0 %v2594
      %3030 = vmatprep.subr.mxu0 0.0
      %3031 = vmatpush1.msra.mxu0 %v2595
      %3032 = vmatprep.subr.mxu0 0.0
      %3033 = vmatpush1.msra.mxu0 %v2596
      %3034 = vmatprep.subr.mxu0 0.0
      %3035 = vmatpush1.msra.mxu0 %v2597
      %3036 = vmatprep.mubr.f32.mxu0 %v2743
      %3037 = vmatmul.mubr.f32.gmra.mrb[0].mxu0 %v2741
      %v3038 = vpop.f32.mrb[0].mxu0
      %v3039 = vadd.f32 %v2969, %v3038
      %v3040 = vpop.f32.mrb[0].mxu0
      %3041 = vdwg.mxu0
      %3042 = vmatprep.subr.mxu0 0.0
      %3043 = vmatpush1.msra.mxu0 %v2598
      %3044 = vmatprep.subr.mxu0 0.0
      %3045 = vmatpush1.msra.mxu0 %v2599
      %3046 = vmatprep.subr.mxu0 0.0
      %3047 = vmatpush1.msra.mxu0 %v2600
      %3048 = vmatprep.subr.mxu0 0.0
      %3049 = vmatpush1.msra.mxu0 %v2601
      %3050 = vmatprep.subr.mxu0 0.0
      %3051 = vmatpush1.msra.mxu0 %v2602
      %3052 = vmatprep.subr.mxu0 0.0
      %3053 = vmatpush1.msra.mxu0 %v2603
      %3054 = vmatprep.subr.mxu0 0.0
      %3055 = vmatpush1.msra.mxu0 %v2604
      %3056 = vmatprep.subr.mxu0 0.0
      %3057 = vmatpush1.msra.mxu0 %v2605
      %3058 = vmatprep.subr.mxu0 0.0
      %3059 = vmatpush1.msra.mxu0 %v2606
      %3060 = vmatprep.subr.mxu0 0.0
      %3061 = vmatpush1.msra.mxu0 %v2607
      %3062 = vmatprep.subr.mxu0 0.0
      %3063 = vmatpush1.msra.mxu0 %v2608
      %3064 = vmatprep.subr.mxu0 0.0
      %3065 = vmatpush1.msra.mxu0 %v2609
      %3066 = vmatprep.subr.mxu0 0.0
      %3067 = vmatpush1.msra.mxu0 %v2610
      %3068 = vmatprep.subr.mxu0 0.0
      %3069 = vmatpush1.msra.mxu0 %v2611
      %3070 = vmatprep.subr.mxu0 0.0
      %3071 = vmatpush1.msra.mxu0 %v2612
      %3072 = vmatprep.subr.mxu0 0.0
      %3073 = vmatpush1.msra.mxu0 %v2613
      %3074 = vmatprep.subr.mxu0 0.0
      %3075 = vmatpush1.msra.mxu0 %v2614
      %3076 = vmatprep.subr.mxu0 0.0
      %3077 = vmatpush1.msra.mxu0 %v2615
      %3078 = vmatprep.subr.mxu0 0.0
      %3079 = vmatpush1.msra.mxu0 %v2616
      %3080 = vmatprep.subr.mxu0 0.0
      %3081 = vmatpush1.msra.mxu0 %v2617
      %3082 = vmatprep.subr.mxu0 0.0
      %3083 = vmatpush1.msra.mxu0 %v2618
      %3084 = vmatprep.subr.mxu0 0.0
      %3085 = vmatpush1.msra.mxu0 %v2619
      %3086 = vmatprep.subr.mxu0 0.0
      %3087 = vmatpush1.msra.mxu0 %v2620
      %3088 = vmatprep.subr.mxu0 0.0
      %3089 = vmatpush1.msra.mxu0 %v2621
      %3090 = vmatprep.subr.mxu0 0.0
      %3091 = vmatpush1.msra.mxu0 %v2622
      %3092 = vmatprep.subr.mxu0 0.0
      %3093 = vmatpush1.msra.mxu0 %v2623
      %3094 = vmatprep.subr.mxu0 0.0
      %3095 = vmatpush1.msra.mxu0 %v2624
      %3096 = vmatprep.subr.mxu0 0.0
      %3097 = vmatpush1.msra.mxu0 %v2625
      %3098 = vmatprep.subr.mxu0 0.0
      %3099 = vmatpush1.msra.mxu0 %v2626
      %3100 = vmatprep.subr.mxu0 0.0
      %3101 = vmatpush1.msra.mxu0 %v2627
      %3102 = vmatprep.subr.mxu0 0.0
      %3103 = vmatpush1.msra.mxu0 %v2628
      %3104 = vmatprep.subr.mxu0 0.0
      %3105 = vmatpush1.msra.mxu0 %v2629
      %3106 = vmatprep.mubr.f32.mxu0 %v2751
      %3107 = vmatmul.mubr.f32.gmra.mrb[0].mxu0 %v2750
      %v3108 = vpop.f32.mrb[0].mxu0
      %v3109 = vadd.f32 %v3039, %v3108
      %v3110 = vpop.f32.mrb[0].mxu0
      %3111 = vdwg.mxu0
      %v3112 = vld [vmem:[%s9] sm:$0x1]
      %v3114 = vlaneseq
      %v3115 = vshrl.u32 %v3114, 7
      %v3116 = vsub.s32 0, %v3115
      %v3117 = vrot.slane %v3112, %v3116
      %v3119 = vadd.f32 %v3109, %v3117
      %v3120 = vmax.f32 %v3119, 0.0
      %v3121 = vld [vmem:[%s10] sm:$0xff]
      %v3122 = vld [vmem:[%s10 + $0x8] sm:$0xff]
      %v3123 = vld [vmem:[%s10 + $0x10] sm:$0xff]
      %v3124 = vld [vmem:[%s10 + $0x18] sm:$0xff]
      %v3125 = vld [vmem:[%s10 + $0x20] sm:$0xff]
      %v3126 = vld [vmem:[%s10 + $0x28] sm:$0xff]
      %v3127 = vld [vmem:[%s10 + $0x30] sm:$0xff]
      %v3128 = vld [vmem:[%s10 + $0x38] sm:$0xff]
      %v3129 = vld [vmem:[%s11] sm:$0x1]
      %v3131 = vlaneseq
      %v3132 = vshrl.u32 %v3131, 7
      %v3133 = vsub.s32 0, %v3132
      %v3134 = vrot.slane %v3129, %v3133
      %v3137 = vsel %vm2395, %v3120, 0
      %3139 = vmatprep.subr.mxu0 0.0
      %3140 = vmatpush1.msra.mxu0 %v3121
      %3141 = vmatprep.subr.mxu0 0.0
      %3142 = vmatpush1.msra.mxu0 %v3122
      %3143 = vmatprep.subr.mxu0 0.0
      %3144 = vmatpush1.msra.mxu0 %v3123
      %3145 = vmatprep.subr.mxu0 0.0
      %3146 = vmatpush1.msra.mxu0 %v3124
      %3147 = vmatprep.subr.mxu0 0.0
      %3148 = vmatpush1.msra.mxu0 %v3125
      %3149 = vmatprep.subr.mxu0 0.0
      %3150 = vmatpush1.msra.mxu0 %v3126
      %3151 = vmatprep.subr.mxu0 0.0
      %3152 = vmatpush1.msra.mxu0 %v3127
      %3153 = vmatprep.subr.mxu0 0.0
      %3154 = vmatpush1.msra.mxu0 %v3128
      %3155 = vmatprep.subr.mxu0 0.0
      %3156 = vmatpush1.msra.mxu0 0.0
      %3157 = vmatprep.subr.mxu0 0.0
      %3158 = vmatpush1.msra.mxu0 0.0
      %3159 = vmatprep.subr.mxu0 0.0
      %3160 = vmatpush1.msra.mxu0 0.0
      %3161 = vmatprep.subr.mxu0 0.0
      %3162 = vmatpush1.msra.mxu0 0.0
      %3163 = vmatprep.subr.mxu0 0.0
      %3164 = vmatpush1.msra.mxu0 0.0
      %3165 = vmatprep.subr.mxu0 0.0
      %3166 = vmatpush1.msra.mxu0 0.0
      %3167 = vmatprep.subr.mxu0 0.0
      %3168 = vmatpush1.msra.mxu0 0.0
      %3169 = vmatprep.subr.mxu0 0.0
      %3170 = vmatpush1.msra.mxu0 0.0
      %3171 = vmatprep.subr.mxu0 0.0
      %3172 = vmatpush1.msra.mxu0 0.0
      %3173 = vmatprep.subr.mxu0 0.0
      %3174 = vmatpush1.msra.mxu0 0.0
      %3175 = vmatprep.subr.mxu0 0.0
      %3176 = vmatpush1.msra.mxu0 0.0
      %3177 = vmatprep.subr.mxu0 0.0
      %3178 = vmatpush1.msra.mxu0 0.0
      %3179 = vmatprep.subr.mxu0 0.0
      %3180 = vmatpush1.msra.mxu0 0.0
      %3181 = vmatprep.subr.mxu0 0.0
      %3182 = vmatpush1.msra.mxu0 0.0
      %3183 = vmatprep.subr.mxu0 0.0
      %3184 = vmatpush1.msra.mxu0 0.0
      %3185 = vmatprep.subr.mxu0 0.0
      %3186 = vmatpush1.msra.mxu0 0.0
      %3187 = vmatprep.subr.mxu0 0.0
      %3188 = vmatpush1.msra.mxu0 0.0
      %3189 = vmatprep.subr.mxu0 0.0
      %3190 = vmatpush1.msra.mxu0 0.0
      %3191 = vmatprep.subr.mxu0 0.0
      %3192 = vmatpush1.msra.mxu0 0.0
      %3193 = vmatprep.subr.mxu0 0.0
      %3194 = vmatpush1.msra.mxu0 0.0
      %3195 = vmatprep.subr.mxu0 0.0
      %3196 = vmatpush1.msra.mxu0 0.0
      %3197 = vmatprep.subr.mxu0 0.0
      %3198 = vmatpush1.msra.mxu0 0.0
      %3199 = vmatprep.subr.mxu0 0.0
      %3200 = vmatpush1.msra.mxu0 0.0
      %3201 = vmatprep.subr.mxu0 0.0
      %3202 = vmatpush1.msra.mxu0 0.0
      %3203 = vmatprep.mubr.f32.mxu0 0.0
      %3204 = vmatmul.mubr.f32.gmra.mrb[0].mxu0 %v3137
      %v3205 = vpop.f32.mrb[0].mxu0
      %v3206 = vadd.f32 %v3134, %v3205
      %v3207 = vpop.f32.mrb[0].mxu0
      %3208 = vdwg.mxu0
      %v3209 = vmax.f32 %v3206, 0.0
      %v3210 = vld [vmem:[%s12] sm:$0xff]
      %v3211 = vld [vmem:[%s12 + $0x8] sm:$0xff]
      %v3212 = vld [vmem:[%s12 + $0x10] sm:$0xff]
      %v3213 = vld [vmem:[%s12 + $0x18] sm:$0xff]
      %v3214 = vld [vmem:[%s13] sm:$0x1]
      %v3216 = vlaneseq
      %v3217 = vshrl.u32 %v3216, 7
      %v3218 = vsub.s32 0, %v3217
      %v3219 = vrot.slane %v3214, %v3218
      %v3222 = vsel %vm334, %v3209, 0
      %3224 = vmatprep.subr.mxu0 0.0
      %3225 = vmatpush1.msra.mxu0 %v3210
      %3226 = vmatprep.subr.mxu0 0.0
      %3227 = vmatpush1.msra.mxu0 %v3211
      %3228 = vmatprep.subr.mxu0 0.0
      %3229 = vmatpush1.msra.mxu0 %v3212
      %3230 = vmatprep.subr.mxu0 0.0
      %3231 = vmatpush1.msra.mxu0 %v3213
      %3232 = vmatprep.subr.mxu0 0.0
      %3233 = vmatpush1.msra.mxu0 0.0
      %3234 = vmatprep.subr.mxu0 0.0
      %3235 = vmatpush1.msra.mxu0 0.0
      %3236 = vmatprep.subr.mxu0 0.0
      %3237 = vmatpush1.msra.mxu0 0.0
      %3238 = vmatprep.subr.mxu0 0.0
      %3239 = vmatpush1.msra.mxu0 0.0
      %3240 = vmatprep.subr.mxu0 0.0
      %3241 = vmatpush1.msra.mxu0 0.0
      %3242 = vmatprep.subr.mxu0 0.0
      %3243 = vmatpush1.msra.mxu0 0.0
      %3244 = vmatprep.subr.mxu0 0.0
      %3245 = vmatpush1.msra.mxu0 0.0
      %3246 = vmatprep.subr.mxu0 0.0
      %3247 = vmatpush1.msra.mxu0 0.0
      %3248 = vmatprep.subr.mxu0 0.0
      %3249 = vmatpush1.msra.mxu0 0.0
      %3250 = vmatprep.subr.mxu0 0.0
      %3251 = vmatpush1.msra.mxu0 0.0
      %3252 = vmatprep.subr.mxu0 0.0
      %3253 = vmatpush1.msra.mxu0 0.0
      %3254 = vmatprep.subr.mxu0 0.0
      %3255 = vmatpush1.msra.mxu0 0.0
      %3256 = vmatprep.subr.mxu0 0.0
      %3257 = vmatpush1.msra.mxu0 0.0
      %3258 = vmatprep.subr.mxu0 0.0
      %3259 = vmatpush1.msra.mxu0 0.0
      %3260 = vmatprep.subr.mxu0 0.0
      %3261 = vmatpush1.msra.mxu0 0.0
      %3262 = vmatprep.subr.mxu0 0.0
      %3263 = vmatpush1.msra.mxu0 0.0
      %3264 = vmatprep.subr.mxu0 0.0
      %3265 = vmatpush1.msra.mxu0 0.0
      %3266 = vmatprep.subr.mxu0 0.0
      %3267 = vmatpush1.msra.mxu0 0.0
      %3268 = vmatprep.subr.mxu0 0.0
      %3269 = vmatpush1.msra.mxu0 0.0
      %3270 = vmatprep.subr.mxu0 0.0
      %3271 = vmatpush1.msra.mxu0 0.0
      %3272 = vmatprep.subr.mxu0 0.0
      %3273 = vmatpush1.msra.mxu0 0.0
      %3274 = vmatprep.subr.mxu0 0.0
      %3275 = vmatpush1.msra.mxu0 0.0
      %3276 = vmatprep.subr.mxu0 0.0
      %3277 = vmatpush1.msra.mxu0 0.0
      %3278 = vmatprep.subr.mxu0 0.0
      %3279 = vmatpush1.msra.mxu0 0.0
      %3280 = vmatprep.subr.mxu0 0.0
      %3281 = vmatpush1.msra.mxu0 0.0
      %3282 = vmatprep.subr.mxu0 0.0
      %3283 = vmatpush1.msra.mxu0 0.0
      %3284 = vmatprep.subr.mxu0 0.0
      %3285 = vmatpush1.msra.mxu0 0.0
      %3286 = vmatprep.subr.mxu0 0.0
      %3287 = vmatpush1.msra.mxu0 0.0
      %3288 = vmatprep.mubr.f32.mxu0 0.0
      %3289 = vmatmul.mubr.f32.gmra.mrb[0].mxu0 %v3222
      %v3290 = vpop.f32.mrb[0].mxu0
      %v3291 = vadd.f32 %v3219, %v3290
      %v3292 = vpop.f32.mrb[0].mxu0
      %3293 = vdwg.mxu0
      %v3294 = vmax.f32 %v3291, 0.0
      %v3295 = vld [vmem:[%s14] sm:$0xff]
      %v3296 = vld [vmem:[%s14 + $0x8] sm:$0xff]
      %v3297 = vld [vmem:[%s15] sm:$0x1]
      %v3299 = vlaneseq
      %v3300 = vshrl.u32 %v3299, 7
      %v3301 = vsub.s32 0, %v3300
      %v3302 = vrot.slane %v3297, %v3301
      %vm3304 = vcmask 130048
      %v3306 = vsel %vm3304, %v3294, 0
      %3308 = vmatprep.subr.mxu0 0.0
      %3309 = vmatpush1.msra.mxu0 %v3295
      %3310 = vmatprep.subr.mxu0 0.0
      %3311 = vmatpush1.msra.mxu0 %v3296
      %3312 = vmatprep.subr.mxu0 0.0
      %3313 = vmatpush1.msra.mxu0 0.0
      %3314 = vmatprep.subr.mxu0 0.0
      %3315 = vmatpush1.msra.mxu0 0.0
      %3316 = vmatprep.subr.mxu0 0.0
      %3317 = vmatpush1.msra.mxu0 0.0
      %3318 = vmatprep.subr.mxu0 0.0
      %3319 = vmatpush1.msra.mxu0 0.0
      %3320 = vmatprep.subr.mxu0 0.0
      %3321 = vmatpush1.msra.mxu0 0.0
      %3322 = vmatprep.subr.mxu0 0.0
      %3323 = vmatpush1.msra.mxu0 0.0
      %3324 = vmatprep.subr.mxu0 0.0
      %3325 = vmatpush1.msra.mxu0 0.0
      %3326 = vmatprep.subr.mxu0 0.0
      %3327 = vmatpush1.msra.mxu0 0.0
      %3328 = vmatprep.subr.mxu0 0.0
      %3329 = vmatpush1.msra.mxu0 0.0
      %3330 = vmatprep.subr.mxu0 0.0
      %3331 = vmatpush1.msra.mxu0 0.0
      %3332 = vmatprep.subr.mxu0 0.0
      %3333 = vmatpush1.msra.mxu0 0.0
      %3334 = vmatprep.subr.mxu0 0.0
      %3335 = vmatpush1.msra.mxu0 0.0
      %3336 = vmatprep.subr.mxu0 0.0
      %3337 = vmatpush1.msra.mxu0 0.0
      %3338 = vmatprep.subr.mxu0 0.0
      %3339 = vmatpush1.msra.mxu0 0.0
      %3340 = vmatprep.subr.mxu0 0.0
      %3341 = vmatpush1.msra.mxu0 0.0
      %3342 = vmatprep.subr.mxu0 0.0
      %3343 = vmatpush1.msra.mxu0 0.0
      %3344 = vmatprep.subr.mxu0 0.0
      %3345 = vmatpush1.msra.mxu0 0.0
      %3346 = vmatprep.subr.mxu0 0.0
      %3347 = vmatpush1.msra.mxu0 0.0
      %3348 = vmatprep.subr.mxu0 0.0
      %3349 = vmatpush1.msra.mxu0 0.0
      %3350 = vmatprep.subr.mxu0 0.0
      %3351 = vmatpush1.msra.mxu0 0.0
      %3352 = vmatprep.subr.mxu0 0.0
      %3353 = vmatpush1.msra.mxu0 0.0
      %3354 = vmatprep.subr.mxu0 0.0
      %3355 = vmatpush1.msra.mxu0 0.0
      %3356 = vmatprep.subr.mxu0 0.0
      %3357 = vmatpush1.msra.mxu0 0.0
      %3358 = vmatprep.subr.mxu0 0.0
      %3359 = vmatpush1.msra.mxu0 0.0
      %3360 = vmatprep.subr.mxu0 0.0
      %3361 = vmatpush1.msra.mxu0 0.0
      %3362 = vmatprep.subr.mxu0 0.0
      %3363 = vmatpush1.msra.mxu0 0.0
      %3364 = vmatprep.subr.mxu0 0.0
      %3365 = vmatpush1.msra.mxu0 0.0
      %3366 = vmatprep.subr.mxu0 0.0
      %3367 = vmatpush1.msra.mxu0 0.0
      %3368 = vmatprep.subr.mxu0 0.0
      %3369 = vmatpush1.msra.mxu0 0.0
      %3370 = vmatprep.subr.mxu0 0.0
      %3371 = vmatpush1.msra.mxu0 0.0
      %3372 = vmatprep.mubr.f32.mxu0 0.0
      %3373 = vmatmul.mubr.f32.gmra.mrb[0].mxu0 %v3306
      %v3374 = vpop.f32.mrb[0].mxu0
      %v3375 = vadd.f32 %v3302, %v3374
      %v3376 = vpop.f32.mrb[0].mxu0
      %3377 = vdwg.mxu0
      %vm3378 = vcmask 74752
      %3379 = vst.msk [vmem:[#allocation3] sm:$0x3] %vm3378, %v3375
    $region73: #{transfer_learning_forward.1} parent=1 // pred_fallthru
      _
    // Predicated region
    $region74: #{transfer_learning_forward.1} parent=1 // pred_check
      _
    $region75: #{transfer_learning_forward.1} parent=1 // pred_check_branch
      %3381 = sbr.rel (0) target = $region77
    $region76: #{transfer_learning_forward.1} parent=1 // pred_region
      %s3383 = ssub.s32 32, 32
      %3384 = vsyncadd [#allocation4], %s3383
      %s3386 = sshll.u32 [#allocation3], 4
      %s3387 = int_to_ptr.vmem [resolvable:$true] %s3386
      %3389 = dma.vmem_to_hbm [thread:$0]  %s3387, 32, %s16, [#allocation4]
    $region77: #{transfer_learning_forward.1} parent=1 // pred_fallthru
      _
    // Predicated region
    $region78: #{transfer_learning_forward.1} parent=1 // pred_check
      _
    $region79: #{transfer_learning_forward.1} parent=1 // pred_check_branch
      %3391 = sbr.rel (0) target = $region81
    $region80: #{transfer_learning_forward.1} parent=1 // pred_region
      %3392 = dma.done [#allocation4], 32
    $region81: #{transfer_learning_forward.1} parent=1 // pred_fallthru
      _
    %3393 = vsyncpa [#allocation4], 1

</llo_original>
